<compile_context>
chip_gen: v7x
topology: tpu7x:2x2x1
jax: 0.10.0
libtpu: 0.0.40
codegen_flags: <defaults>
</compile_context>

<pallas_src>
import jax
import jax.numpy as jnp
from jax.experimental import pallas as pl
from jax.experimental.pallas import tpu as pltpu


_VMEM_LIMIT = 32 * 1024 * 1024


# ------------------------------ small helpers ------------------------------

def _round_up(x, m):
    return ((x + m - 1) // m) * m


def _pick_m_tile(mp, cap):
    """Largest lane tile <= cap dividing mp (prefer 256-multiples for MXU-N)."""
    for t in (4096, 2048, 1024, 512, 256, 128):
        if t <= cap and mp % t == 0:
            return t
    return mp


def _pick_k_tile(k, cap=1024):
    """Whole K if small enough, else a 128-aligned K tile (accumulated)."""
    if k <= cap:
        return k
    for t in (1024, 512, 256, 128):
        if k % t == 0:
            return t
    return k


# ------------------------------ Pallas kernels ------------------------------

def _conv_mm_stats_kernel(b_ref, a_ref, o_ref, sum_ref, ssq_ref, acc_ref):
    """One (phase, M-tile) of W (Cout, tk) @ patches (tk, tm), K-accumulated.

    Output tile is (Cout, tm): M on the lane axis (lane-dense stores).  On the
    last K step the bf16 conv tile plus per-channel sum / sum-of-squares
    partials (taken from the f32 accumulator) are emitted."""
    kk = pl.program_id(2)

    @pl.when(kk == 0)
    def _init():
        acc_ref[...] = jnp.zeros_like(acc_ref)

    acc_ref[...] += jnp.dot(b_ref[0], a_ref[0],
                            preferred_element_type=jnp.float32)

    @pl.when(kk == pl.num_programs(2) - 1)
    def _finalize():
        acc = acc_ref[...]
        o_ref[0] = acc.astype(o_ref.dtype)
        sum_ref[0] = jnp.sum(acc, axis=1, keepdims=True)
        ssq_ref[0] = jnp.sum(acc * acc, axis=1, keepdims=True)


def _conv_mm_tanh_kernel(b_ref, a_ref, o_ref, acc_ref):
    """Same transposed matmul with tanh fused on the accumulator (last layer)."""
    kk = pl.program_id(2)

    @pl.when(kk == 0)
    def _init():
        acc_ref[...] = jnp.zeros_like(acc_ref)

    acc_ref[...] += jnp.dot(b_ref[0], a_ref[0],
                            preferred_element_type=jnp.float32)

    @pl.when(kk == pl.num_programs(2) - 1)
    def _finalize():
        o_ref[0] = jnp.tanh(acc_ref[...]).astype(o_ref.dtype)


def _dense_mm_kernel(a_ref, b_ref, o_ref):
    o_ref[...] = jnp.dot(a_ref[...], b_ref[...],
                         preferred_element_type=jnp.float32)


def _bn_relu_kernel(x_ref, s_ref, b_ref, o_ref):
    # y = relu(x * scale + bias); scale/bias broadcast against the tile.
    x = x_ref[...].astype(jnp.float32)
    o_ref[...] = jnp.maximum(x * s_ref[...] + b_ref[...],
                             0.0).astype(o_ref.dtype)


# ------------------------------ Pallas wrappers ------------------------------

def _conv_matmul_t(bT, aT, *, fuse, out_dtype=jnp.bfloat16):
    """Phase-batched transposed matmul.

    bT: (P, Cout, K) bf16 phase weights, aT: (P, K, M) bf16 phase patches.
    fuse == "stats": returns (conv bf16 (P, Cout, Mp),
                              sums  f32 (P*Gm, Cout, 1),
                              sumsq f32 (P*Gm, Cout, 1)).
    fuse == "tanh" : returns tanh(conv) in out_dtype, shape (P, Cout, Mp).
    """
    p, cout, k = bT.shape
    m = aT.shape[2]

    cap = 2048
    if m <= cap:
        mp, tm = m, m
    else:
        mp = _round_up(m, 256)
        tm = _pick_m_tile(mp, cap)
    if mp != m:
        aT = jnp.pad(aT, ((0, 0), (0, 0), (0, mp - m)))
    gm = mp // tm
    tk = _pick_k_tile(k)
    gk = k // tk

    b_spec = pl.BlockSpec((1, cout, tk), lambda pp, i, kk: (pp, 0, kk))
    a_spec = pl.BlockSpec((1, tk, tm), lambda pp, i, kk: (pp, kk, i))
    o_spec = pl.BlockSpec((1, cout, tm), lambda pp, i, kk: (pp, 0, i))
    cparams = pltpu.CompilerParams(
        dimension_semantics=("parallel", "parallel", "arbitrary"),
        vmem_limit_bytes=_VMEM_LIMIT)
    scratch = [pltpu.VMEM((cout, tm), jnp.float32)]

    if fuse == "stats":
        stat_spec = pl.BlockSpec((1, cout, 1),
                                 lambda pp, i, kk: (pp * gm + i, 0, 0))
        out_shape = (jax.ShapeDtypeStruct((p, cout, mp), jnp.bfloat16),
                     jax.ShapeDtypeStruct((p * gm, cout, 1), jnp.float32),
                     jax.ShapeDtypeStruct((p * gm, cout, 1), jnp.float32))
        out_specs = (o_spec, stat_spec, stat_spec)
        kernel = _conv_mm_stats_kernel
    elif fuse == "tanh":
        out_shape = jax.ShapeDtypeStruct((p, cout, mp), out_dtype)
        out_specs = o_spec
        kernel = _conv_mm_tanh_kernel
    else:
        raise ValueError(fuse)

    return pl.pallas_call(
        kernel,
        out_shape=out_shape,
        grid=(p, gm, gk),
        in_specs=[b_spec, a_spec],
        out_specs=out_specs,
        scratch_shapes=scratch,
        compiler_params=cparams,
    )(bT, aT)


def _dense_matmul(a, b):
    """Single-block matmul for layer 1: (M, K) @ (K, N) -> f32 (N lane-dense)."""
    m, _ = a.shape
    n = b.shape[1]
    return pl.pallas_call(
        _dense_mm_kernel,
        out_shape=jax.ShapeDtypeStruct((m, n), jnp.float32),
        compiler_params=pltpu.CompilerParams(vmem_limit_bytes=_VMEM_LIMIT),
    )(a, b)


def _bn_relu_phases(y, scale, bias):
    """relu(y*scale+bias) on the (P, Cout, Mp) phase layout (M lane-dense)."""
    p, c, mp = y.shape
    tm = mp if mp <= 4096 else _pick_m_tile(mp, 4096)
    gm = mp // tm
    return pl.pallas_call(
        _bn_relu_kernel,
        out_shape=jax.ShapeDtypeStruct((p, c, mp), jnp.bfloat16),
        grid=(p, gm),
        in_specs=[pl.BlockSpec((1, c, tm), lambda pp, i: (pp, 0, i)),
                  pl.BlockSpec((1, c, 1), lambda pp, i: (0, 0, 0)),
                  pl.BlockSpec((1, c, 1), lambda pp, i: (0, 0, 0))],
        out_specs=pl.BlockSpec((1, c, tm), lambda pp, i: (pp, 0, i)),
        compiler_params=pltpu.CompilerParams(
            dimension_semantics=("parallel", "parallel"),
            vmem_limit_bytes=_VMEM_LIMIT),
    )(y, scale, bias)


def _bn_relu_rows(x2d, scale_row, bias_row):
    """relu(x*scale+bias) with per-COLUMN scale/bias; x2d (M, C), C lane-dense."""
    m, c = x2d.shape
    mp = _round_up(m, 8)
    if mp != m:
        x2d = jnp.pad(x2d, ((0, mp - m), (0, 0)))
    tm = mp if mp <= 2048 else _pick_m_tile(mp, 2048)
    gm = mp // tm
    y = pl.pallas_call(
        _bn_relu_kernel,
        out_shape=jax.ShapeDtypeStruct((mp, c), jnp.bfloat16),
        grid=(gm,),
        in_specs=[pl.BlockSpec((tm, c), lambda i: (i, 0)),
                  pl.BlockSpec((1, c), lambda i: (0, 0)),
                  pl.BlockSpec((1, c), lambda i: (0, 0))],
        out_specs=pl.BlockSpec((tm, c), lambda i: (i, 0)),
        compiler_params=pltpu.CompilerParams(
            dimension_semantics=("parallel",),
            vmem_limit_bytes=_VMEM_LIMIT),
    )(x2d, scale_row, bias_row)
    return y[:m]


# ---------------------- ConvTranspose2d sub-pixel lowering ----------------------

def _phase_taps(phase, stride, pad, k):
    """Kernel taps contributing to outputs o with o % stride == phase and the
    input offset (relative to o // stride) paired with each tap."""
    taps = [t for t in range(k) if (t - (phase + pad)) % stride == 0]
    offs = [(phase + pad - t) // stride for t in taps]
    return taps, offs


def _subpixel_im2col_cf(x, stride, pad, k):
    """Phase-decomposed im2col of a channels-first activation.

    x: (C, N, H, W).  Returns
      aT    : (stride*stride, C*Tc*Tc, N*Qh*Qw) per-phase (K, M) patch matrices,
      meta  : per-phase (taps_y, taps_x) lists (to build matching weights),
      shape : (Ho, Wo, Qh, Qw).
    """
    c, n, h, w = x.shape
    ho = (h - 1) * stride - 2 * pad + k
    wo = (w - 1) * stride - 2 * pad + k
    # All DCGAN layer configs give output sizes divisible by the stride.
    assert ho % stride == 0 and wo % stride == 0
    qh, qw = ho // stride, wo // stride
    tc = -(-k // stride)                       # ceil(k / stride)

    phases = [_phase_taps(ph, stride, pad, k) for ph in range(stride)]
    assert all(len(t) > 0 for t, _ in phases)
    lo_y = max(max(0, -min(o)) for _, o in phases)
    hi_y = max(max(0, qh - 1 + max(o) - (h - 1)) for _, o in phases)
    lo_x = max(max(0, -min(o)) for _, o in phases)
    hi_x = max(max(0, qw - 1 + max(o) - (w - 1)) for _, o in phases)
    xp = jnp.pad(x, ((0, 0), (0, 0), (lo_y, hi_y), (lo_x, hi_x)))

    a_list, meta = [], []
    for py in range(stride):
        ty, oy = phases[py]
        for px in range(stride):
            tx, ox = phases[px]
            slabs = []
            for iy in range(tc):
                for ix in range(tc):
                    if iy < len(ty) and ix < len(tx):
                        ys, xs = oy[iy] + lo_y, ox[ix] + lo_x
                        slabs.append(xp[:, :, ys:ys + qh, xs:xs + qw])
                    else:
                        # Padded tap slot (stride-3 layer): masked by the zero
                        # weight rows _phase_weights_t leaves for this slot.
                        slabs.append(slabs[-1])
            patches = jnp.stack(slabs, axis=1)      # (C, Tc*Tc, N, Qh, Qw)
            a_list.append(patches.reshape(c * tc * tc, n * qh * qw))
            meta.append((ty, tx))
    return jnp.stack(a_list, axis=0), meta, (ho, wo, qh, qw)


def _phase_weights_t(w, meta, stride, k, dtype=jnp.bfloat16):
    """Per-phase transposed weight matrices matching _subpixel_im2col_cf rows.

    w: (Cin, Cout, k, k) (PyTorch ConvTranspose2d layout).
    Returns (stride*stride, Cout, Cin*Tc*Tc).
    """
    cin, cout = w.shape[0], w.shape[1]
    tc = -(-k // stride)
    mats = []
    for ty, tx in meta:
        # Coupled with the padded-tap trick above: slots beyond
        # (len(ty), len(tx)) MUST stay zero so duplicated slabs are masked.
        assert 0 < len(ty) <= tc and 0 < len(tx) <= tc
        sub = w[:, :, ty, :][:, :, :, tx]            # (Cin, Cout, Ty, Tx)
        sub = jnp.transpose(sub, (1, 0, 2, 3))       # (Cout, Cin, Ty, Tx)
        blk = jnp.zeros((cout, cin, tc, tc), jnp.float32)
        blk = blk.at[:, :, :len(ty), :len(tx)].set(sub)
        mats.append(blk.reshape(cout, cin * tc * tc))
    return jnp.stack(mats, axis=0).astype(dtype)


def _ct_layer(x_cf, w, stride, pad, gamma=None, beta=None, eps=1e-5,
              final_tanh=False):
    """ConvTranspose2d(no bias) + [BatchNorm2d(train)+ReLU | Tanh].

    x_cf: (Cin, N, H, W) channels-first.  Returns (Cout, N, Ho, Wo) bf16 for
    BN layers, or (N, Cout, Ho, Wo) f32 (NCHW) for the final tanh layer."""
    n = x_cf.shape[1]
    cout, k = w.shape[1], w.shape[2]
    p = stride * stride

    aT, meta, (ho, wo, qh, qw) = _subpixel_im2col_cf(
        x_cf.astype(jnp.bfloat16), stride, pad, k)
    bT = _phase_weights_t(w, meta, stride, k)
    m = n * qh * qw

    if final_tanh:
        y = _conv_matmul_t(bT, aT, fuse="tanh", out_dtype=jnp.float32)
        y = y[:, :, :m].reshape(stride, stride, cout, n, qh, qw)
        return y.transpose(3, 2, 4, 0, 5, 1).reshape(n, cout, ho, wo)

    conv, sums, ssqs = _conv_matmul_t(bT, aT, fuse="stats")
    cnt = p * m                                        # = N * Ho * Wo
    mean = jnp.sum(sums, axis=0)[:, 0] / cnt
    var = jnp.sum(ssqs, axis=0)[:, 0] / cnt - mean * mean   # biased (BN train)
    scale = gamma * jax.lax.rsqrt(var + eps)
    bias = beta - mean * scale
    y = _bn_relu_phases(conv,
                        scale.reshape(1, cout, 1).astype(jnp.float32),
                        bias.reshape(1, cout, 1).astype(jnp.float32))
    y = y[:, :, :m].reshape(stride, stride, cout, n, qh, qw)
    # Interleave phases back to channels-first (Cout, N, Ho, Wo).
    return y.transpose(2, 3, 4, 0, 5, 1).reshape(cout, n, ho, wo)


def _input_layer(x_nchw, w, gamma, beta, eps=1e-5):
    """Layer 1: ConvTranspose2d(k, 1, 0) on a 1x1 input as ONE dense matmul
    (N, Cin) @ (Cin, Cout*k*k), + BatchNorm2d(train) + ReLU.

    Returns (Cout, N, k, k) bf16 (channels-first)."""
    n = x_nchw.shape[0]
    cin, cout, k = w.shape[0], w.shape[1], w.shape[2]
    x2 = x_nchw.reshape(n, cin)
    npad = _round_up(n, 8)
    xpad = jnp.pad(x2, ((0, npad - n), (0, 0))).astype(jnp.bfloat16)
    wm = w.reshape(cin, cout * k * k).astype(jnp.bfloat16)
    y = _dense_matmul(xpad, wm)                  # (npad, Cout*k*k) f32

    yr = y[:n].reshape(n, cout, k * k)           # tiny: BN stats in plain XLA
    mean = jnp.mean(yr, axis=(0, 2))
    var = jnp.mean(yr * yr, axis=(0, 2)) - mean * mean
    scale = gamma * jax.lax.rsqrt(var + eps)
    bias = beta - mean * scale
    scale_cols = jnp.repeat(scale, k * k).reshape(1, cout * k * k)
    bias_cols = jnp.repeat(bias, k * k).reshape(1, cout * k * k)

    a = _bn_relu_rows(y, scale_cols.astype(jnp.float32),
                      bias_cols.astype(jnp.float32))[:n]
    return a.reshape(n, cout, k, k).transpose(1, 0, 2, 3)   # (Cout, N, k, k)


# ------------------------------ Generator ----------------------------------

@jax.jit
def generator_forward(x_nchw, params):
    (w1, g1, b1, w2, g2, b2, w3, g3, b3, w4, g4, b4, w5) = params
    a = _input_layer(x_nchw, w1, g1, b1)            # (ngf*8, N,  4,  4)
    a = _ct_layer(a, w2, 2, 1, g2, b2)              # (ngf*4, N,  8,  8)
    a = _ct_layer(a, w3, 2, 1, g3, b3)              # (ngf*2, N, 16, 16)
    a = _ct_layer(a, w4, 2, 1, g4, b4)              # (ngf,   N, 32, 32)
    return _ct_layer(a, w5, 3, 1, final_tanh=True)  # (N, 3, 96, 96) f32 NCHW


def init_params(key, input_size, ngf):
    ks = jax.random.split(key, 10)

    def convw(k, cin, cout, ksz):
        return 0.02 * jax.random.normal(k, (cin, cout, ksz, ksz), jnp.float32)

    def bnp(k, c):
        g = 1.0 + 0.02 * jax.random.normal(k, (c,), jnp.float32)
        b = jnp.zeros((c,), jnp.float32)
        return g, b

    w1 = convw(ks[0], input_size, ngf * 8, 4); g1, b1 = bnp(ks[1], ngf * 8)
    w2 = convw(ks[2], ngf * 8, ngf * 4, 4);    g2, b2 = bnp(ks[3], ngf * 4)
    w3 = convw(ks[4], ngf * 4, ngf * 2, 4);    g3, b3 = bnp(ks[5], ngf * 2)
    w4 = convw(ks[6], ngf * 2, ngf, 4);        g4, b4 = bnp(ks[7], ngf)
    w5 = convw(ks[8], ngf, 3, 5)
    return (w1, g1, b1, w2, g2, b2, w3, g3, b3, w4, g4, b4, w5)


if __name__ == "__main__":
    key = jax.random.PRNGKey(0)
    k_param, k_x = jax.random.split(key)

    batch, input_size, ngf = 2, 16, 8
    params = init_params(k_param, input_size, ngf)
    x = jax.random.normal(k_x, (batch, input_size, 1, 1), jnp.float32)

    out = generator_forward(x, params)
    out = jax.block_until_ready(out)

    assert out.shape == (batch, 3, 96, 96), out.shape
    assert out.dtype == jnp.float32
    assert bool(jnp.all(jnp.isfinite(out)))
    assert bool(jnp.all(jnp.abs(out) <= 1.0))   # tanh range
    print("KERNEL_OK")
</pallas_src>

<mosaic_0001>
module attributes {stable_mosaic.version = 11 : i64} {
  func.func @_bn_relu_kernel(%arg0: i32, %arg1: memref<8x1024xf32, #tpu.memory_space<vmem>>, %arg2: memref<1x1024xf32, #tpu.memory_space<vmem>>, %arg3: memref<1x1024xf32, #tpu.memory_space<vmem>>, %arg4: memref<8x1024xbf16, #tpu.memory_space<vmem>>) attributes {dimension_semantics = [#tpu.dimension_semantics<parallel>], iteration_bounds = array<i64: 1>, scalar_prefetch = 0 : i64, scratch_operands = 0 : i64, tpu.core_type = #tpu.core_type<tc>, window_params = [{transform_indices = @transform_0, window_bounds = array<i64: 8, 1024>}, {pipeline_mode = #tpu.pipeline_mode<synchronous>, transform_indices = @transform_1, window_bounds = array<i64: 1, 1024>}, {pipeline_mode = #tpu.pipeline_mode<synchronous>, transform_indices = @transform_2, window_bounds = array<i64: 1, 1024>}, {transform_indices = @transform_3, window_bounds = array<i64: 8, 1024>}]} {
    %c0 = arith.constant 0 : index
    %c0_0 = arith.constant 0 : index
    %0 = vector.load %arg1[%c0, %c0_0] : memref<8x1024xf32, #tpu.memory_space<vmem>>, vector<8x1024xf32>
    %c0_1 = arith.constant 0 : index
    %c0_2 = arith.constant 0 : index
    %1 = vector.load %arg2[%c0_1, %c0_2] : memref<1x1024xf32, #tpu.memory_space<vmem>>, vector<1x1024xf32>
    %2 = vector.broadcast %1 : vector<1x1024xf32> to vector<8x1024xf32>
    %3 = arith.mulf %0, %2 : vector<8x1024xf32>
    %c0_3 = arith.constant 0 : index
    %c0_4 = arith.constant 0 : index
    %4 = vector.load %arg3[%c0_3, %c0_4] : memref<1x1024xf32, #tpu.memory_space<vmem>>, vector<1x1024xf32>
    %5 = vector.broadcast %4 : vector<1x1024xf32> to vector<8x1024xf32>
    %6 = arith.addf %3, %5 : vector<8x1024xf32>
    %cst = arith.constant 0.000000e+00 : f32
    %7 = vector.broadcast %cst : f32 to vector<8x1024xf32>
    %8 = arith.maximumf %6, %7 : vector<8x1024xf32>
    %9 = arith.truncf %8 : vector<8x1024xf32> to vector<8x1024xbf16>
    %c0_5 = arith.constant 0 : index
    %c0_6 = arith.constant 0 : index
    %10 = vector.load %arg4[%c0_5, %c0_6] : memref<8x1024xbf16, #tpu.memory_space<vmem>>, vector<8x1024xbf16>
    tpu.vector_store %arg4[%c0_5, %c0_6], %9 {strides = array<i32>} : memref<8x1024xbf16, #tpu.memory_space<vmem>>, vector<8x1024xbf16>,
    return
  }
  func.func @transform_0(%arg0: i32) -> (i32, i32) {
    %c0_i32 = arith.constant 0 : i32
    %c0_i32_0 = arith.constant 0 : i32
    return %arg0, %c0_i32 : i32, i32
  }
  func.func @transform_1(%arg0: i32) -> (i32, i32) {
    %c0_i32 = arith.constant 0 : i32
    %c0_i32_0 = arith.constant 0 : i32
    %c0_i32_1 = arith.constant 0 : i32
    return %c0_i32, %c0_i32_0 : i32, i32
  }
  func.func @transform_2(%arg0: i32) -> (i32, i32) {
    %c0_i32 = arith.constant 0 : i32
    %c0_i32_0 = arith.constant 0 : i32
    %c0_i32_1 = arith.constant 0 : i32
    return %c0_i32, %c0_i32_0 : i32, i32
  }
  func.func @transform_3(%arg0: i32) -> (i32, i32) {
    %c0_i32 = arith.constant 0 : i32
    %c0_i32_0 = arith.constant 0 : i32
    return %arg0, %c0_i32 : i32, i32
  }
}

module attributes {stable_mosaic.version = 11 : i64} {
  func.func @_dense_mm_kernel(%arg0: memref<8x16xbf16, #tpu.memory_space<vmem>>, %arg1: memref<16x1024xbf16, #tpu.memory_space<vmem>>, %arg2: memref<8x1024xf32, #tpu.memory_space<vmem>>) attributes {dimension_semantics = [], scalar_prefetch = 0 : i64, scratch_operands = 0 : i64, tpu.core_type = #tpu.core_type<tc>} {
    %c0 = arith.constant 0 : index
    %c0_0 = arith.constant 0 : index
    %0 = vector.load %arg0[%c0, %c0_0] : memref<8x16xbf16, #tpu.memory_space<vmem>>, vector<8x16xbf16>
    %c0_1 = arith.constant 0 : index
    %c0_2 = arith.constant 0 : index
    %1 = vector.load %arg1[%c0_1, %c0_2] : memref<16x1024xbf16, #tpu.memory_space<vmem>>, vector<16x1024xbf16>
    %cst = arith.constant dense<0.000000e+00> : vector<8x1024xf32>
    %2 = tpu.matmul %0, %1, %cst {dimension_numbers = #tpu.dot_dimension_numbers<[1], [0], [0], [1], [0, 0, 1, 1], [], []>} : vector<8x16xbf16>, vector<16x1024xbf16>, vector<8x1024xf32> -> vector<8x1024xf32>
    %c0_3 = arith.constant 0 : index
    %c0_4 = arith.constant 0 : index
    %3 = vector.load %arg2[%c0_3, %c0_4] : memref<8x1024xf32, #tpu.memory_space<vmem>>, vector<8x1024xf32>
    tpu.vector_store %arg2[%c0_3, %c0_4], %2 {strides = array<i32>} : memref<8x1024xf32, #tpu.memory_space<vmem>>, vector<8x1024xf32>,
    return
  }
}

module attributes {stable_mosaic.version = 11 : i64} {
  func.func @_conv_mm_stats_kernel(%arg0: i32, %arg1: i32, %arg2: i32, %arg3: memref<1x32x256xbf16, #tpu.memory_space<vmem>>, %arg4: memref<1x256x32xbf16, #tpu.memory_space<vmem>>, %arg5: memref<1x32x32xbf16, #tpu.memory_space<vmem>>, %arg6: memref<1x32x1xf32, #tpu.memory_space<vmem>>, %arg7: memref<1x32x1xf32, #tpu.memory_space<vmem>>, %arg8: memref<32x32xf32, #tpu.memory_space<vmem>>) attributes {dimension_semantics = [#tpu.dimension_semantics<parallel>, #tpu.dimension_semantics<parallel>, #tpu.dimension_semantics<arbitrary>], iteration_bounds = array<i64: 4, 1, 1>, scalar_prefetch = 0 : i64, scratch_operands = 1 : i64, tpu.core_type = #tpu.core_type<tc>, window_params = [{transform_indices = @transform_0, window_bounds = array<i64: 1, 32, 256>}, {transform_indices = @transform_1, window_bounds = array<i64: 1, 256, 32>}, {transform_indices = @transform_2, window_bounds = array<i64: 1, 32, 32>}, {transform_indices = @transform_3, window_bounds = array<i64: 1, 32, 1>}, {transform_indices = @transform_4, window_bounds = array<i64: 1, 32, 1>}]} {
    %c0_i32 = arith.constant 0 : i32
    %0 = arith.cmpi eq, %arg2, %c0_i32 : i32
    %1 = arith.extui %0 : i1 to i32
    %c0_i32_0 = arith.constant 0 : i32
    %2 = arith.cmpi ne, %1, %c0_i32_0 : i32
    scf.if %2 {
      %cst_12 = arith.constant 0.000000e+00 : f32
      %14 = vector.broadcast %cst_12 : f32 to vector<32x32xf32>
      %c0_13 = arith.constant 0 : index
      %c0_14 = arith.constant 0 : index
      %15 = vector.load %arg8[%c0_13, %c0_14] : memref<32x32xf32, #tpu.memory_space<vmem>>, vector<32x32xf32>
      tpu.vector_store %arg8[%c0_13, %c0_14], %14 {strides = array<i32>} : memref<32x32xf32, #tpu.memory_space<vmem>>, vector<32x32xf32>,
    } else {
    }
    %c0 = arith.constant 0 : index
    %c0_1 = arith.constant 0 : index
    %3 = vector.load %arg8[%c0, %c0_1] : memref<32x32xf32, #tpu.memory_space<vmem>>, vector<32x32xf32>
    %c0_2 = arith.constant 0 : index
    %c0_3 = arith.constant 0 : index
    %c0_4 = arith.constant 0 : index
    %4 = vector.load %arg3[%c0_2, %c0_3, %c0_4] : memref<1x32x256xbf16, #tpu.memory_space<vmem>>, vector<1x32x256xbf16>
    %5 = vector.shape_cast %4 : vector<1x32x256xbf16> to vector<32x256xbf16>
    %c0_5 = arith.constant 0 : index
    %c0_6 = arith.constant 0 : index
    %c0_7 = arith.constant 0 : index
    %6 = vector.load %arg4[%c0_5, %c0_6, %c0_7] : memref<1x256x32xbf16, #tpu.memory_space<vmem>>, vector<1x256x32xbf16>
    %7 = vector.shape_cast %6 : vector<1x256x32xbf16> to vector<256x32xbf16>
    %cst = arith.constant dense<0.000000e+00> : vector<32x32xf32>
    %8 = tpu.matmul %5, %7, %cst {dimension_numbers = #tpu.dot_dimension_numbers<[1], [0], [0], [1], [0, 0, 1, 1], [], []>} : vector<32x256xbf16>, vector<256x32xbf16>, vector<32x32xf32> -> vector<32x32xf32>
    %9 = arith.addf %3, %8 : vector<32x32xf32>
    %c0_8 = arith.constant 0 : index
    %c0_9 = arith.constant 0 : index
    %10 = vector.load %arg8[%c0_8, %c0_9] : memref<32x32xf32, #tpu.memory_space<vmem>>, vector<32x32xf32>
    tpu.vector_store %arg8[%c0_8, %c0_9], %9 {strides = array<i32>} : memref<32x32xf32, #tpu.memory_space<vmem>>, vector<32x32xf32>,
    %c0_i32_10 = arith.constant 0 : i32
    %11 = arith.cmpi eq, %arg2, %c0_i32_10 : i32
    %12 = arith.extui %11 : i1 to i32
    %c0_i32_11 = arith.constant 0 : i32
    %13 = arith.cmpi ne, %12, %c0_i32_11 : i32
    scf.if %13 {
      %c0_12 = arith.constant 0 : index
      %c0_13 = arith.constant 0 : index
      %14 = vector.load %arg8[%c0_12, %c0_13] : memref<32x32xf32, #tpu.memory_space<vmem>>, vector<32x32xf32>
      %15 = arith.truncf %14 : vector<32x32xf32> to vector<32x32xbf16>
      %c0_14 = arith.constant 0 : index
      %c0_15 = arith.constant 0 : index
      %c0_16 = arith.constant 0 : index
      %16 = vector.load %arg5[%c0_14, %c0_15, %c0_16] : memref<1x32x32xbf16, #tpu.memory_space<vmem>>, vector<1x32x32xbf16>
      %17 = vector.shape_cast %16 : vector<1x32x32xbf16> to vector<32x32xbf16>
      %18 = vector.shape_cast %15 : vector<32x32xbf16> to vector<1x32x32xbf16>
      tpu.vector_store %arg5[%c0_14, %c0_15, %c0_16], %18 {strides = array<i32>} : memref<1x32x32xbf16, #tpu.memory_space<vmem>>, vector<1x32x32xbf16>,
      %cst_17 = arith.constant dense<0.000000e+00> : vector<32xf32>
      %19 = vector.multi_reduction <add>, %14, %cst_17 [1] : vector<32x32xf32> to vector<32xf32>
      %20 = vector.shape_cast %19 : vector<32xf32> to vector<32x1xf32>
      %c0_18 = arith.constant 0 : index
      %c0_19 = arith.constant 0 : index
      %c0_20 = arith.constant 0 : index
      %21 = vector.load %arg6[%c0_18, %c0_19, %c0_20] : memref<1x32x1xf32, #tpu.memory_space<vmem>>, vector<1x32x1xf32>
      %22 = vector.shape_cast %21 : vector<1x32x1xf32> to vector<32x1xf32>
      %23 = vector.shape_cast %20 : vector<32x1xf32> to vector<1x32x1xf32>
      tpu.vector_store %arg6[%c0_18, %c0_19, %c0_20], %23 {strides = array<i32>} : memref<1x32x1xf32, #tpu.memory_space<vmem>>, vector<1x32x1xf32>,
      %24 = arith.mulf %14, %14 : vector<32x32xf32>
      %cst_21 = arith.constant dense<0.000000e+00> : vector<32xf32>
      %25 = vector.multi_reduction <add>, %24, %cst_21 [1] : vector<32x32xf32> to vector<32xf32>
      %26 = vector.shape_cast %25 : vector<32xf32> to vector<32x1xf32>
      %c0_22 = arith.constant 0 : index
      %c0_23 = arith.constant 0 : index
      %c0_24 = arith.constant 0 : index
      %27 = vector.load %arg7[%c0_22, %c0_23, %c0_24] : memref<1x32x1xf32, #tpu.memory_space<vmem>>, vector<1x32x1xf32>
      %28 = vector.shape_cast %27 : vector<1x32x1xf32> to vector<32x1xf32>
      %29 = vector.shape_cast %26 : vector<32x1xf32> to vector<1x32x1xf32>
      tpu.vector_store %arg7[%c0_22, %c0_23, %c0_24], %29 {strides = array<i32>} : memref<1x32x1xf32, #tpu.memory_space<vmem>>, vector<1x32x1xf32>,
    } else {
    }
    return
  }
  func.func @transform_0(%arg0: i32, %arg1: i32, %arg2: i32) -> (i32, i32, i32) {
    %c0_i32 = arith.constant 0 : i32
    %c0_i32_0 = arith.constant 0 : i32
    return %arg0, %c0_i32, %arg2 : i32, i32, i32
  }
  func.func @transform_1(%arg0: i32, %arg1: i32, %arg2: i32) -> (i32, i32, i32) {
    %c0_i32 = arith.constant 0 : i32
    return %arg0, %arg2, %arg1 : i32, i32, i32
  }
  func.func @transform_2(%arg0: i32, %arg1: i32, %arg2: i32) -> (i32, i32, i32) {
    %c0_i32 = arith.constant 0 : i32
    %c0_i32_0 = arith.constant 0 : i32
    return %arg0, %c0_i32, %arg1 : i32, i32, i32
  }
  func.func @transform_3(%arg0: i32, %arg1: i32, %arg2: i32) -> (i32, i32, i32) {
    %c1_i32 = arith.constant 1 : i32
    %0 = arith.muli %arg0, %c1_i32 : i32
    %1 = arith.addi %0, %arg1 : i32
    %c0_i32 = arith.constant 0 : i32
    %c0_i32_0 = arith.constant 0 : i32
    %c0_i32_1 = arith.constant 0 : i32
    return %1, %c0_i32, %c0_i32_0 : i32, i32, i32
  }
  func.func @transform_4(%arg0: i32, %arg1: i32, %arg2: i32) -> (i32, i32, i32) {
    %c1_i32 = arith.constant 1 : i32
    %0 = arith.muli %arg0, %c1_i32 : i32
    %1 = arith.addi %0, %arg1 : i32
    %c0_i32 = arith.constant 0 : i32
    %c0_i32_0 = arith.constant 0 : i32
    %c0_i32_1 = arith.constant 0 : i32
    return %1, %c0_i32, %c0_i32_0 : i32, i32, i32
  }
}

module attributes {stable_mosaic.version = 11 : i64} {
  func.func @_bn_relu_kernel(%arg0: i32, %arg1: i32, %arg2: memref<1x32x32xbf16, #tpu.memory_space<vmem>>, %arg3: memref<1x32x1xf32, #tpu.memory_space<vmem>>, %arg4: memref<1x32x1xf32, #tpu.memory_space<vmem>>, %arg5: memref<1x32x32xbf16, #tpu.memory_space<vmem>>) attributes {dimension_semantics = [#tpu.dimension_semantics<parallel>, #tpu.dimension_semantics<parallel>], iteration_bounds = array<i64: 4, 1>, scalar_prefetch = 0 : i64, scratch_operands = 0 : i64, tpu.core_type = #tpu.core_type<tc>, window_params = [{transform_indices = @transform_0, window_bounds = array<i64: 1, 32, 32>}, {pipeline_mode = #tpu.pipeline_mode<synchronous>, transform_indices = @transform_1, window_bounds = array<i64: 1, 32, 1>}, {pipeline_mode = #tpu.pipeline_mode<synchronous>, transform_indices = @transform_2, window_bounds = array<i64: 1, 32, 1>}, {transform_indices = @transform_3, window_bounds = array<i64: 1, 32, 32>}]} {
    %c0 = arith.constant 0 : index
    %c0_0 = arith.constant 0 : index
    %c0_1 = arith.constant 0 : index
    %0 = vector.load %arg2[%c0, %c0_0, %c0_1] : memref<1x32x32xbf16, #tpu.memory_space<vmem>>, vector<1x32x32xbf16>
    %1 = arith.extf %0 : vector<1x32x32xbf16> to vector<1x32x32xf32>
    %c0_2 = arith.constant 0 : index
    %c0_3 = arith.constant 0 : index
    %c0_4 = arith.constant 0 : index
    %2 = vector.load %arg3[%c0_2, %c0_3, %c0_4] : memref<1x32x1xf32, #tpu.memory_space<vmem>>, vector<1x32x1xf32>
    %3 = vector.broadcast %2 : vector<1x32x1xf32> to vector<1x32x32xf32>
    %4 = arith.mulf %1, %3 : vector<1x32x32xf32>
    %c0_5 = arith.constant 0 : index
    %c0_6 = arith.constant 0 : index
    %c0_7 = arith.constant 0 : index
    %5 = vector.load %arg4[%c0_5, %c0_6, %c0_7] : memref<1x32x1xf32, #tpu.memory_space<vmem>>, vector<1x32x1xf32>
    %6 = vector.broadcast %5 : vector<1x32x1xf32> to vector<1x32x32xf32>
    %7 = arith.addf %4, %6 : vector<1x32x32xf32>
    %cst = arith.constant 0.000000e+00 : f32
    %8 = vector.broadcast %cst : f32 to vector<1x32x32xf32>
    %9 = arith.maximumf %7, %8 : vector<1x32x32xf32>
    %10 = arith.truncf %9 : vector<1x32x32xf32> to vector<1x32x32xbf16>
    %c0_8 = arith.constant 0 : index
    %c0_9 = arith.constant 0 : index
    %c0_10 = arith.constant 0 : index
    %11 = vector.load %arg5[%c0_8, %c0_9, %c0_10] : memref<1x32x32xbf16, #tpu.memory_space<vmem>>, vector<1x32x32xbf16>
    tpu.vector_store %arg5[%c0_8, %c0_9, %c0_10], %10 {strides = array<i32>} : memref<1x32x32xbf16, #tpu.memory_space<vmem>>, vector<1x32x32xbf16>,
    return
  }
  func.func @transform_0(%arg0: i32, %arg1: i32) -> (i32, i32, i32) {
    %c0_i32 = arith.constant 0 : i32
    %c0_i32_0 = arith.constant 0 : i32
    return %arg0, %c0_i32, %arg1 : i32, i32, i32
  }
  func.func @transform_1(%arg0: i32, %arg1: i32) -> (i32, i32, i32) {
    %c0_i32 = arith.constant 0 : i32
    %c0_i32_0 = arith.constant 0 : i32
    %c0_i32_1 = arith.constant 0 : i32
    %c0_i32_2 = arith.constant 0 : i32
    return %c0_i32, %c0_i32_0, %c0_i32_1 : i32, i32, i32
  }
  func.func @transform_2(%arg0: i32, %arg1: i32) -> (i32, i32, i32) {
    %c0_i32 = arith.constant 0 : i32
    %c0_i32_0 = arith.constant 0 : i32
    %c0_i32_1 = arith.constant 0 : i32
    %c0_i32_2 = arith.constant 0 : i32
    return %c0_i32, %c0_i32_0, %c0_i32_1 : i32, i32, i32
  }
  func.func @transform_3(%arg0: i32, %arg1: i32) -> (i32, i32, i32) {
    %c0_i32 = arith.constant 0 : i32
    %c0_i32_0 = arith.constant 0 : i32
    return %arg0, %c0_i32, %arg1 : i32, i32, i32
  }
}

module attributes {stable_mosaic.version = 11 : i64} {
  func.func @_conv_mm_stats_kernel(%arg0: i32, %arg1: i32, %arg2: i32, %arg3: memref<1x16x128xbf16, #tpu.memory_space<vmem>>, %arg4: memref<1x128x128xbf16, #tpu.memory_space<vmem>>, %arg5: memref<1x16x128xbf16, #tpu.memory_space<vmem>>, %arg6: memref<1x16x1xf32, #tpu.memory_space<vmem>>, %arg7: memref<1x16x1xf32, #tpu.memory_space<vmem>>, %arg8: memref<16x128xf32, #tpu.memory_space<vmem>>) attributes {dimension_semantics = [#tpu.dimension_semantics<parallel>, #tpu.dimension_semantics<parallel>, #tpu.dimension_semantics<arbitrary>], iteration_bounds = array<i64: 4, 1, 1>, scalar_prefetch = 0 : i64, scratch_operands = 1 : i64, tpu.core_type = #tpu.core_type<tc>, window_params = [{transform_indices = @transform_0, window_bounds = array<i64: 1, 16, 128>}, {transform_indices = @transform_1, window_bounds = array<i64: 1, 128, 128>}, {transform_indices = @transform_2, window_bounds = array<i64: 1, 16, 128>}, {transform_indices = @transform_3, window_bounds = array<i64: 1, 16, 1>}, {transform_indices = @transform_4, window_bounds = array<i64: 1, 16, 1>}]} {
    %c0_i32 = arith.constant 0 : i32
    %0 = arith.cmpi eq, %arg2, %c0_i32 : i32
    %1 = arith.extui %0 : i1 to i32
    %c0_i32_0 = arith.constant 0 : i32
    %2 = arith.cmpi ne, %1, %c0_i32_0 : i32
    scf.if %2 {
      %cst_12 = arith.constant 0.000000e+00 : f32
      %14 = vector.broadcast %cst_12 : f32 to vector<16x128xf32>
      %c0_13 = arith.constant 0 : index
      %c0_14 = arith.constant 0 : index
      %15 = vector.load %arg8[%c0_13, %c0_14] : memref<16x128xf32, #tpu.memory_space<vmem>>, vector<16x128xf32>
      tpu.vector_store %arg8[%c0_13, %c0_14], %14 {strides = array<i32>} : memref<16x128xf32, #tpu.memory_space<vmem>>, vector<16x128xf32>,
    } else {
    }
    %c0 = arith.constant 0 : index
    %c0_1 = arith.constant 0 : index
    %3 = vector.load %arg8[%c0, %c0_1] : memref<16x128xf32, #tpu.memory_space<vmem>>, vector<16x128xf32>
    %c0_2 = arith.constant 0 : index
    %c0_3 = arith.constant 0 : index
    %c0_4 = arith.constant 0 : index
    %4 = vector.load %arg3[%c0_2, %c0_3, %c0_4] : memref<1x16x128xbf16, #tpu.memory_space<vmem>>, vector<1x16x128xbf16>
    %5 = vector.shape_cast %4 : vector<1x16x128xbf16> to vector<16x128xbf16>
    %c0_5 = arith.constant 0 : index
    %c0_6 = arith.constant 0 : index
    %c0_7 = arith.constant 0 : index
    %6 = vector.load %arg4[%c0_5, %c0_6, %c0_7] : memref<1x128x128xbf16, #tpu.memory_space<vmem>>, vector<1x128x128xbf16>
    %7 = vector.shape_cast %6 : vector<1x128x128xbf16> to vector<128x128xbf16>
    %cst = arith.constant dense<0.000000e+00> : vector<16x128xf32>
    %8 = tpu.matmul %5, %7, %cst {dimension_numbers = #tpu.dot_dimension_numbers<[1], [0], [0], [1], [0, 0, 1, 1], [], []>} : vector<16x128xbf16>, vector<128x128xbf16>, vector<16x128xf32> -> vector<16x128xf32>
    %9 = arith.addf %3, %8 : vector<16x128xf32>
    %c0_8 = arith.constant 0 : index
    %c0_9 = arith.constant 0 : index
    %10 = vector.load %arg8[%c0_8, %c0_9] : memref<16x128xf32, #tpu.memory_space<vmem>>, vector<16x128xf32>
    tpu.vector_store %arg8[%c0_8, %c0_9], %9 {strides = array<i32>} : memref<16x128xf32, #tpu.memory_space<vmem>>, vector<16x128xf32>,
    %c0_i32_10 = arith.constant 0 : i32
    %11 = arith.cmpi eq, %arg2, %c0_i32_10 : i32
    %12 = arith.extui %11 : i1 to i32
    %c0_i32_11 = arith.constant 0 : i32
    %13 = arith.cmpi ne, %12, %c0_i32_11 : i32
    scf.if %13 {
      %c0_12 = arith.constant 0 : index
      %c0_13 = arith.constant 0 : index
      %14 = vector.load %arg8[%c0_12, %c0_13] : memref<16x128xf32, #tpu.memory_space<vmem>>, vector<16x128xf32>
      %15 = arith.truncf %14 : vector<16x128xf32> to vector<16x128xbf16>
      %c0_14 = arith.constant 0 : index
      %c0_15 = arith.constant 0 : index
      %c0_16 = arith.constant 0 : index
      %16 = vector.load %arg5[%c0_14, %c0_15, %c0_16] : memref<1x16x128xbf16, #tpu.memory_space<vmem>>, vector<1x16x128xbf16>
      %17 = vector.shape_cast %16 : vector<1x16x128xbf16> to vector<16x128xbf16>
      %18 = vector.shape_cast %15 : vector<16x128xbf16> to vector<1x16x128xbf16>
      tpu.vector_store %arg5[%c0_14, %c0_15, %c0_16], %18 {strides = array<i32>} : memref<1x16x128xbf16, #tpu.memory_space<vmem>>, vector<1x16x128xbf16>,
      %cst_17 = arith.constant dense<0.000000e+00> : vector<16xf32>
      %19 = vector.multi_reduction <add>, %14, %cst_17 [1] : vector<16x128xf32> to vector<16xf32>
      %20 = vector.shape_cast %19 : vector<16xf32> to vector<16x1xf32>
      %c0_18 = arith.constant 0 : index
      %c0_19 = arith.constant 0 : index
      %c0_20 = arith.constant 0 : index
      %21 = vector.load %arg6[%c0_18, %c0_19, %c0_20] : memref<1x16x1xf32, #tpu.memory_space<vmem>>, vector<1x16x1xf32>
      %22 = vector.shape_cast %21 : vector<1x16x1xf32> to vector<16x1xf32>
      %23 = vector.shape_cast %20 : vector<16x1xf32> to vector<1x16x1xf32>
      tpu.vector_store %arg6[%c0_18, %c0_19, %c0_20], %23 {strides = array<i32>} : memref<1x16x1xf32, #tpu.memory_space<vmem>>, vector<1x16x1xf32>,
      %24 = arith.mulf %14, %14 : vector<16x128xf32>
      %cst_21 = arith.constant dense<0.000000e+00> : vector<16xf32>
      %25 = vector.multi_reduction <add>, %24, %cst_21 [1] : vector<16x128xf32> to vector<16xf32>
      %26 = vector.shape_cast %25 : vector<16xf32> to vector<16x1xf32>
      %c0_22 = arith.constant 0 : index
      %c0_23 = arith.constant 0 : index
      %c0_24 = arith.constant 0 : index
      %27 = vector.load %arg7[%c0_22, %c0_23, %c0_24] : memref<1x16x1xf32, #tpu.memory_space<vmem>>, vector<1x16x1xf32>
      %28 = vector.shape_cast %27 : vector<1x16x1xf32> to vector<16x1xf32>
      %29 = vector.shape_cast %26 : vector<16x1xf32> to vector<1x16x1xf32>
      tpu.vector_store %arg7[%c0_22, %c0_23, %c0_24], %29 {strides = array<i32>} : memref<1x16x1xf32, #tpu.memory_space<vmem>>, vector<1x16x1xf32>,
    } else {
    }
    return
  }
  func.func @transform_0(%arg0: i32, %arg1: i32, %arg2: i32) -> (i32, i32, i32) {
    %c0_i32 = arith.constant 0 : i32
    %c0_i32_0 = arith.constant 0 : i32
    return %arg0, %c0_i32, %arg2 : i32, i32, i32
  }
  func.func @transform_1(%arg0: i32, %arg1: i32, %arg2: i32) -> (i32, i32, i32) {
    %c0_i32 = arith.constant 0 : i32
    return %arg0, %arg2, %arg1 : i32, i32, i32
  }
  func.func @transform_2(%arg0: i32, %arg1: i32, %arg2: i32) -> (i32, i32, i32) {
    %c0_i32 = arith.constant 0 : i32
    %c0_i32_0 = arith.constant 0 : i32
    return %arg0, %c0_i32, %arg1 : i32, i32, i32
  }
  func.func @transform_3(%arg0: i32, %arg1: i32, %arg2: i32) -> (i32, i32, i32) {
    %c1_i32 = arith.constant 1 : i32
    %0 = arith.muli %arg0, %c1_i32 : i32
    %1 = arith.addi %0, %arg1 : i32
    %c0_i32 = arith.constant 0 : i32
    %c0_i32_0 = arith.constant 0 : i32
    %c0_i32_1 = arith.constant 0 : i32
    return %1, %c0_i32, %c0_i32_0 : i32, i32, i32
  }
  func.func @transform_4(%arg0: i32, %arg1: i32, %arg2: i32) -> (i32, i32, i32) {
    %c1_i32 = arith.constant 1 : i32
    %0 = arith.muli %arg0, %c1_i32 : i32
    %1 = arith.addi %0, %arg1 : i32
    %c0_i32 = arith.constant 0 : i32
    %c0_i32_0 = arith.constant 0 : i32
    %c0_i32_1 = arith.constant 0 : i32
    return %1, %c0_i32, %c0_i32_0 : i32, i32, i32
  }
}

module attributes {stable_mosaic.version = 11 : i64} {
  func.func @_bn_relu_kernel(%arg0: i32, %arg1: i32, %arg2: memref<1x16x128xbf16, #tpu.memory_space<vmem>>, %arg3: memref<1x16x1xf32, #tpu.memory_space<vmem>>, %arg4: memref<1x16x1xf32, #tpu.memory_space<vmem>>, %arg5: memref<1x16x128xbf16, #tpu.memory_space<vmem>>) attributes {dimension_semantics = [#tpu.dimension_semantics<parallel>, #tpu.dimension_semantics<parallel>], iteration_bounds = array<i64: 4, 1>, scalar_prefetch = 0 : i64, scratch_operands = 0 : i64, tpu.core_type = #tpu.core_type<tc>, window_params = [{transform_indices = @transform_0, window_bounds = array<i64: 1, 16, 128>}, {pipeline_mode = #tpu.pipeline_mode<synchronous>, transform_indices = @transform_1, window_bounds = array<i64: 1, 16, 1>}, {pipeline_mode = #tpu.pipeline_mode<synchronous>, transform_indices = @transform_2, window_bounds = array<i64: 1, 16, 1>}, {transform_indices = @transform_3, window_bounds = array<i64: 1, 16, 128>}]} {
    %c0 = arith.constant 0 : index
    %c0_0 = arith.constant 0 : index
    %c0_1 = arith.constant 0 : index
    %0 = vector.load %arg2[%c0, %c0_0, %c0_1] : memref<1x16x128xbf16, #tpu.memory_space<vmem>>, vector<1x16x128xbf16>
    %1 = arith.extf %0 : vector<1x16x128xbf16> to vector<1x16x128xf32>
    %c0_2 = arith.constant 0 : index
    %c0_3 = arith.constant 0 : index
    %c0_4 = arith.constant 0 : index
    %2 = vector.load %arg3[%c0_2, %c0_3, %c0_4] : memref<1x16x1xf32, #tpu.memory_space<vmem>>, vector<1x16x1xf32>
    %3 = vector.broadcast %2 : vector<1x16x1xf32> to vector<1x16x128xf32>
    %4 = arith.mulf %1, %3 : vector<1x16x128xf32>
    %c0_5 = arith.constant 0 : index
    %c0_6 = arith.constant 0 : index
    %c0_7 = arith.constant 0 : index
    %5 = vector.load %arg4[%c0_5, %c0_6, %c0_7] : memref<1x16x1xf32, #tpu.memory_space<vmem>>, vector<1x16x1xf32>
    %6 = vector.broadcast %5 : vector<1x16x1xf32> to vector<1x16x128xf32>
    %7 = arith.addf %4, %6 : vector<1x16x128xf32>
    %cst = arith.constant 0.000000e+00 : f32
    %8 = vector.broadcast %cst : f32 to vector<1x16x128xf32>
    %9 = arith.maximumf %7, %8 : vector<1x16x128xf32>
    %10 = arith.truncf %9 : vector<1x16x128xf32> to vector<1x16x128xbf16>
    %c0_8 = arith.constant 0 : index
    %c0_9 = arith.constant 0 : index
    %c0_10 = arith.constant 0 : index
    %11 = vector.load %arg5[%c0_8, %c0_9, %c0_10] : memref<1x16x128xbf16, #tpu.memory_space<vmem>>, vector<1x16x128xbf16>
    tpu.vector_store %arg5[%c0_8, %c0_9, %c0_10], %10 {strides = array<i32>} : memref<1x16x128xbf16, #tpu.memory_space<vmem>>, vector<1x16x128xbf16>,
    return
  }
  func.func @transform_0(%arg0: i32, %arg1: i32) -> (i32, i32, i32) {
    %c0_i32 = arith.constant 0 : i32
    %c0_i32_0 = arith.constant 0 : i32
    return %arg0, %c0_i32, %arg1 : i32, i32, i32
  }
  func.func @transform_1(%arg0: i32, %arg1: i32) -> (i32, i32, i32) {
    %c0_i32 = arith.constant 0 : i32
    %c0_i32_0 = arith.constant 0 : i32
    %c0_i32_1 = arith.constant 0 : i32
    %c0_i32_2 = arith.constant 0 : i32
    return %c0_i32, %c0_i32_0, %c0_i32_1 : i32, i32, i32
  }
  func.func @transform_2(%arg0: i32, %arg1: i32) -> (i32, i32, i32) {
    %c0_i32 = arith.constant 0 : i32
    %c0_i32_0 = arith.constant 0 : i32
    %c0_i32_1 = arith.constant 0 : i32
    %c0_i32_2 = arith.constant 0 : i32
    return %c0_i32, %c0_i32_0, %c0_i32_1 : i32, i32, i32
  }
  func.func @transform_3(%arg0: i32, %arg1: i32) -> (i32, i32, i32) {
    %c0_i32 = arith.constant 0 : i32
    %c0_i32_0 = arith.constant 0 : i32
    return %arg0, %c0_i32, %arg1 : i32, i32, i32
  }
}

module attributes {stable_mosaic.version = 11 : i64} {
  func.func @_conv_mm_stats_kernel(%arg0: i32, %arg1: i32, %arg2: i32, %arg3: memref<1x8x64xbf16, #tpu.memory_space<vmem>>, %arg4: memref<1x64x512xbf16, #tpu.memory_space<vmem>>, %arg5: memref<1x8x512xbf16, #tpu.memory_space<vmem>>, %arg6: memref<1x8x1xf32, #tpu.memory_space<vmem>>, %arg7: memref<1x8x1xf32, #tpu.memory_space<vmem>>, %arg8: memref<8x512xf32, #tpu.memory_space<vmem>>) attributes {dimension_semantics = [#tpu.dimension_semantics<parallel>, #tpu.dimension_semantics<parallel>, #tpu.dimension_semantics<arbitrary>], iteration_bounds = array<i64: 4, 1, 1>, scalar_prefetch = 0 : i64, scratch_operands = 1 : i64, tpu.core_type = #tpu.core_type<tc>, window_params = [{transform_indices = @transform_0, window_bounds = array<i64: 1, 8, 64>}, {transform_indices = @transform_1, window_bounds = array<i64: 1, 64, 512>}, {transform_indices = @transform_2, window_bounds = array<i64: 1, 8, 512>}, {transform_indices = @transform_3, window_bounds = array<i64: 1, 8, 1>}, {transform_indices = @transform_4, window_bounds = array<i64: 1, 8, 1>}]} {
    %c0_i32 = arith.constant 0 : i32
    %0 = arith.cmpi eq, %arg2, %c0_i32 : i32
    %1 = arith.extui %0 : i1 to i32
    %c0_i32_0 = arith.constant 0 : i32
    %2 = arith.cmpi ne, %1, %c0_i32_0 : i32
    scf.if %2 {
      %cst_12 = arith.constant 0.000000e+00 : f32
      %14 = vector.broadcast %cst_12 : f32 to vector<8x512xf32>
      %c0_13 = arith.constant 0 : index
      %c0_14 = arith.constant 0 : index
      %15 = vector.load %arg8[%c0_13, %c0_14] : memref<8x512xf32, #tpu.memory_space<vmem>>, vector<8x512xf32>
      tpu.vector_store %arg8[%c0_13, %c0_14], %14 {strides = array<i32>} : memref<8x512xf32, #tpu.memory_space<vmem>>, vector<8x512xf32>,
    } else {
    }
    %c0 = arith.constant 0 : index
    %c0_1 = arith.constant 0 : index
    %3 = vector.load %arg8[%c0, %c0_1] : memref<8x512xf32, #tpu.memory_space<vmem>>, vector<8x512xf32>
    %c0_2 = arith.constant 0 : index
    %c0_3 = arith.constant 0 : index
    %c0_4 = arith.constant 0 : index
    %4 = vector.load %arg3[%c0_2, %c0_3, %c0_4] : memref<1x8x64xbf16, #tpu.memory_space<vmem>>, vector<1x8x64xbf16>
    %5 = vector.shape_cast %4 : vector<1x8x64xbf16> to vector<8x64xbf16>
    %c0_5 = arith.constant 0 : index
    %c0_6 = arith.constant 0 : index
    %c0_7 = arith.constant 0 : index
    %6 = vector.load %arg4[%c0_5, %c0_6, %c0_7] : memref<1x64x512xbf16, #tpu.memory_space<vmem>>, vector<1x64x512xbf16>
    %7 = vector.shape_cast %6 : vector<1x64x512xbf16> to vector<64x512xbf16>
    %cst = arith.constant dense<0.000000e+00> : vector<8x512xf32>
    %8 = tpu.matmul %5, %7, %cst {dimension_numbers = #tpu.dot_dimension_numbers<[1], [0], [0], [1], [0, 0, 1, 1], [], []>} : vector<8x64xbf16>, vector<64x512xbf16>, vector<8x512xf32> -> vector<8x512xf32>
    %9 = arith.addf %3, %8 : vector<8x512xf32>
    %c0_8 = arith.constant 0 : index
    %c0_9 = arith.constant 0 : index
    %10 = vector.load %arg8[%c0_8, %c0_9] : memref<8x512xf32, #tpu.memory_space<vmem>>, vector<8x512xf32>
    tpu.vector_store %arg8[%c0_8, %c0_9], %9 {strides = array<i32>} : memref<8x512xf32, #tpu.memory_space<vmem>>, vector<8x512xf32>,
    %c0_i32_10 = arith.constant 0 : i32
    %11 = arith.cmpi eq, %arg2, %c0_i32_10 : i32
    %12 = arith.extui %11 : i1 to i32
    %c0_i32_11 = arith.constant 0 : i32
    %13 = arith.cmpi ne, %12, %c0_i32_11 : i32
    scf.if %13 {
      %c0_12 = arith.constant 0 : index
      %c0_13 = arith.constant 0 : index
      %14 = vector.load %arg8[%c0_12, %c0_13] : memref<8x512xf32, #tpu.memory_space<vmem>>, vector<8x512xf32>
      %15 = arith.truncf %14 : vector<8x512xf32> to vector<8x512xbf16>
      %c0_14 = arith.constant 0 : index
      %c0_15 = arith.constant 0 : index
      %c0_16 = arith.constant 0 : index
      %16 = vector.load %arg5[%c0_14, %c0_15, %c0_16] : memref<1x8x512xbf16, #tpu.memory_space<vmem>>, vector<1x8x512xbf16>
      %17 = vector.shape_cast %16 : vector<1x8x512xbf16> to vector<8x512xbf16>
      %18 = vector.shape_cast %15 : vector<8x512xbf16> to vector<1x8x512xbf16>
      tpu.vector_store %arg5[%c0_14, %c0_15, %c0_16], %18 {strides = array<i32>} : memref<1x8x512xbf16, #tpu.memory_space<vmem>>, vector<1x8x512xbf16>,
      %cst_17 = arith.constant dense<0.000000e+00> : vector<8xf32>
      %19 = vector.multi_reduction <add>, %14, %cst_17 [1] : vector<8x512xf32> to vector<8xf32>
      %20 = vector.shape_cast %19 : vector<8xf32> to vector<8x1xf32>
      %c0_18 = arith.constant 0 : index
      %c0_19 = arith.constant 0 : index
      %c0_20 = arith.constant 0 : index
      %21 = vector.load %arg6[%c0_18, %c0_19, %c0_20] : memref<1x8x1xf32, #tpu.memory_space<vmem>>, vector<1x8x1xf32>
      %22 = vector.shape_cast %21 : vector<1x8x1xf32> to vector<8x1xf32>
      %23 = vector.shape_cast %20 : vector<8x1xf32> to vector<1x8x1xf32>
      tpu.vector_store %arg6[%c0_18, %c0_19, %c0_20], %23 {strides = array<i32>} : memref<1x8x1xf32, #tpu.memory_space<vmem>>, vector<1x8x1xf32>,
      %24 = arith.mulf %14, %14 : vector<8x512xf32>
      %cst_21 = arith.constant dense<0.000000e+00> : vector<8xf32>
      %25 = vector.multi_reduction <add>, %24, %cst_21 [1] : vector<8x512xf32> to vector<8xf32>
      %26 = vector.shape_cast %25 : vector<8xf32> to vector<8x1xf32>
      %c0_22 = arith.constant 0 : index
      %c0_23 = arith.constant 0 : index
      %c0_24 = arith.constant 0 : index
      %27 = vector.load %arg7[%c0_22, %c0_23, %c0_24] : memref<1x8x1xf32, #tpu.memory_space<vmem>>, vector<1x8x1xf32>
      %28 = vector.shape_cast %27 : vector<1x8x1xf32> to vector<8x1xf32>
      %29 = vector.shape_cast %26 : vector<8x1xf32> to vector<1x8x1xf32>
      tpu.vector_store %arg7[%c0_22, %c0_23, %c0_24], %29 {strides = array<i32>} : memref<1x8x1xf32, #tpu.memory_space<vmem>>, vector<1x8x1xf32>,
    } else {
    }
    return
  }
  func.func @transform_0(%arg0: i32, %arg1: i32, %arg2: i32) -> (i32, i32, i32) {
    %c0_i32 = arith.constant 0 : i32
    %c0_i32_0 = arith.constant 0 : i32
    return %arg0, %c0_i32, %arg2 : i32, i32, i32
  }
  func.func @transform_1(%arg0: i32, %arg1: i32, %arg2: i32) -> (i32, i32, i32) {
    %c0_i32 = arith.constant 0 : i32
    return %arg0, %arg2, %arg1 : i32, i32, i32
  }
  func.func @transform_2(%arg0: i32, %arg1: i32, %arg2: i32) -> (i32, i32, i32) {
    %c0_i32 = arith.constant 0 : i32
    %c0_i32_0 = arith.constant 0 : i32
    return %arg0, %c0_i32, %arg1 : i32, i32, i32
  }
  func.func @transform_3(%arg0: i32, %arg1: i32, %arg2: i32) -> (i32, i32, i32) {
    %c1_i32 = arith.constant 1 : i32
    %0 = arith.muli %arg0, %c1_i32 : i32
    %1 = arith.addi %0, %arg1 : i32
    %c0_i32 = arith.constant 0 : i32
    %c0_i32_0 = arith.constant 0 : i32
    %c0_i32_1 = arith.constant 0 : i32
    return %1, %c0_i32, %c0_i32_0 : i32, i32, i32
  }
  func.func @transform_4(%arg0: i32, %arg1: i32, %arg2: i32) -> (i32, i32, i32) {
    %c1_i32 = arith.constant 1 : i32
    %0 = arith.muli %arg0, %c1_i32 : i32
    %1 = arith.addi %0, %arg1 : i32
    %c0_i32 = arith.constant 0 : i32
    %c0_i32_0 = arith.constant 0 : i32
    %c0_i32_1 = arith.constant 0 : i32
    return %1, %c0_i32, %c0_i32_0 : i32, i32, i32
  }
}

module attributes {stable_mosaic.version = 11 : i64} {
  func.func @_bn_relu_kernel(%arg0: i32, %arg1: i32, %arg2: memref<1x8x512xbf16, #tpu.memory_space<vmem>>, %arg3: memref<1x8x1xf32, #tpu.memory_space<vmem>>, %arg4: memref<1x8x1xf32, #tpu.memory_space<vmem>>, %arg5: memref<1x8x512xbf16, #tpu.memory_space<vmem>>) attributes {dimension_semantics = [#tpu.dimension_semantics<parallel>, #tpu.dimension_semantics<parallel>], iteration_bounds = array<i64: 4, 1>, scalar_prefetch = 0 : i64, scratch_operands = 0 : i64, tpu.core_type = #tpu.core_type<tc>, window_params = [{transform_indices = @transform_0, window_bounds = array<i64: 1, 8, 512>}, {pipeline_mode = #tpu.pipeline_mode<synchronous>, transform_indices = @transform_1, window_bounds = array<i64: 1, 8, 1>}, {pipeline_mode = #tpu.pipeline_mode<synchronous>, transform_indices = @transform_2, window_bounds = array<i64: 1, 8, 1>}, {transform_indices = @transform_3, window_bounds = array<i64: 1, 8, 512>}]} {
    %c0 = arith.constant 0 : index
    %c0_0 = arith.constant 0 : index
    %c0_1 = arith.constant 0 : index
    %0 = vector.load %arg2[%c0, %c0_0, %c0_1] : memref<1x8x512xbf16, #tpu.memory_space<vmem>>, vector<1x8x512xbf16>
    %1 = arith.extf %0 : vector<1x8x512xbf16> to vector<1x8x512xf32>
    %c0_2 = arith.constant 0 : index
    %c0_3 = arith.constant 0 : index
    %c0_4 = arith.constant 0 : index
    %2 = vector.load %arg3[%c0_2, %c0_3, %c0_4] : memref<1x8x1xf32, #tpu.memory_space<vmem>>, vector<1x8x1xf32>
    %3 = vector.broadcast %2 : vector<1x8x1xf32> to vector<1x8x512xf32>
    %4 = arith.mulf %1, %3 : vector<1x8x512xf32>
    %c0_5 = arith.constant 0 : index
    %c0_6 = arith.constant 0 : index
    %c0_7 = arith.constant 0 : index
    %5 = vector.load %arg4[%c0_5, %c0_6, %c0_7] : memref<1x8x1xf32, #tpu.memory_space<vmem>>, vector<1x8x1xf32>
    %6 = vector.broadcast %5 : vector<1x8x1xf32> to vector<1x8x512xf32>
    %7 = arith.addf %4, %6 : vector<1x8x512xf32>
    %cst = arith.constant 0.000000e+00 : f32
    %8 = vector.broadcast %cst : f32 to vector<1x8x512xf32>
    %9 = arith.maximumf %7, %8 : vector<1x8x512xf32>
    %10 = arith.truncf %9 : vector<1x8x512xf32> to vector<1x8x512xbf16>
    %c0_8 = arith.constant 0 : index
    %c0_9 = arith.constant 0 : index
    %c0_10 = arith.constant 0 : index
    %11 = vector.load %arg5[%c0_8, %c0_9, %c0_10] : memref<1x8x512xbf16, #tpu.memory_space<vmem>>, vector<1x8x512xbf16>
    tpu.vector_store %arg5[%c0_8, %c0_9, %c0_10], %10 {strides = array<i32>} : memref<1x8x512xbf16, #tpu.memory_space<vmem>>, vector<1x8x512xbf16>,
    return
  }
  func.func @transform_0(%arg0: i32, %arg1: i32) -> (i32, i32, i32) {
    %c0_i32 = arith.constant 0 : i32
    %c0_i32_0 = arith.constant 0 : i32
    return %arg0, %c0_i32, %arg1 : i32, i32, i32
  }
  func.func @transform_1(%arg0: i32, %arg1: i32) -> (i32, i32, i32) {
    %c0_i32 = arith.constant 0 : i32
    %c0_i32_0 = arith.constant 0 : i32
    %c0_i32_1 = arith.constant 0 : i32
    %c0_i32_2 = arith.constant 0 : i32
    return %c0_i32, %c0_i32_0, %c0_i32_1 : i32, i32, i32
  }
  func.func @transform_2(%arg0: i32, %arg1: i32) -> (i32, i32, i32) {
    %c0_i32 = arith.constant 0 : i32
    %c0_i32_0 = arith.constant 0 : i32
    %c0_i32_1 = arith.constant 0 : i32
    %c0_i32_2 = arith.constant 0 : i32
    return %c0_i32, %c0_i32_0, %c0_i32_1 : i32, i32, i32
  }
  func.func @transform_3(%arg0: i32, %arg1: i32) -> (i32, i32, i32) {
    %c0_i32 = arith.constant 0 : i32
    %c0_i32_0 = arith.constant 0 : i32
    return %arg0, %c0_i32, %arg1 : i32, i32, i32
  }
}

module attributes {stable_mosaic.version = 11 : i64} {
  func.func @_conv_mm_tanh_kernel(%arg0: i32, %arg1: i32, %arg2: i32, %arg3: memref<1x3x32xbf16, #tpu.memory_space<vmem>>, %arg4: memref<1x32x2048xbf16, #tpu.memory_space<vmem>>, %arg5: memref<1x3x2048xf32, #tpu.memory_space<vmem>>, %arg6: memref<3x2048xf32, #tpu.memory_space<vmem>>) attributes {dimension_semantics = [#tpu.dimension_semantics<parallel>, #tpu.dimension_semantics<parallel>, #tpu.dimension_semantics<arbitrary>], iteration_bounds = array<i64: 9, 1, 1>, scalar_prefetch = 0 : i64, scratch_operands = 1 : i64, tpu.core_type = #tpu.core_type<tc>, window_params = [{transform_indices = @transform_0, window_bounds = array<i64: 1, 3, 32>}, {transform_indices = @transform_1, window_bounds = array<i64: 1, 32, 2048>}, {transform_indices = @transform_2, window_bounds = array<i64: 1, 3, 2048>}]} {
    %c0_i32 = arith.constant 0 : i32
    %0 = arith.cmpi eq, %arg2, %c0_i32 : i32
    %1 = arith.extui %0 : i1 to i32
    %c0_i32_0 = arith.constant 0 : i32
    %2 = arith.cmpi ne, %1, %c0_i32_0 : i32
    scf.if %2 {
      %cst_12 = arith.constant 0.000000e+00 : f32
      %14 = vector.broadcast %cst_12 : f32 to vector<3x2048xf32>
      %c0_13 = arith.constant 0 : index
      %c0_14 = arith.constant 0 : index
      %15 = vector.load %arg6[%c0_13, %c0_14] : memref<3x2048xf32, #tpu.memory_space<vmem>>, vector<3x2048xf32>
      tpu.vector_store %arg6[%c0_13, %c0_14], %14 {strides = array<i32>} : memref<3x2048xf32, #tpu.memory_space<vmem>>, vector<3x2048xf32>,
    } else {
    }
    %c0 = arith.constant 0 : index
    %c0_1 = arith.constant 0 : index
    %3 = vector.load %arg6[%c0, %c0_1] : memref<3x2048xf32, #tpu.memory_space<vmem>>, vector<3x2048xf32>
    %c0_2 = arith.constant 0 : index
    %c0_3 = arith.constant 0 : index
    %c0_4 = arith.constant 0 : index
    %4 = vector.load %arg3[%c0_2, %c0_3, %c0_4] : memref<1x3x32xbf16, #tpu.memory_space<vmem>>, vector<1x3x32xbf16>
    %5 = vector.shape_cast %4 : vector<1x3x32xbf16> to vector<3x32xbf16>
    %c0_5 = arith.constant 0 : index
    %c0_6 = arith.constant 0 : index
    %c0_7 = arith.constant 0 : index
    %6 = vector.load %arg4[%c0_5, %c0_6, %c0_7] : memref<1x32x2048xbf16, #tpu.memory_space<vmem>>, vector<1x32x2048xbf16>
    %7 = vector.shape_cast %6 : vector<1x32x2048xbf16> to vector<32x2048xbf16>
    %cst = arith.constant dense<0.000000e+00> : vector<3x2048xf32>
    %8 = tpu.matmul %5, %7, %cst {dimension_numbers = #tpu.dot_dimension_numbers<[1], [0], [0], [1], [0, 0, 1, 1], [], []>} : vector<3x32xbf16>, vector<32x2048xbf16>, vector<3x2048xf32> -> vector<3x2048xf32>
    %9 = arith.addf %3, %8 : vector<3x2048xf32>
    %c0_8 = arith.constant 0 : index
    %c0_9 = arith.constant 0 : index
    %10 = vector.load %arg6[%c0_8, %c0_9] : memref<3x2048xf32, #tpu.memory_space<vmem>>, vector<3x2048xf32>
    tpu.vector_store %arg6[%c0_8, %c0_9], %9 {strides = array<i32>} : memref<3x2048xf32, #tpu.memory_space<vmem>>, vector<3x2048xf32>,
    %c0_i32_10 = arith.constant 0 : i32
    %11 = arith.cmpi eq, %arg2, %c0_i32_10 : i32
    %12 = arith.extui %11 : i1 to i32
    %c0_i32_11 = arith.constant 0 : i32
    %13 = arith.cmpi ne, %12, %c0_i32_11 : i32
    scf.if %13 {
      %c0_12 = arith.constant 0 : index
      %c0_13 = arith.constant 0 : index
      %14 = vector.load %arg6[%c0_12, %c0_13] : memref<3x2048xf32, #tpu.memory_space<vmem>>, vector<3x2048xf32>
      %15 = math.tanh %14 : vector<3x2048xf32>
      %c0_14 = arith.constant 0 : index
      %c0_15 = arith.constant 0 : index
      %c0_16 = arith.constant 0 : index
      %16 = vector.load %arg5[%c0_14, %c0_15, %c0_16] : memref<1x3x2048xf32, #tpu.memory_space<vmem>>, vector<1x3x2048xf32>
      %17 = vector.shape_cast %16 : vector<1x3x2048xf32> to vector<3x2048xf32>
      %18 = vector.shape_cast %15 : vector<3x2048xf32> to vector<1x3x2048xf32>
      tpu.vector_store %arg5[%c0_14, %c0_15, %c0_16], %18 {strides = array<i32>} : memref<1x3x2048xf32, #tpu.memory_space<vmem>>, vector<1x3x2048xf32>,
    } else {
    }
    return
  }
  func.func @transform_0(%arg0: i32, %arg1: i32, %arg2: i32) -> (i32, i32, i32) {
    %c0_i32 = arith.constant 0 : i32
    %c0_i32_0 = arith.constant 0 : i32
    return %arg0, %c0_i32, %arg2 : i32, i32, i32
  }
  func.func @transform_1(%arg0: i32, %arg1: i32, %arg2: i32) -> (i32, i32, i32) {
    %c0_i32 = arith.constant 0 : i32
    return %arg0, %arg2, %arg1 : i32, i32, i32
  }
  func.func @transform_2(%arg0: i32, %arg1: i32, %arg2: i32) -> (i32, i32, i32) {
    %c0_i32 = arith.constant 0 : i32
    %c0_i32_0 = arith.constant 0 : i32
    return %arg0, %c0_i32, %arg1 : i32, i32, i32
  }
}

</mosaic_0001>

<llo_original>
// kernel: generator_forward.10
$region0: #{generator_forward.10}
  #allocation0 [shape = 'u32[]', space=smem, size = 0x4, offset = 0x4, fixed_abs, tag = 'smem constant byte address 0x4 - core index']
  #allocation1 [shape = 'u32[144,128]{1,0:T(1,128)}', space=vmem, size = 0x12000, scoped, tag = 'internal scratch']
  %s0 = inlined_call_operand.vmem [shape: f32[8,1024], index: 0, kind: input, shape index: {}]
  %s1 = inlined_call_operand.vmem [shape: f32[1,1024], index: 1, kind: input, shape index: {}]
  %s2 = inlined_call_operand.vmem [shape: f32[1,1024], index: 2, kind: input, shape index: {}]
  %s3 = inlined_call_operand.vmem [shape: bf16[8,1024], index: 3, kind: output, shape index: {}]
  %s4 = sld [smem:[#allocation0]]
  $region22: #{generator_forward.10} parent=0
    _
  %s6 = ssub.s32 1, %s4
  %s7 = scalar_select 0, %s6, %s4
  // Predicated region
  $region2: #{generator_forward.10} parent=0 // pred_check
    _
  $region3: #{generator_forward.10} parent=0 // pred_check_branch
    %9 = sbr.rel (0) target = $region5
  $region4: #{generator_forward.10} parent=0 // pred_region
    _
  $region5: #{generator_forward.10} parent=0 // pred_fallthru
    _
  // Predicated region
  $region6: #{generator_forward.10} parent=0 // pred_check
    _
  $region7: #{generator_forward.10} parent=0 // pred_check_branch
    %11 = sbr.rel (0) target = $region9
  $region8: #{generator_forward.10} parent=0 // pred_region
    _
  $region9: #{generator_forward.10} parent=0 // pred_fallthru
    _
  // Predicated region
  $region10: #{generator_forward.10} parent=0 // pred_check
    _
  $region11: #{generator_forward.10} parent=0 // pred_check_branch
    %13 = sbr.rel (0) target = $region13
  $region12: #{generator_forward.10} parent=0 // pred_region
    _
  $region13: #{generator_forward.10} parent=0 // pred_fallthru
    _
  %v14 = vld [vmem:[%s0] sm:$0xff]
  %v15 = vld [vmem:[%s0 + $0x8] sm:$0xff]
  %v16 = vld [vmem:[%s0 + $0x10] sm:$0xff]
  %v17 = vld [vmem:[%s0 + $0x18] sm:$0xff]
  %v18 = vld [vmem:[%s0 + $0x20] sm:$0xff]
  %v19 = vld [vmem:[%s0 + $0x28] sm:$0xff]
  %v20 = vld [vmem:[%s0 + $0x30] sm:$0xff]
  %v21 = vld [vmem:[%s0 + $0x38] sm:$0xff]
  %v22 = vld [vmem:[%s1] sm:$0xff]
  %v24 = vlaneseq
  %v25 = vshrl.u32 %v24, 7
  %v26 = vsub.s32 0, %v25
  %v27 = vrot.slane %v22, %v26
  %v28 = vlaneseq
  %v29 = vshrl.u32 %v28, 7
  %v30 = vsub.s32 1, %v29
  %v31 = vrot.slane %v22, %v30
  %v32 = vlaneseq
  %v33 = vshrl.u32 %v32, 7
  %v34 = vsub.s32 2, %v33
  %v35 = vrot.slane %v22, %v34
  %v36 = vlaneseq
  %v37 = vshrl.u32 %v36, 7
  %v38 = vsub.s32 3, %v37
  %v39 = vrot.slane %v22, %v38
  %v40 = vlaneseq
  %v41 = vshrl.u32 %v40, 7
  %v42 = vsub.s32 4, %v41
  %v43 = vrot.slane %v22, %v42
  %v44 = vlaneseq
  %v45 = vshrl.u32 %v44, 7
  %v46 = vsub.s32 5, %v45
  %v47 = vrot.slane %v22, %v46
  %v48 = vlaneseq
  %v49 = vshrl.u32 %v48, 7
  %v50 = vsub.s32 6, %v49
  %v51 = vrot.slane %v22, %v50
  %v52 = vlaneseq
  %v53 = vshrl.u32 %v52, 7
  %v54 = vsub.s32 7, %v53
  %v55 = vrot.slane %v22, %v54
  %v64 = vmul.f32 %v14, %v27
  %v65 = vmul.f32 %v15, %v31
  %v66 = vmul.f32 %v16, %v35
  %v67 = vmul.f32 %v17, %v39
  %v68 = vmul.f32 %v18, %v43
  %v69 = vmul.f32 %v19, %v47
  %v70 = vmul.f32 %v20, %v51
  %v71 = vmul.f32 %v21, %v55
  %v72 = vld [vmem:[%s2] sm:$0xff]
  %v74 = vlaneseq
  %v75 = vshrl.u32 %v74, 7
  %v76 = vsub.s32 0, %v75
  %v77 = vrot.slane %v72, %v76
  %v78 = vlaneseq
  %v79 = vshrl.u32 %v78, 7
  %v80 = vsub.s32 1, %v79
  %v81 = vrot.slane %v72, %v80
  %v82 = vlaneseq
  %v83 = vshrl.u32 %v82, 7
  %v84 = vsub.s32 2, %v83
  %v85 = vrot.slane %v72, %v84
  %v86 = vlaneseq
  %v87 = vshrl.u32 %v86, 7
  %v88 = vsub.s32 3, %v87
  %v89 = vrot.slane %v72, %v88
  %v90 = vlaneseq
  %v91 = vshrl.u32 %v90, 7
  %v92 = vsub.s32 4, %v91
  %v93 = vrot.slane %v72, %v92
  %v94 = vlaneseq
  %v95 = vshrl.u32 %v94, 7
  %v96 = vsub.s32 5, %v95
  %v97 = vrot.slane %v72, %v96
  %v98 = vlaneseq
  %v99 = vshrl.u32 %v98, 7
  %v100 = vsub.s32 6, %v99
  %v101 = vrot.slane %v72, %v100
  %v102 = vlaneseq
  %v103 = vshrl.u32 %v102, 7
  %v104 = vsub.s32 7, %v103
  %v105 = vrot.slane %v72, %v104
  %v114 = vadd.f32 %v64, %v77
  %v115 = vadd.f32 %v65, %v81
  %v116 = vadd.f32 %v66, %v85
  %v117 = vadd.f32 %v67, %v89
  %v118 = vadd.f32 %v68, %v93
  %v119 = vadd.f32 %v69, %v97
  %v120 = vadd.f32 %v70, %v101
  %v121 = vadd.f32 %v71, %v105
  %v122 = vmax.f32 %v114, 0.0
  %v123 = vmax.f32 %v115, 0.0
  %v124 = vmax.f32 %v116, 0.0
  %v125 = vmax.f32 %v117, 0.0
  %v126 = vmax.f32 %v118, 0.0
  %v127 = vmax.f32 %v119, 0.0
  %v128 = vmax.f32 %v120, 0.0
  %v129 = vmax.f32 %v121, 0.0
  %v130 = vpack.c.bf16 %v122, %v122
  %v131 = vpack.c.bf16 %v123, %v123
  %v132 = vpack.c.bf16 %v124, %v124
  %v133 = vpack.c.bf16 %v125, %v125
  %v134 = vpack.c.bf16 %v126, %v126
  %v135 = vpack.c.bf16 %v127, %v127
  %v136 = vpack.c.bf16 %v128, %v128
  %v137 = vpack.c.bf16 %v129, %v129
  %v146 = vunpack.c.l.b16 %v130
  %v147 = vunpack.c.l.b16 %v131
  %v148 = vunpack.c.l.b16 %v132
  %v149 = vunpack.c.l.b16 %v133
  %v150 = vunpack.c.l.b16 %v134
  %v151 = vunpack.c.l.b16 %v135
  %v152 = vunpack.c.l.b16 %v136
  %v153 = vunpack.c.l.b16 %v137
  %v154 = vpack.c.b16 %v147, %v146
  %v155 = vpack.c.b16 %v149, %v148
  %v156 = vpack.c.b16 %v151, %v150
  %v157 = vpack.c.b16 %v153, %v152
  %162 = vst [vmem:[%s3] sm:$0xff] %v154
  %163 = vst [vmem:[%s3 + $0x8] sm:$0xff] %v155
  %164 = vst [vmem:[%s3 + $0x10] sm:$0xff] %v156
  %165 = vst [vmem:[%s3 + $0x18] sm:$0xff] %v157
  // Predicated region
  $region14: #{generator_forward.10} parent=0 // pred_check
    _
  $region15: #{generator_forward.10} parent=0 // pred_check_branch
    %167 = sbr.rel (0) target = $region17
  $region16: #{generator_forward.10} parent=0 // pred_region
    _
  $region17: #{generator_forward.10} parent=0 // pred_fallthru
    _
  // Predicated region
  $region18: #{generator_forward.10} parent=0 // pred_check
    _
  $region19: #{generator_forward.10} parent=0 // pred_check_branch
    %169 = sbr.rel (0) target = $region21
  $region20: #{generator_forward.10} parent=0 // pred_region
    _
  $region21: #{generator_forward.10} parent=0 // pred_fallthru
    _

// kernel: generator_forward.9
$region0: #{generator_forward.9}
  #allocation0 [shape = 'u32[]', space=smem, size = 0x4, offset = 0x4, fixed_abs, tag = 'smem constant byte address 0x4 - core index']
  #allocation1 [shape = 'u32[144,128]{1,0:T(1,128)}', space=vmem, size = 0x12000, scoped, tag = 'internal scratch']
  %s0 = inlined_call_operand.vmem [shape: bf16[8,16], index: 0, kind: input, shape index: {}]
  %s1 = inlined_call_operand.vmem [shape: bf16[16,1024], index: 1, kind: input, shape index: {}]
  %s2 = inlined_call_operand.vmem [shape: f32[8,1024], index: 2, kind: output, shape index: {}]
  %s3 = sld [smem:[#allocation0]]
  $region18: #{generator_forward.9} parent=0
    _
  %s5 = ssub.s32 1, %s3
  %s6 = scalar_select 0, %s5, %s3
  // Predicated region
  $region2: #{generator_forward.9} parent=0 // pred_check
    _
  $region3: #{generator_forward.9} parent=0 // pred_check_branch
    %8 = sbr.rel (0) target = $region5
  $region4: #{generator_forward.9} parent=0 // pred_region
    _
  $region5: #{generator_forward.9} parent=0 // pred_fallthru
    _
  // Predicated region
  $region6: #{generator_forward.9} parent=0 // pred_check
    _
  $region7: #{generator_forward.9} parent=0 // pred_check_branch
    %10 = sbr.rel (0) target = $region9
  $region8: #{generator_forward.9} parent=0 // pred_region
    _
  $region9: #{generator_forward.9} parent=0 // pred_fallthru
    _
  %v12 = vld [vmem:[%s0] sm:$0xf]
  %v13 = vld [vmem:[%s1] sm:$0xff]
  %v14 = vld [vmem:[%s1 + $0x8] sm:$0xff]
  %v15 = vld [vmem:[%s1 + $0x10] sm:$0xff]
  %v16 = vld [vmem:[%s1 + $0x18] sm:$0xff]
  %v17 = vld [vmem:[%s1 + $0x20] sm:$0xff]
  %v18 = vld [vmem:[%s1 + $0x28] sm:$0xff]
  %v19 = vld [vmem:[%s1 + $0x30] sm:$0xff]
  %v20 = vld [vmem:[%s1 + $0x38] sm:$0xff]
  %v29 = vunpack.c.l.b16 %v13
  %v30 = vunpack.c.h.b16 %v13
  %v31 = vunpack.c.l.b16 %v14
  %v32 = vunpack.c.h.b16 %v14
  %v33 = vunpack.c.l.b16 %v15
  %v34 = vunpack.c.h.b16 %v15
  %v35 = vunpack.c.l.b16 %v16
  %v36 = vunpack.c.h.b16 %v16
  %v37 = vunpack.c.l.b16 %v17
  %v38 = vunpack.c.h.b16 %v17
  %v39 = vunpack.c.l.b16 %v18
  %v40 = vunpack.c.h.b16 %v18
  %v41 = vunpack.c.l.b16 %v19
  %v42 = vunpack.c.h.b16 %v19
  %v43 = vunpack.c.l.b16 %v20
  %v44 = vunpack.c.h.b16 %v20
  %v45 = vpack.c.b16 %v37, %v29
  %v46 = vpack.c.b16 %v38, %v30
  %v47 = vpack.c.b16 %v39, %v31
  %v48 = vpack.c.b16 %v40, %v32
  %v49 = vpack.c.b16 %v41, %v33
  %v50 = vpack.c.b16 %v42, %v34
  %v51 = vpack.c.b16 %v43, %v35
  %v52 = vpack.c.b16 %v44, %v36
  %vm61 = vcmask 130048
  %v63 = vsel %vm61, %v12, 0
  %65 = vmatprep.subr.bf16.mxu0 %v46
  %66 = vmatpush1.bf16.msra.mxu0 %v45
  %67 = vmatprep.subr.bf16.mxu0 0
  %68 = vmatpush1.bf16.msra.mxu0 0
  %69 = vmatprep.subr.bf16.mxu0 0
  %70 = vmatpush1.bf16.msra.mxu0 0
  %71 = vmatprep.subr.bf16.mxu0 0
  %72 = vmatpush1.bf16.msra.mxu0 0
  %73 = vmatprep.subr.bf16.mxu0 0
  %74 = vmatpush1.bf16.msra.mxu0 0
  %75 = vmatprep.subr.bf16.mxu0 0
  %76 = vmatpush1.bf16.msra.mxu0 0
  %77 = vmatprep.subr.bf16.mxu0 0
  %78 = vmatpush1.bf16.msra.mxu0 0
  %79 = vmatprep.subr.bf16.mxu0 0
  %80 = vmatpush1.bf16.msra.mxu0 0
  %81 = vmatprep.subr.bf16.mxu0 0
  %82 = vmatpush1.bf16.msra.mxu0 0
  %83 = vmatprep.subr.bf16.mxu0 0
  %84 = vmatpush1.bf16.msra.mxu0 0
  %85 = vmatprep.subr.bf16.mxu0 0
  %86 = vmatpush1.bf16.msra.mxu0 0
  %87 = vmatprep.subr.bf16.mxu0 0
  %88 = vmatpush1.bf16.msra.mxu0 0
  %89 = vmatprep.subr.bf16.mxu0 0
  %90 = vmatpush1.bf16.msra.mxu0 0
  %91 = vmatprep.subr.bf16.mxu0 0
  %92 = vmatpush1.bf16.msra.mxu0 0
  %93 = vmatprep.subr.bf16.mxu0 0
  %94 = vmatpush1.bf16.msra.mxu0 0
  %95 = vmatprep.subr.bf16.mxu0 0
  %96 = vmatpush1.bf16.msra.mxu0 0
  %97 = vmatprep.mubr.bf16.mxu0 0
  %98 = vmatmul.mubr.bf16.gmra.mrb[0].mxu0 %v63
  %v99 = vpop.f32.mrb[0].mxu0
  %v100 = vadd.f32 0.0, %v99
  %v101 = vpop.f32.mrb[0].mxu0
  %v102 = vadd.f32 0.0, %v101
  %v103 = vpop.f32.mrb[0].mxu0
  %v104 = vpop.f32.mrb[0].mxu0
  %105 = vdwg.mxu0
  %106 = vmatprep.subr.bf16.mxu0 %v48
  %107 = vmatpush1.bf16.msra.mxu0 %v47
  %108 = vmatprep.subr.bf16.mxu0 0
  %109 = vmatpush1.bf16.msra.mxu0 0
  %110 = vmatprep.subr.bf16.mxu0 0
  %111 = vmatpush1.bf16.msra.mxu0 0
  %112 = vmatprep.subr.bf16.mxu0 0
  %113 = vmatpush1.bf16.msra.mxu0 0
  %114 = vmatprep.subr.bf16.mxu0 0
  %115 = vmatpush1.bf16.msra.mxu0 0
  %116 = vmatprep.subr.bf16.mxu0 0
  %117 = vmatpush1.bf16.msra.mxu0 0
  %118 = vmatprep.subr.bf16.mxu0 0
  %119 = vmatpush1.bf16.msra.mxu0 0
  %120 = vmatprep.subr.bf16.mxu0 0
  %121 = vmatpush1.bf16.msra.mxu0 0
  %122 = vmatprep.subr.bf16.mxu0 0
  %123 = vmatpush1.bf16.msra.mxu0 0
  %124 = vmatprep.subr.bf16.mxu0 0
  %125 = vmatpush1.bf16.msra.mxu0 0
  %126 = vmatprep.subr.bf16.mxu0 0
  %127 = vmatpush1.bf16.msra.mxu0 0
  %128 = vmatprep.subr.bf16.mxu0 0
  %129 = vmatpush1.bf16.msra.mxu0 0
  %130 = vmatprep.subr.bf16.mxu0 0
  %131 = vmatpush1.bf16.msra.mxu0 0
  %132 = vmatprep.subr.bf16.mxu0 0
  %133 = vmatpush1.bf16.msra.mxu0 0
  %134 = vmatprep.subr.bf16.mxu0 0
  %135 = vmatpush1.bf16.msra.mxu0 0
  %136 = vmatprep.subr.bf16.mxu0 0
  %137 = vmatpush1.bf16.msra.mxu0 0
  %138 = vmatprep.mubr.bf16.mxu0 0
  %139 = vmatmul.mubr.bf16.gmra.mrb[0].mxu0 %v63
  %v140 = vpop.f32.mrb[0].mxu0
  %v141 = vadd.f32 0.0, %v140
  %v142 = vpop.f32.mrb[0].mxu0
  %v143 = vadd.f32 0.0, %v142
  %v144 = vpop.f32.mrb[0].mxu0
  %v145 = vpop.f32.mrb[0].mxu0
  %146 = vdwg.mxu0
  %147 = vmatprep.subr.bf16.mxu0 %v50
  %148 = vmatpush1.bf16.msra.mxu0 %v49
  %149 = vmatprep.subr.bf16.mxu0 0
  %150 = vmatpush1.bf16.msra.mxu0 0
  %151 = vmatprep.subr.bf16.mxu0 0
  %152 = vmatpush1.bf16.msra.mxu0 0
  %153 = vmatprep.subr.bf16.mxu0 0
  %154 = vmatpush1.bf16.msra.mxu0 0
  %155 = vmatprep.subr.bf16.mxu0 0
  %156 = vmatpush1.bf16.msra.mxu0 0
  %157 = vmatprep.subr.bf16.mxu0 0
  %158 = vmatpush1.bf16.msra.mxu0 0
  %159 = vmatprep.subr.bf16.mxu0 0
  %160 = vmatpush1.bf16.msra.mxu0 0
  %161 = vmatprep.subr.bf16.mxu0 0
  %162 = vmatpush1.bf16.msra.mxu0 0
  %163 = vmatprep.subr.bf16.mxu0 0
  %164 = vmatpush1.bf16.msra.mxu0 0
  %165 = vmatprep.subr.bf16.mxu0 0
  %166 = vmatpush1.bf16.msra.mxu0 0
  %167 = vmatprep.subr.bf16.mxu0 0
  %168 = vmatpush1.bf16.msra.mxu0 0
  %169 = vmatprep.subr.bf16.mxu0 0
  %170 = vmatpush1.bf16.msra.mxu0 0
  %171 = vmatprep.subr.bf16.mxu0 0
  %172 = vmatpush1.bf16.msra.mxu0 0
  %173 = vmatprep.subr.bf16.mxu0 0
  %174 = vmatpush1.bf16.msra.mxu0 0
  %175 = vmatprep.subr.bf16.mxu0 0
  %176 = vmatpush1.bf16.msra.mxu0 0
  %177 = vmatprep.subr.bf16.mxu0 0
  %178 = vmatpush1.bf16.msra.mxu0 0
  %179 = vmatprep.mubr.bf16.mxu0 0
  %180 = vmatmul.mubr.bf16.gmra.mrb[0].mxu0 %v63
  %v181 = vpop.f32.mrb[0].mxu0
  %v182 = vadd.f32 0.0, %v181
  %v183 = vpop.f32.mrb[0].mxu0
  %v184 = vadd.f32 0.0, %v183
  %v185 = vpop.f32.mrb[0].mxu0
  %v186 = vpop.f32.mrb[0].mxu0
  %187 = vdwg.mxu0
  %188 = vmatprep.subr.bf16.mxu0 %v52
  %189 = vmatpush1.bf16.msra.mxu0 %v51
  %190 = vmatprep.subr.bf16.mxu0 0
  %191 = vmatpush1.bf16.msra.mxu0 0
  %192 = vmatprep.subr.bf16.mxu0 0
  %193 = vmatpush1.bf16.msra.mxu0 0
  %194 = vmatprep.subr.bf16.mxu0 0
  %195 = vmatpush1.bf16.msra.mxu0 0
  %196 = vmatprep.subr.bf16.mxu0 0
  %197 = vmatpush1.bf16.msra.mxu0 0
  %198 = vmatprep.subr.bf16.mxu0 0
  %199 = vmatpush1.bf16.msra.mxu0 0
  %200 = vmatprep.subr.bf16.mxu0 0
  %201 = vmatpush1.bf16.msra.mxu0 0
  %202 = vmatprep.subr.bf16.mxu0 0
  %203 = vmatpush1.bf16.msra.mxu0 0
  %204 = vmatprep.subr.bf16.mxu0 0
  %205 = vmatpush1.bf16.msra.mxu0 0
  %206 = vmatprep.subr.bf16.mxu0 0
  %207 = vmatpush1.bf16.msra.mxu0 0
  %208 = vmatprep.subr.bf16.mxu0 0
  %209 = vmatpush1.bf16.msra.mxu0 0
  %210 = vmatprep.subr.bf16.mxu0 0
  %211 = vmatpush1.bf16.msra.mxu0 0
  %212 = vmatprep.subr.bf16.mxu0 0
  %213 = vmatpush1.bf16.msra.mxu0 0
  %214 = vmatprep.subr.bf16.mxu0 0
  %215 = vmatpush1.bf16.msra.mxu0 0
  %216 = vmatprep.subr.bf16.mxu0 0
  %217 = vmatpush1.bf16.msra.mxu0 0
  %218 = vmatprep.subr.bf16.mxu0 0
  %219 = vmatpush1.bf16.msra.mxu0 0
  %220 = vmatprep.mubr.bf16.mxu0 0
  %221 = vmatmul.mubr.bf16.gmra.mrb[0].mxu0 %v63
  %v222 = vpop.f32.mrb[0].mxu0
  %v223 = vadd.f32 0.0, %v222
  %v224 = vpop.f32.mrb[0].mxu0
  %v225 = vadd.f32 0.0, %v224
  %v226 = vpop.f32.mrb[0].mxu0
  %v227 = vpop.f32.mrb[0].mxu0
  %228 = vdwg.mxu0
  %229 = vst [vmem:[%s2] sm:$0xff] %v100
  %230 = vst [vmem:[%s2 + $0x8] sm:$0xff] %v102
  %231 = vst [vmem:[%s2 + $0x10] sm:$0xff] %v141
  %232 = vst [vmem:[%s2 + $0x18] sm:$0xff] %v143
  %233 = vst [vmem:[%s2 + $0x20] sm:$0xff] %v182
  %234 = vst [vmem:[%s2 + $0x28] sm:$0xff] %v184
  %235 = vst [vmem:[%s2 + $0x30] sm:$0xff] %v223
  %236 = vst [vmem:[%s2 + $0x38] sm:$0xff] %v225
  // Predicated region
  $region10: #{generator_forward.9} parent=0 // pred_check
    _
  $region11: #{generator_forward.9} parent=0 // pred_check_branch
    %238 = sbr.rel (0) target = $region13
  $region12: #{generator_forward.9} parent=0 // pred_region
    _
  $region13: #{generator_forward.9} parent=0 // pred_fallthru
    _
  // Predicated region
  $region14: #{generator_forward.9} parent=0 // pred_check
    _
  $region15: #{generator_forward.9} parent=0 // pred_check_branch
    %240 = sbr.rel (0) target = $region17
  $region16: #{generator_forward.9} parent=0 // pred_region
    _
  $region17: #{generator_forward.9} parent=0 // pred_fallthru
    _

// kernel: generator_forward.11
$region0: #{generator_forward.11}
  #allocation0 [shape = 'u32[]', space=smem, size = 0x4, offset = 0x4, fixed_abs, tag = 'smem constant byte address 0x4 - core index']
  #allocation1 [shape = 'u32[144,128]{1,0:T(1,128)}', space=vmem, size = 0x12000, scoped, tag = 'internal scratch']
  #allocation2 [shape = 'f32[32,32]{1,0:T(8,128)}', space=vmem, size = 0x4000, scoped, tag = 'scratch operand']
  %s0 = inlined_call_operand.vmem [shape: bf16[4,32,256], index: 0, kind: input, shape index: {}]
  %s1 = inlined_call_operand.vmem [shape: bf16[4,256,32], index: 1, kind: input, shape index: {}]
  %s2 = inlined_call_operand.vmem [shape: bf16[4,32,32], index: 2, kind: output, shape index: {0}]
  %s3 = inlined_call_operand.vmem [shape: f32[4,32,1], index: 3, kind: output, shape index: {1}]
  %s4 = inlined_call_operand.vmem [shape: f32[4,32,1], index: 4, kind: output, shape index: {2}]
  %5 = xla_tuple %s2, %s3, %s4
  %s6 = sld [smem:[#allocation0]]
  $region65: #{generator_forward.11} parent=0
    _
  %s8 = ssub.s32 1, %s6
  %s9 = scalar_select 0, %s8, %s6
  loop: start=0, step=1, limit=6
  $region2: #{generator_forward.11} parent=0 // loop_pre_header
    _
  $region3: #{generator_forward.11} parent=0 // loop_header
    %s11 = sphi 0, %s15
    %p12 = scmp.ge.s32.totalorder %s11, 6
    %s18 = sphi 0, %s37
    %s19 = sphi 0, %s33
    %s20 = sphi 0, %s29
    %s21 = sphi 0, %s18
    %s22 = sphi 0, %s19
    %s23 = sphi 0, %s20
    %s24 = sphi 0, %s21
    %s25 = sphi 0, %s22
    %s26 = sphi 0, %s23
    %s42 = sphi 0, %s44
    %s45 = sphi 0, %s42
    %s46 = sphi 0, %s45
    %s62 = sphi 0, %s46
    %s72 = sphi 0, %s74
    %s75 = sphi 0, %s72
    %s76 = sphi 0, %s75
    %s92 = sphi 0, %s76
    %s100 = sphi 0, %s102
    %s103 = sphi 0, %s100
    %s104 = sphi 0, %s103
    %s120 = sphi 0, %s104
    %s128 = sphi 0, %s130
    %s131 = sphi 0, %s128
    %s132 = sphi 0, %s131
    %s148 = sphi 0, %s132
    %s156 = sphi 0, %s158
    %s159 = sphi 0, %s156
    %s160 = sphi 0, %s159
    %s176 = sphi 0, %s160
  $region4: #{generator_forward.11} parent=0 // loop_header_branch
    %14 = sbr.rel (%p12) target = $region8
  $region5: #{generator_forward.11} parent=0 // loop_body
    %s16 = ssub.s32 %s11, 1
    %s17 = ssub.s32 %s11, 2
    %s27 = sadd.s32 1, %s20
    %p28 = scmp.ge.s32.totalorder %s27, 1
    %s29 = scalar_select %p28, 0, %s27
    %s30 = sadd.s32 1, %s19
    %s31 = scalar_select %p28, %s30, %s19
    %p32 = scmp.ge.s32.totalorder %s31, 1
    %s33 = scalar_select %p32, 0, %s31
    %s34 = sadd.s32 1, %s18
    %s35 = scalar_select %p32, %s34, %s18
    %p36 = scmp.ge.s32.totalorder %s35, 4
    %s37 = scalar_select %p36, 0, %s35
    %s38 = ssub.s32 %s18, %s37
    %s39 = ssub.s32 %s20, %s29
    %s40 = sor.u32 %s38, %s39
    %p41 = scmp.eq.s32.totalorder %s40, 0
    %s43 = sadd.s32 %s42, 1
    %s44 = scalar_select %p41, %s42, %s43
    %p47 = pneg %p41
    %p48 = scmp.eq.s32.totalorder %s11, 3
    %p49 = por %p47, %p48
    %p50 = scmp.ne.s32.totalorder %s42, %s45
    %p51 = scmp.eq.s32.totalorder %s11, 0
    %p52 = por %p50, %p51
    %p53 = scmp.ne.s32.totalorder %s42, %s45
    %p54 = scmp.eq.s32.totalorder %s16, 3
    %p55 = por %p53, %p54
    %p56 = scmp.ne.s32.totalorder %s45, %s46
    %p57 = scmp.eq.s32.totalorder %s16, 0
    %p58 = por %p56, %p57
    %p59 = scmp.ne.s32.totalorder %s45, %s46
    %p60 = scmp.eq.s32.totalorder %s17, 3
    %p61 = por %p59, %p60
    %p63 = scmp.ne.s32.totalorder %s46, %s62
    %p64 = scmp.eq.s32.totalorder %s17, 0
    %p65 = por %p63, %p64
    %s66 = ssub.s32 %s18, %s37
    %s67 = ssub.s32 %s20, %s29
    %s68 = sor.u32 %s66, %s67
    %s69 = ssub.s32 %s19, %s33
    %s70 = sor.u32 %s68, %s69
    %p71 = scmp.eq.s32.totalorder %s70, 0
    %s73 = sadd.s32 %s72, 1
    %s74 = scalar_select %p71, %s72, %s73
    %p77 = pneg %p71
    %p78 = scmp.eq.s32.totalorder %s11, 3
    %p79 = por %p77, %p78
    %p80 = scmp.ne.s32.totalorder %s72, %s75
    %p81 = scmp.eq.s32.totalorder %s11, 0
    %p82 = por %p80, %p81
    %p83 = scmp.ne.s32.totalorder %s72, %s75
    %p84 = scmp.eq.s32.totalorder %s16, 3
    %p85 = por %p83, %p84
    %p86 = scmp.ne.s32.totalorder %s75, %s76
    %p87 = scmp.eq.s32.totalorder %s16, 0
    %p88 = por %p86, %p87
    %p89 = scmp.ne.s32.totalorder %s75, %s76
    %p90 = scmp.eq.s32.totalorder %s17, 3
    %p91 = por %p89, %p90
    %p93 = scmp.ne.s32.totalorder %s76, %s92
    %p94 = scmp.eq.s32.totalorder %s17, 0
    %p95 = por %p93, %p94
    %s96 = ssub.s32 %s18, %s37
    %s97 = ssub.s32 %s19, %s33
    %s98 = sor.u32 %s96, %s97
    %p99 = scmp.eq.s32.totalorder %s98, 0
    %s101 = sadd.s32 %s100, 1
    %s102 = scalar_select %p99, %s100, %s101
    %p105 = pneg %p99
    %p106 = scmp.eq.s32.totalorder %s11, 3
    %p107 = por %p105, %p106
    %p108 = scmp.ne.s32.totalorder %s100, %s103
    %p109 = scmp.eq.s32.totalorder %s11, 0
    %p110 = por %p108, %p109
    %p111 = scmp.ne.s32.totalorder %s100, %s103
    %p112 = scmp.eq.s32.totalorder %s16, 3
    %p113 = por %p111, %p112
    %p114 = scmp.ne.s32.totalorder %s103, %s104
    %p115 = scmp.eq.s32.totalorder %s16, 0
    %p116 = por %p114, %p115
    %p117 = scmp.ne.s32.totalorder %s103, %s104
    %p118 = scmp.eq.s32.totalorder %s17, 3
    %p119 = por %p117, %p118
    %p121 = scmp.ne.s32.totalorder %s104, %s120
    %p122 = scmp.eq.s32.totalorder %s17, 0
    %p123 = por %p121, %p122
    %s124 = sadd.s32 %s18, %s19
    %s125 = sadd.s32 %s37, %s33
    %s126 = ssub.s32 %s124, %s125
    %p127 = scmp.eq.s32.totalorder %s126, 0
    %s129 = sadd.s32 %s128, 1
    %s130 = scalar_select %p127, %s128, %s129
    %p133 = pneg %p127
    %p134 = scmp.eq.s32.totalorder %s11, 3
    %p135 = por %p133, %p134
    %p136 = scmp.ne.s32.totalorder %s128, %s131
    %p137 = scmp.eq.s32.totalorder %s11, 0
    %p138 = por %p136, %p137
    %p139 = scmp.ne.s32.totalorder %s128, %s131
    %p140 = scmp.eq.s32.totalorder %s16, 3
    %p141 = por %p139, %p140
    %p142 = scmp.ne.s32.totalorder %s131, %s132
    %p143 = scmp.eq.s32.totalorder %s16, 0
    %p144 = por %p142, %p143
    %p145 = scmp.ne.s32.totalorder %s131, %s132
    %p146 = scmp.eq.s32.totalorder %s17, 3
    %p147 = por %p145, %p146
    %p149 = scmp.ne.s32.totalorder %s132, %s148
    %p150 = scmp.eq.s32.totalorder %s17, 0
    %p151 = por %p149, %p150
    %s152 = sadd.s32 %s18, %s19
    %s153 = sadd.s32 %s37, %s33
    %s154 = ssub.s32 %s152, %s153
    %p155 = scmp.eq.s32.totalorder %s154, 0
    %s157 = sadd.s32 %s156, 1
    %s158 = scalar_select %p155, %s156, %s157
    %p161 = pneg %p155
    %p162 = scmp.eq.s32.totalorder %s11, 3
    %p163 = por %p161, %p162
    %p164 = scmp.ne.s32.totalorder %s156, %s159
    %p165 = scmp.eq.s32.totalorder %s11, 0
    %p166 = por %p164, %p165
    %p167 = scmp.ne.s32.totalorder %s156, %s159
    %p168 = scmp.eq.s32.totalorder %s16, 3
    %p169 = por %p167, %p168
    %p170 = scmp.ne.s32.totalorder %s159, %s160
    %p171 = scmp.eq.s32.totalorder %s16, 0
    %p172 = por %p170, %p171
    %p173 = scmp.ne.s32.totalorder %s159, %s160
    %p174 = scmp.eq.s32.totalorder %s17, 3
    %p175 = por %p173, %p174
    %p177 = scmp.ne.s32.totalorder %s160, %s176
    %p178 = scmp.eq.s32.totalorder %s17, 0
    %p179 = por %p177, %p178
    %p180 = scmp.le.s32.totalorder 1, %s11
    %p181 = scmp.lt.s32.totalorder %s11, 5
    %p182 = pnand %p180, %p181
    %p183 = pneg %p182
    // Predicated region
    $region9: #{generator_forward.11} parent=5 // pred_check
      _
    $region10: #{generator_forward.11} parent=5 // pred_check_branch
      %185 = sbr.rel (%p182) target = $region12
    $region11: #{generator_forward.11} parent=5 // pred_region
      %s186 = ssub.s32 %s11, 1
    $region12: #{generator_forward.11} parent=5 // pred_fallthru
      _
    %p187 = scmp.lt.s32.totalorder %s11, 4
    // Predicated region
    $region13: #{generator_forward.11} parent=5 // pred_check
      %p188 = pneg %p187
    $region14: #{generator_forward.11} parent=5 // pred_check_branch
      %190 = sbr.rel (%p188) target = $region16
    $region15: #{generator_forward.11} parent=5 // pred_region
      // Predicated region
      $region17: #{generator_forward.11} parent=15 // pred_check
        %p191 = pneg %p52
      $region18: #{generator_forward.11} parent=15 // pred_check_branch
        %193 = sbr.rel (%p191) target = $region20
      $region19: #{generator_forward.11} parent=15 // pred_region
        %s194 = smul.u32 2, %s20
        %p195 = scmp.lt.s32.totalorder %s18, 3
        %s196 = scalar_select %p195, %s18, 3
        %p197 = scmp.lt.s32.totalorder %s194, 1
        %s198 = scalar_select %p197, %s194, 1
        %s199 = smul.addr %s196, 8
        %s200 = sadd.s32 %s198, %s199
        %s201 = smul.addr %s200, 4
        %s202 = scalar_lea.vmem %s0, %s201
        %s203 = smul.u32 2, %s20
      $region20: #{generator_forward.11} parent=15 // pred_fallthru
        _
      // Predicated region
      $region21: #{generator_forward.11} parent=15 // pred_check
        %p204 = pneg %p82
      $region22: #{generator_forward.11} parent=15 // pred_check_branch
        %206 = sbr.rel (%p204) target = $region24
      $region23: #{generator_forward.11} parent=15 // pred_region
        %s207 = smul.u32 32, %s20
        %p208 = scmp.lt.s32.totalorder %s18, 3
        %s209 = scalar_select %p208, %s18, 3
        %p210 = scmp.lt.s32.totalorder %s207, 31
        %s211 = scalar_select %p210, %s207, 31
        %p212 = scmp.lt.s32.totalorder %s19, 0
        %s213 = scalar_select %p212, %s19, 0
        %s214 = sadd.s32 %s213, %s211
        %s215 = smul.addr %s209, 32
        %s216 = sadd.s32 %s214, %s215
        %s217 = smul.addr %s216, 4
        %s218 = scalar_lea.vmem %s1, %s217
        %s219 = smul.u32 32, %s20
      $region24: #{generator_forward.11} parent=15 // pred_fallthru
        _
    $region16: #{generator_forward.11} parent=5 // pred_fallthru
      _
    %p220 = scmp.le.s32.totalorder 1, %s11
    %p221 = scmp.lt.s32.totalorder %s11, 5
    %p222 = pnand %p220, %p221
    %p223 = pneg %p222
    // Predicated region
    $region25: #{generator_forward.11} parent=5 // pred_check
      _
    $region26: #{generator_forward.11} parent=5 // pred_check_branch
      %225 = sbr.rel (%p222) target = $region28
    $region27: #{generator_forward.11} parent=5 // pred_region
      %s226 = ssub.s32 %s11, 1
      %s227 = smul.u32 2, %s23
      %p228 = scmp.lt.s32.totalorder %s21, 3
      %s229 = scalar_select %p228, %s21, 3
      %p230 = scmp.lt.s32.totalorder %s227, 1
      %s231 = scalar_select %p230, %s227, 1
      %s232 = smul.addr %s229, 8
      %s233 = sadd.s32 %s231, %s232
      %s234 = smul.addr %s233, 4
      %s235 = scalar_lea.vmem %s0, %s234
      %p236 = pneg %p58
      %p237 = pneg %p55
      %s238 = smul.u32 32, %s23
      %p239 = scmp.lt.s32.totalorder %s21, 3
      %s240 = scalar_select %p239, %s21, 3
      %p241 = scmp.lt.s32.totalorder %s238, 31
      %s242 = scalar_select %p241, %s238, 31
      %p243 = scmp.lt.s32.totalorder %s22, 0
      %s244 = scalar_select %p243, %s22, 0
      %s245 = sadd.s32 %s244, %s242
      %s246 = smul.addr %s240, 32
      %s247 = sadd.s32 %s245, %s246
      %s248 = smul.addr %s247, 4
      %s249 = scalar_lea.vmem %s1, %s248
      %p250 = pneg %p88
      %p251 = pneg %p85
      %p252 = pneg %p116
      %p253 = pneg %p113
      %p254 = scmp.lt.s32.totalorder %s21, 3
      %s255 = scalar_select %p254, %s21, 3
      %p256 = scmp.lt.s32.totalorder %s22, 0
      %s257 = scalar_select %p256, %s22, 0
      %s258 = smul.addr %s255, 4
      %s259 = sadd.s32 %s257, %s258
      %s260 = smul.addr %s259, 4
      %s261 = scalar_lea.vmem %s2, %s260
      %p262 = pneg %p144
      %p263 = pneg %p141
      %s264 = sadd.s32 %s21, %s22
      %p265 = scmp.lt.s32.totalorder %s264, 3
      %s266 = scalar_select %p265, %s264, 3
      %s267 = smul.addr %s266, 4
      %s268 = smul.addr %s267, 8
      %s269 = scalar_lea.vmem %s3, %s268
      %p270 = pneg %p172
      %p271 = pneg %p169
      %s272 = sadd.s32 %s21, %s22
      %p273 = scmp.lt.s32.totalorder %s272, 3
      %s274 = scalar_select %p273, %s272, 3
      %s275 = smul.addr %s274, 4
      %s276 = smul.addr %s275, 8
      %s277 = scalar_lea.vmem %s4, %s276
      %s278 = smul.u32 2, %s23
      %p279 = scmp.lt.s32.totalorder %s21, 3
      %s280 = scalar_select %p279, %s21, 3
      %p281 = scmp.lt.s32.totalorder %s278, 1
      %s282 = scalar_select %p281, %s278, 1
      %s283 = smul.addr %s280, 8
      %s284 = sadd.s32 %s282, %s283
      %s285 = smul.addr %s284, 4
      %s286 = scalar_lea.vmem %s0, %s285
      %s287 = smul.u32 2, %s23
      %s288 = smul.u32 32, %s23
      %p289 = scmp.lt.s32.totalorder %s21, 3
      %s290 = scalar_select %p289, %s21, 3
      %p291 = scmp.lt.s32.totalorder %s288, 31
      %s292 = scalar_select %p291, %s288, 31
      %p293 = scmp.lt.s32.totalorder %s22, 0
      %s294 = scalar_select %p293, %s22, 0
      %s295 = sadd.s32 %s294, %s292
      %s296 = smul.addr %s290, 32
      %s297 = sadd.s32 %s295, %s296
      %s298 = smul.addr %s297, 4
      %s299 = scalar_lea.vmem %s1, %s298
      %s300 = smul.u32 32, %s23
      %p301 = scmp.lt.s32.totalorder %s21, 3
      %s302 = scalar_select %p301, %s21, 3
      %p303 = scmp.lt.s32.totalorder %s22, 0
      %s304 = scalar_select %p303, %s22, 0
      %s305 = smul.addr %s302, 4
      %s306 = sadd.s32 %s304, %s305
      %s307 = smul.addr %s306, 4
      %s308 = scalar_lea.vmem %s2, %s307
      %s309 = sadd.s32 %s21, %s22
      %p310 = scmp.lt.s32.totalorder %s309, 3
      %s311 = scalar_select %p310, %s309, 3
      %s312 = smul.addr %s311, 4
      %s313 = smul.addr %s312, 8
      %s314 = scalar_lea.vmem %s3, %s313
      %s315 = sadd.s32 %s21, %s22
      %s316 = sadd.s32 %s21, %s22
      %p317 = scmp.lt.s32.totalorder %s316, 3
      %s318 = scalar_select %p317, %s316, 3
      %s319 = smul.addr %s318, 4
      %s320 = smul.addr %s319, 8
      %s321 = scalar_lea.vmem %s4, %s320
      %s322 = sadd.s32 %s21, %s22
      %p324 = scmp.eq.s32.totalorder %s23, 0
      // Predicated region
      $region29: #{generator_forward.11} parent=27 // pred_check
        %p325 = pneg %p324
      $region30: #{generator_forward.11} parent=27 // pred_check_branch
        %327 = sbr.rel (%p325) target = $region32
      $region31: #{generator_forward.11} parent=27 // pred_region
        %vm328 = vcmask 261120
        %329 = vst.msk [vmem:[#allocation2] sm:$0xff] %vm328, 0.0
        %330 = vst.msk [vmem:[#allocation2 + $0x8] sm:$0xff] %vm328, 0.0
        %331 = vst.msk [vmem:[#allocation2 + $0x10] sm:$0xff] %vm328, 0.0
        %332 = vst.msk [vmem:[#allocation2 + $0x18] sm:$0xff] %vm328, 0.0
      $region32: #{generator_forward.11} parent=27 // pred_fallthru
        _
      %v333 = vld [vmem:[#allocation2] sm:$0xff]
      %v334 = vld [vmem:[#allocation2 + $0x8] sm:$0xff]
      %v335 = vld [vmem:[#allocation2 + $0x10] sm:$0xff]
      %v336 = vld [vmem:[#allocation2 + $0x18] sm:$0xff]
      %v337 = vld [vmem:[%s286] sm:$0xff]
      %v338 = vld [vmem:[%s286 + $0x8] sm:$0xff]
      %v339 = vld [vmem:[%s286 + $0x10] sm:$0xff]
      %v340 = vld [vmem:[%s286 + $0x18] sm:$0xff]
      %v341 = vld [vmem:[%s299] sm:$0xf]
      %v342 = vld [vmem:[%s299 + $0x4] sm:$0xf]
      %v343 = vld [vmem:[%s299 + $0x8] sm:$0xf]
      %v344 = vld [vmem:[%s299 + $0xc] sm:$0xf]
      %v345 = vld [vmem:[%s299 + $0x10] sm:$0xf]
      %v346 = vld [vmem:[%s299 + $0x14] sm:$0xf]
      %v347 = vld [vmem:[%s299 + $0x18] sm:$0xf]
      %v348 = vld [vmem:[%s299 + $0x1c] sm:$0xf]
      %v349 = vld [vmem:[%s299 + $0x20] sm:$0xf]
      %v350 = vld [vmem:[%s299 + $0x24] sm:$0xf]
      %v351 = vld [vmem:[%s299 + $0x28] sm:$0xf]
      %v352 = vld [vmem:[%s299 + $0x2c] sm:$0xf]
      %v353 = vld [vmem:[%s299 + $0x30] sm:$0xf]
      %v354 = vld [vmem:[%s299 + $0x34] sm:$0xf]
      %v355 = vld [vmem:[%s299 + $0x38] sm:$0xf]
      %v356 = vld [vmem:[%s299 + $0x3c] sm:$0xf]
      %v357 = vld [vmem:[%s299 + $0x40] sm:$0xf]
      %v358 = vld [vmem:[%s299 + $0x44] sm:$0xf]
      %v359 = vld [vmem:[%s299 + $0x48] sm:$0xf]
      %v360 = vld [vmem:[%s299 + $0x4c] sm:$0xf]
      %v361 = vld [vmem:[%s299 + $0x50] sm:$0xf]
      %v362 = vld [vmem:[%s299 + $0x54] sm:$0xf]
      %v363 = vld [vmem:[%s299 + $0x58] sm:$0xf]
      %v364 = vld [vmem:[%s299 + $0x5c] sm:$0xf]
      %v365 = vld [vmem:[%s299 + $0x60] sm:$0xf]
      %v366 = vld [vmem:[%s299 + $0x64] sm:$0xf]
      %v367 = vld [vmem:[%s299 + $0x68] sm:$0xf]
      %v368 = vld [vmem:[%s299 + $0x6c] sm:$0xf]
      %v369 = vld [vmem:[%s299 + $0x70] sm:$0xf]
      %v370 = vld [vmem:[%s299 + $0x74] sm:$0xf]
      %v371 = vld [vmem:[%s299 + $0x78] sm:$0xf]
      %v372 = vld [vmem:[%s299 + $0x7c] sm:$0xf]
      %v377 = vunpack.c.l.b16 %v337
      %v378 = vunpack.c.h.b16 %v337
      %v379 = vunpack.c.l.b16 %v338
      %v380 = vunpack.c.h.b16 %v338
      %v381 = vunpack.c.l.b16 %v339
      %v382 = vunpack.c.h.b16 %v339
      %v383 = vunpack.c.l.b16 %v340
      %v384 = vunpack.c.h.b16 %v340
      %v385 = vpack.c.b16 %v379, %v377
      %v386 = vpack.c.b16 %v380, %v378
      %v387 = vpack.c.b16 %v383, %v381
      %v388 = vpack.c.b16 %v384, %v382
      %v425 = vunpack.c.l.b16 %v341
      %v426 = vunpack.c.l.b16 %v342
      %v427 = vunpack.c.l.b16 %v343
      %v428 = vunpack.c.l.b16 %v344
      %v429 = vunpack.c.l.b16 %v345
      %v430 = vunpack.c.l.b16 %v346
      %v431 = vunpack.c.l.b16 %v347
      %v432 = vunpack.c.l.b16 %v348
      %v433 = vunpack.c.l.b16 %v349
      %v434 = vunpack.c.l.b16 %v350
      %v435 = vunpack.c.l.b16 %v351
      %v436 = vunpack.c.l.b16 %v352
      %v437 = vunpack.c.l.b16 %v353
      %v438 = vunpack.c.l.b16 %v354
      %v439 = vunpack.c.l.b16 %v355
      %v440 = vunpack.c.l.b16 %v356
      %v441 = vunpack.c.l.b16 %v357
      %v442 = vunpack.c.l.b16 %v358
      %v443 = vunpack.c.l.b16 %v359
      %v444 = vunpack.c.l.b16 %v360
      %v445 = vunpack.c.l.b16 %v361
      %v446 = vunpack.c.l.b16 %v362
      %v447 = vunpack.c.l.b16 %v363
      %v448 = vunpack.c.l.b16 %v364
      %v449 = vunpack.c.l.b16 %v365
      %v450 = vunpack.c.l.b16 %v366
      %v451 = vunpack.c.l.b16 %v367
      %v452 = vunpack.c.l.b16 %v368
      %v453 = vunpack.c.l.b16 %v369
      %v454 = vunpack.c.l.b16 %v370
      %v455 = vunpack.c.l.b16 %v371
      %v456 = vunpack.c.l.b16 %v372
      %v457 = vpack.c.b16 %v426, %v425
      %v458 = vpack.c.b16 %v428, %v427
      %v459 = vpack.c.b16 %v430, %v429
      %v460 = vpack.c.b16 %v432, %v431
      %v461 = vpack.c.b16 %v434, %v433
      %v462 = vpack.c.b16 %v436, %v435
      %v463 = vpack.c.b16 %v438, %v437
      %v464 = vpack.c.b16 %v440, %v439
      %v465 = vpack.c.b16 %v442, %v441
      %v466 = vpack.c.b16 %v444, %v443
      %v467 = vpack.c.b16 %v446, %v445
      %v468 = vpack.c.b16 %v448, %v447
      %v469 = vpack.c.b16 %v450, %v449
      %v470 = vpack.c.b16 %v452, %v451
      %v471 = vpack.c.b16 %v454, %v453
      %v472 = vpack.c.b16 %v456, %v455
      %489 = vmatprep.subr.bf16.mxu0 0
      %490 = vmatpush1.bf16.msra.mxu0 %v457
      %491 = vmatprep.subr.bf16.mxu0 0
      %492 = vmatpush1.bf16.msra.mxu0 %v458
      %493 = vmatprep.subr.bf16.mxu0 0
      %494 = vmatpush1.bf16.msra.mxu0 %v459
      %495 = vmatprep.subr.bf16.mxu0 0
      %496 = vmatpush1.bf16.msra.mxu0 %v460
      %497 = vmatprep.subr.bf16.mxu0 0
      %498 = vmatpush1.bf16.msra.mxu0 %v461
      %499 = vmatprep.subr.bf16.mxu0 0
      %500 = vmatpush1.bf16.msra.mxu0 %v462
      %501 = vmatprep.subr.bf16.mxu0 0
      %502 = vmatpush1.bf16.msra.mxu0 %v463
      %503 = vmatprep.subr.bf16.mxu0 0
      %504 = vmatpush1.bf16.msra.mxu0 %v464
      %505 = vmatprep.subr.bf16.mxu0 0
      %506 = vmatpush1.bf16.msra.mxu0 %v465
      %507 = vmatprep.subr.bf16.mxu0 0
      %508 = vmatpush1.bf16.msra.mxu0 %v466
      %509 = vmatprep.subr.bf16.mxu0 0
      %510 = vmatpush1.bf16.msra.mxu0 %v467
      %511 = vmatprep.subr.bf16.mxu0 0
      %512 = vmatpush1.bf16.msra.mxu0 %v468
      %513 = vmatprep.subr.bf16.mxu0 0
      %514 = vmatpush1.bf16.msra.mxu0 %v469
      %515 = vmatprep.subr.bf16.mxu0 0
      %516 = vmatpush1.bf16.msra.mxu0 %v470
      %517 = vmatprep.subr.bf16.mxu0 0
      %518 = vmatpush1.bf16.msra.mxu0 %v471
      %519 = vmatprep.subr.bf16.mxu0 0
      %520 = vmatpush1.bf16.msra.mxu0 %v472
      %521 = vmatprep.mubr.bf16.mxu0 %v386
      %522 = vmatmul.mubr.bf16.gmra.mrb[0].mxu0 %v385
      %v523 = vpop.f32.mrb[0].mxu0
      %v524 = vadd.f32 0.0, %v523
      %v525 = vpop.f32.mrb[0].mxu0
      %v526 = vpop.f32.mrb[0].mxu0
      %v527 = vadd.f32 0.0, %v526
      %v528 = vpop.f32.mrb[0].mxu0
      %529 = vmatprep.mubr.bf16.mxu0 %v388
      %530 = vmatmul.mubr.bf16.gmra.mrb[0].mxu0 %v387
      %v531 = vpop.f32.mrb[0].mxu0
      %v532 = vadd.f32 0.0, %v531
      %v533 = vpop.f32.mrb[0].mxu0
      %v534 = vpop.f32.mrb[0].mxu0
      %v535 = vadd.f32 0.0, %v534
      %v536 = vpop.f32.mrb[0].mxu0
      %537 = vdwg.mxu0
      %v538 = vadd.f32 %v333, %v524
      %v539 = vadd.f32 %v334, %v527
      %v540 = vadd.f32 %v335, %v532
      %v541 = vadd.f32 %v336, %v535
      %vm542 = vcmask 261120
      %543 = vst.msk [vmem:[#allocation2] sm:$0xff] %vm542, %v538
      %544 = vst.msk [vmem:[#allocation2 + $0x8] sm:$0xff] %vm542, %v539
      %545 = vst.msk [vmem:[#allocation2 + $0x10] sm:$0xff] %vm542, %v540
      %546 = vst.msk [vmem:[#allocation2 + $0x18] sm:$0xff] %vm542, %v541
      // Predicated region
      $region33: #{generator_forward.11} parent=27 // pred_check
        %p547 = pneg %p324
      $region34: #{generator_forward.11} parent=27 // pred_check_branch
        %549 = sbr.rel (%p547) target = $region36
      $region35: #{generator_forward.11} parent=27 // pred_region
        %v550 = vld [vmem:[#allocation2] sm:$0xff]
        %v551 = vld [vmem:[#allocation2 + $0x8] sm:$0xff]
        %v552 = vld [vmem:[#allocation2 + $0x10] sm:$0xff]
        %v553 = vld [vmem:[#allocation2 + $0x18] sm:$0xff]
        %v554 = vpack.c.bf16 %v551, %v550
        %v555 = vpack.c.bf16 %v553, %v552
        %v558 = vunpack.c.l.b16 %v554
        %v559 = vunpack.c.h.b16 %v554
        %v560 = vunpack.c.l.b16 %v555
        %v561 = vunpack.c.h.b16 %v555
        %v562 = vpack.c.b16 %v558, %v558
        %v563 = vpack.c.b16 %v559, %v559
        %v564 = vpack.c.b16 %v560, %v560
        %v565 = vpack.c.b16 %v561, %v561
        %vm570 = vcmask 257024
        %571 = vst.msk [vmem:[%s308] sm:$0xf] %vm570, %v562
        %572 = vst.msk [vmem:[%s308 + $0x4] sm:$0xf] %vm570, %v563
        %573 = vst.msk [vmem:[%s308 + $0x8] sm:$0xf] %vm570, %v564
        %574 = vst.msk [vmem:[%s308 + $0xc] sm:$0xf] %vm570, %v565
        %v575 = vsel %vm542, %v550, 0.0
        %576 = vadd.xlane.f32.xlu0 %v575
        %v577 = vpop.xlane.xlu0 %576
        %v578 = vsel %vm542, %v551, 0.0
        %579 = vadd.xlane.f32.xlu0 %v578
        %v580 = vpop.xlane.xlu0 %579
        %v581 = vsel %vm542, %v552, 0.0
        %582 = vadd.xlane.f32.xlu0 %v581
        %v583 = vpop.xlane.xlu0 %582
        %v584 = vsel %vm542, %v553, 0.0
        %585 = vadd.xlane.f32.xlu0 %v584
        %v586 = vpop.xlane.xlu0 %585
        %vm587 = vcmask 7168
        %588 = vst.msk [vmem:[%s314] sm:$0xff] %vm587, %v577
        %589 = vst.msk [vmem:[%s314 + $0x8] sm:$0xff] %vm587, %v580
        %590 = vst.msk [vmem:[%s314 + $0x10] sm:$0xff] %vm587, %v583
        %591 = vst.msk [vmem:[%s314 + $0x18] sm:$0xff] %vm587, %v586
        %v592 = vmul.f32 %v550, %v550
        %v593 = vmul.f32 %v551, %v551
        %v594 = vmul.f32 %v552, %v552
        %v595 = vmul.f32 %v553, %v553
        %v596 = vsel %vm542, %v592, 0.0
        %597 = vadd.xlane.f32.xlu0 %v596
        %v598 = vpop.xlane.xlu0 %597
        %v599 = vsel %vm542, %v593, 0.0
        %600 = vadd.xlane.f32.xlu0 %v599
        %v601 = vpop.xlane.xlu0 %600
        %v602 = vsel %vm542, %v594, 0.0
        %603 = vadd.xlane.f32.xlu0 %v602
        %v604 = vpop.xlane.xlu0 %603
        %v605 = vsel %vm542, %v595, 0.0
        %606 = vadd.xlane.f32.xlu0 %v605
        %v607 = vpop.xlane.xlu0 %606
        %608 = vst.msk [vmem:[%s321] sm:$0xff] %vm587, %v598
        %609 = vst.msk [vmem:[%s321 + $0x8] sm:$0xff] %vm587, %v601
        %610 = vst.msk [vmem:[%s321 + $0x10] sm:$0xff] %vm587, %v604
        %611 = vst.msk [vmem:[%s321 + $0x18] sm:$0xff] %vm587, %v607
      $region36: #{generator_forward.11} parent=27 // pred_fallthru
        _
      %p612 = scmp.lt.s32.totalorder %s21, 3
      %s613 = scalar_select %p612, %s21, 3
      %p614 = scmp.lt.s32.totalorder %s22, 0
      %s615 = scalar_select %p614, %s22, 0
      %s616 = smul.addr %s613, 4
      %s617 = sadd.s32 %s615, %s616
      %s618 = smul.addr %s617, 4
      %s619 = scalar_lea.vmem %s2, %s618
      %s620 = sadd.s32 %s21, %s22
      %p621 = scmp.lt.s32.totalorder %s620, 3
      %s622 = scalar_select %p621, %s620, 3
      %s623 = smul.addr %s622, 4
      %s624 = smul.addr %s623, 8
      %s625 = scalar_lea.vmem %s3, %s624
      %s626 = sadd.s32 %s21, %s22
      %p627 = scmp.lt.s32.totalorder %s626, 3
      %s628 = scalar_select %p627, %s626, 3
      %s629 = smul.addr %s628, 4
      %s630 = smul.addr %s629, 8
      %s631 = scalar_lea.vmem %s4, %s630
      // Predicated region
      $region37: #{generator_forward.11} parent=27 // pred_check
        %p632 = pneg %p113
      $region38: #{generator_forward.11} parent=27 // pred_check_branch
        %634 = sbr.rel (%p632) target = $region40
      $region39: #{generator_forward.11} parent=27 // pred_region
        _
      $region40: #{generator_forward.11} parent=27 // pred_fallthru
        _
      // Predicated region
      $region41: #{generator_forward.11} parent=27 // pred_check
        %p635 = pneg %p141
      $region42: #{generator_forward.11} parent=27 // pred_check_branch
        %637 = sbr.rel (%p635) target = $region44
      $region43: #{generator_forward.11} parent=27 // pred_region
        %s638 = sadd.s32 %s21, %s22
      $region44: #{generator_forward.11} parent=27 // pred_fallthru
        _
      // Predicated region
      $region45: #{generator_forward.11} parent=27 // pred_check
        %p639 = pneg %p169
      $region46: #{generator_forward.11} parent=27 // pred_check_branch
        %641 = sbr.rel (%p639) target = $region48
      $region47: #{generator_forward.11} parent=27 // pred_region
        %s642 = sadd.s32 %s21, %s22
      $region48: #{generator_forward.11} parent=27 // pred_fallthru
        _
    $region28: #{generator_forward.11} parent=5 // pred_fallthru
      _
    %p643 = scmp.le.s32.totalorder 2, %s11
    // Predicated region
    $region49: #{generator_forward.11} parent=5 // pred_check
      %p644 = pneg %p643
    $region50: #{generator_forward.11} parent=5 // pred_check_branch
      %646 = sbr.rel (%p644) target = $region52
    $region51: #{generator_forward.11} parent=5 // pred_region
      %s647 = ssub.s32 %s11, 2
      // Predicated region
      $region53: #{generator_forward.11} parent=51 // pred_check
        %p648 = pneg %p119
      $region54: #{generator_forward.11} parent=51 // pred_check_branch
        %650 = sbr.rel (%p648) target = $region56
      $region55: #{generator_forward.11} parent=51 // pred_region
        %p651 = scmp.lt.s32.totalorder %s24, 3
        %s652 = scalar_select %p651, %s24, 3
        %p653 = scmp.lt.s32.totalorder %s25, 0
        %s654 = scalar_select %p653, %s25, 0
        %s655 = smul.addr %s652, 4
        %s656 = sadd.s32 %s654, %s655
        %s657 = smul.addr %s656, 4
        %s658 = scalar_lea.vmem %s2, %s657
      $region56: #{generator_forward.11} parent=51 // pred_fallthru
        _
      // Predicated region
      $region57: #{generator_forward.11} parent=51 // pred_check
        %p659 = pneg %p147
      $region58: #{generator_forward.11} parent=51 // pred_check_branch
        %661 = sbr.rel (%p659) target = $region60
      $region59: #{generator_forward.11} parent=51 // pred_region
        %s662 = sadd.s32 %s24, %s25
        %p663 = scmp.lt.s32.totalorder %s662, 3
        %s664 = scalar_select %p663, %s662, 3
        %s665 = smul.addr %s664, 4
        %s666 = smul.addr %s665, 8
        %s667 = scalar_lea.vmem %s3, %s666
      $region60: #{generator_forward.11} parent=51 // pred_fallthru
        _
      // Predicated region
      $region61: #{generator_forward.11} parent=51 // pred_check
        %p668 = pneg %p175
      $region62: #{generator_forward.11} parent=51 // pred_check_branch
        %670 = sbr.rel (%p668) target = $region64
      $region63: #{generator_forward.11} parent=51 // pred_region
        %s671 = sadd.s32 %s24, %s25
        %p672 = scmp.lt.s32.totalorder %s671, 3
        %s673 = scalar_select %p672, %s671, 3
        %s674 = smul.addr %s673, 4
        %s675 = smul.addr %s674, 8
        %s676 = scalar_lea.vmem %s4, %s675
      $region64: #{generator_forward.11} parent=51 // pred_fallthru
        _
    $region52: #{generator_forward.11} parent=5 // pred_fallthru
      _
  $region6: #{generator_forward.11} parent=0 // loop_footer
    %s15 = sadd.s32 1, %s11
  $region7: #{generator_forward.11} parent=0 // loop_footer_branch
    %10 = sbr.rel target = $region3
  $region8: #{generator_forward.11} parent=0 // loop_exit
    _

// kernel: generator_forward.12
$region0: #{generator_forward.12}
  #allocation0 [shape = 'u32[]', space=smem, size = 0x4, offset = 0x4, fixed_abs, tag = 'smem constant byte address 0x4 - core index']
  #allocation1 [shape = 'u32[144,128]{1,0:T(1,128)}', space=vmem, size = 0x12000, scoped, tag = 'internal scratch']
  %s0 = inlined_call_operand.vmem [shape: bf16[4,32,32], index: 0, kind: input, shape index: {}]
  %s1 = inlined_call_operand.vmem [shape: f32[1,32,1], index: 1, kind: input, shape index: {}]
  %s2 = inlined_call_operand.vmem [shape: f32[1,32,1], index: 2, kind: input, shape index: {}]
  %s3 = inlined_call_operand.vmem [shape: bf16[4,32,32], index: 3, kind: output, shape index: {}]
  %s4 = sld [smem:[#allocation0]]
  $region45: #{generator_forward.12} parent=0
    _
  %s6 = ssub.s32 1, %s4
  %s7 = scalar_select 0, %s6, %s4
  loop: start=0, step=1, limit=6
  $region2: #{generator_forward.12} parent=0 // loop_pre_header
    _
  $region3: #{generator_forward.12} parent=0 // loop_header
    %s9 = sphi 0, %s13
    %p10 = scmp.ge.s32.totalorder %s9, 6
    %s16 = sphi 0, %s28
    %s17 = sphi 0, %s24
    %s18 = sphi 0, %s16
    %s19 = sphi 0, %s17
    %s20 = sphi 0, %s18
    %s21 = sphi 0, %s19
    %s33 = sphi 0, %s35
    %s36 = sphi 0, %s33
    %s37 = sphi 0, %s36
    %s53 = sphi 0, %s37
    %s57 = sphi 0, %s57
    %s59 = sphi 0, %s57
    %s60 = sphi 0, %s59
    %s74 = sphi 0, %s60
    %s78 = sphi 0, %s78
    %s80 = sphi 0, %s78
    %s81 = sphi 0, %s80
    %s95 = sphi 0, %s81
    %s103 = sphi 0, %s105
    %s106 = sphi 0, %s103
    %s107 = sphi 0, %s106
    %s123 = sphi 0, %s107
  $region4: #{generator_forward.12} parent=0 // loop_header_branch
    %12 = sbr.rel (%p10) target = $region8
  $region5: #{generator_forward.12} parent=0 // loop_body
    %s14 = ssub.s32 %s9, 1
    %s15 = ssub.s32 %s9, 2
    %s22 = sadd.s32 1, %s17
    %p23 = scmp.ge.s32.totalorder %s22, 1
    %s24 = scalar_select %p23, 0, %s22
    %s25 = sadd.s32 1, %s16
    %s26 = scalar_select %p23, %s25, %s16
    %p27 = scmp.ge.s32.totalorder %s26, 4
    %s28 = scalar_select %p27, 0, %s26
    %s29 = ssub.s32 %s16, %s28
    %s30 = ssub.s32 %s17, %s24
    %s31 = sor.u32 %s29, %s30
    %p32 = scmp.eq.s32.totalorder %s31, 0
    %s34 = sadd.s32 %s33, 1
    %s35 = scalar_select %p32, %s33, %s34
    %p38 = pneg %p32
    %p39 = scmp.eq.s32.totalorder %s9, 3
    %p40 = por %p38, %p39
    %p41 = scmp.ne.s32.totalorder %s33, %s36
    %p42 = scmp.eq.s32.totalorder %s9, 0
    %p43 = por %p41, %p42
    %p44 = scmp.ne.s32.totalorder %s33, %s36
    %p45 = scmp.eq.s32.totalorder %s14, 3
    %p46 = por %p44, %p45
    %p47 = scmp.ne.s32.totalorder %s36, %s37
    %p48 = scmp.eq.s32.totalorder %s14, 0
    %p49 = por %p47, %p48
    %p50 = scmp.ne.s32.totalorder %s36, %s37
    %p51 = scmp.eq.s32.totalorder %s15, 3
    %p52 = por %p50, %p51
    %p54 = scmp.ne.s32.totalorder %s37, %s53
    %p55 = scmp.eq.s32.totalorder %s15, 0
    %p56 = por %p54, %p55
    %s58 = sadd.s32 %s57, 1
    %p61 = scmp.eq.s32.totalorder %s9, 3
    %p62 = scmp.ne.s32.totalorder %s57, %s59
    %p63 = scmp.eq.s32.totalorder %s9, 0
    %p64 = por %p62, %p63
    %p65 = scmp.ne.s32.totalorder %s57, %s59
    %p66 = scmp.eq.s32.totalorder %s14, 3
    %p67 = por %p65, %p66
    %p68 = scmp.ne.s32.totalorder %s59, %s60
    %p69 = scmp.eq.s32.totalorder %s14, 0
    %p70 = por %p68, %p69
    %p71 = scmp.ne.s32.totalorder %s59, %s60
    %p72 = scmp.eq.s32.totalorder %s15, 3
    %p73 = por %p71, %p72
    %p75 = scmp.ne.s32.totalorder %s60, %s74
    %p76 = scmp.eq.s32.totalorder %s15, 0
    %p77 = por %p75, %p76
    %s79 = sadd.s32 %s78, 1
    %p82 = scmp.eq.s32.totalorder %s9, 3
    %p83 = scmp.ne.s32.totalorder %s78, %s80
    %p84 = scmp.eq.s32.totalorder %s9, 0
    %p85 = por %p83, %p84
    %p86 = scmp.ne.s32.totalorder %s78, %s80
    %p87 = scmp.eq.s32.totalorder %s14, 3
    %p88 = por %p86, %p87
    %p89 = scmp.ne.s32.totalorder %s80, %s81
    %p90 = scmp.eq.s32.totalorder %s14, 0
    %p91 = por %p89, %p90
    %p92 = scmp.ne.s32.totalorder %s80, %s81
    %p93 = scmp.eq.s32.totalorder %s15, 3
    %p94 = por %p92, %p93
    %p96 = scmp.ne.s32.totalorder %s81, %s95
    %p97 = scmp.eq.s32.totalorder %s15, 0
    %p98 = por %p96, %p97
    %s99 = ssub.s32 %s16, %s28
    %s100 = ssub.s32 %s17, %s24
    %s101 = sor.u32 %s99, %s100
    %p102 = scmp.eq.s32.totalorder %s101, 0
    %s104 = sadd.s32 %s103, 1
    %s105 = scalar_select %p102, %s103, %s104
    %p108 = pneg %p102
    %p109 = scmp.eq.s32.totalorder %s9, 3
    %p110 = por %p108, %p109
    %p111 = scmp.ne.s32.totalorder %s103, %s106
    %p112 = scmp.eq.s32.totalorder %s9, 0
    %p113 = por %p111, %p112
    %p114 = scmp.ne.s32.totalorder %s103, %s106
    %p115 = scmp.eq.s32.totalorder %s14, 3
    %p116 = por %p114, %p115
    %p117 = scmp.ne.s32.totalorder %s106, %s107
    %p118 = scmp.eq.s32.totalorder %s14, 0
    %p119 = por %p117, %p118
    %p120 = scmp.ne.s32.totalorder %s106, %s107
    %p121 = scmp.eq.s32.totalorder %s15, 3
    %p122 = por %p120, %p121
    %p124 = scmp.ne.s32.totalorder %s107, %s123
    %p125 = scmp.eq.s32.totalorder %s15, 0
    %p126 = por %p124, %p125
    %p127 = scmp.le.s32.totalorder 1, %s9
    %p128 = scmp.lt.s32.totalorder %s9, 5
    %p129 = pnand %p127, %p128
    %p130 = pneg %p129
    // Predicated region
    $region9: #{generator_forward.12} parent=5 // pred_check
      _
    $region10: #{generator_forward.12} parent=5 // pred_check_branch
      %132 = sbr.rel (%p129) target = $region12
    $region11: #{generator_forward.12} parent=5 // pred_region
      %s133 = ssub.s32 %s9, 1
      // Predicated region
      $region13: #{generator_forward.12} parent=11 // pred_check
        %p134 = pneg %p70
      $region14: #{generator_forward.12} parent=11 // pred_check_branch
        %136 = sbr.rel (%p134) target = $region16
      $region15: #{generator_forward.12} parent=11 // pred_region
        _
      $region16: #{generator_forward.12} parent=11 // pred_fallthru
        _
      // Predicated region
      $region17: #{generator_forward.12} parent=11 // pred_check
        %p137 = pneg %p91
      $region18: #{generator_forward.12} parent=11 // pred_check_branch
        %139 = sbr.rel (%p137) target = $region20
      $region19: #{generator_forward.12} parent=11 // pred_region
        _
      $region20: #{generator_forward.12} parent=11 // pred_fallthru
        _
    $region12: #{generator_forward.12} parent=5 // pred_fallthru
      _
    %p140 = scmp.lt.s32.totalorder %s9, 4
    // Predicated region
    $region21: #{generator_forward.12} parent=5 // pred_check
      %p141 = pneg %p140
    $region22: #{generator_forward.12} parent=5 // pred_check_branch
      %143 = sbr.rel (%p141) target = $region24
    $region23: #{generator_forward.12} parent=5 // pred_region
      // Predicated region
      $region25: #{generator_forward.12} parent=23 // pred_check
        %p144 = pneg %p43
      $region26: #{generator_forward.12} parent=23 // pred_check_branch
        %146 = sbr.rel (%p144) target = $region28
      $region27: #{generator_forward.12} parent=23 // pred_region
        %p147 = scmp.lt.s32.totalorder %s16, 3
        %s148 = scalar_select %p147, %s16, 3
        %p149 = scmp.lt.s32.totalorder %s17, 0
        %s150 = scalar_select %p149, %s17, 0
        %s151 = smul.addr %s148, 4
        %s152 = sadd.s32 %s150, %s151
        %s153 = smul.addr %s152, 4
        %s154 = scalar_lea.vmem %s0, %s153
      $region28: #{generator_forward.12} parent=23 // pred_fallthru
        _
    $region24: #{generator_forward.12} parent=5 // pred_fallthru
      _
    %p155 = scmp.le.s32.totalorder 1, %s9
    %p156 = scmp.lt.s32.totalorder %s9, 5
    %p157 = pnand %p155, %p156
    %p158 = pneg %p157
    // Predicated region
    $region29: #{generator_forward.12} parent=5 // pred_check
      _
    $region30: #{generator_forward.12} parent=5 // pred_check_branch
      %160 = sbr.rel (%p157) target = $region32
    $region31: #{generator_forward.12} parent=5 // pred_region
      %s161 = ssub.s32 %s9, 1
      %p162 = scmp.lt.s32.totalorder %s18, 3
      %s163 = scalar_select %p162, %s18, 3
      %p164 = scmp.lt.s32.totalorder %s19, 0
      %s165 = scalar_select %p164, %s19, 0
      %s166 = smul.addr %s163, 4
      %s167 = sadd.s32 %s165, %s166
      %s168 = smul.addr %s167, 4
      %s169 = scalar_lea.vmem %s0, %s168
      %p170 = pneg %p49
      %p171 = pneg %p46
      %p172 = pneg %p70
      %p173 = pneg %p67
      %p174 = pneg %p91
      %p175 = pneg %p88
      %p176 = pneg %p119
      %p177 = pneg %p116
      %p178 = scmp.lt.s32.totalorder %s18, 3
      %s179 = scalar_select %p178, %s18, 3
      %p180 = scmp.lt.s32.totalorder %s19, 0
      %s181 = scalar_select %p180, %s19, 0
      %s182 = smul.addr %s179, 4
      %s183 = sadd.s32 %s181, %s182
      %s184 = smul.addr %s183, 4
      %s185 = scalar_lea.vmem %s3, %s184
      %p186 = scmp.lt.s32.totalorder %s18, 3
      %s187 = scalar_select %p186, %s18, 3
      %p188 = scmp.lt.s32.totalorder %s19, 0
      %s189 = scalar_select %p188, %s19, 0
      %s190 = smul.addr %s187, 4
      %s191 = sadd.s32 %s189, %s190
      %s192 = smul.addr %s191, 4
      %s193 = scalar_lea.vmem %s0, %s192
      %p194 = scmp.lt.s32.totalorder %s18, 3
      %s195 = scalar_select %p194, %s18, 3
      %p196 = scmp.lt.s32.totalorder %s19, 0
      %s197 = scalar_select %p196, %s19, 0
      %s198 = smul.addr %s195, 4
      %s199 = sadd.s32 %s197, %s198
      %s200 = smul.addr %s199, 4
      %s201 = scalar_lea.vmem %s3, %s200
      %v202 = vld [vmem:[%s193] sm:$0xf]
      %v203 = vld [vmem:[%s193 + $0x4] sm:$0xf]
      %v204 = vld [vmem:[%s193 + $0x8] sm:$0xf]
      %v205 = vld [vmem:[%s193 + $0xc] sm:$0xf]
      %v206 = vunpack.c.l.bf16 %v202
      %v207 = vunpack.c.l.bf16 %v203
      %v208 = vunpack.c.l.bf16 %v204
      %v209 = vunpack.c.l.bf16 %v205
      %v210 = vld [vmem:[%s1] sm:$0xff]
      %v211 = vld [vmem:[%s1 + $0x8] sm:$0xff]
      %v212 = vld [vmem:[%s1 + $0x10] sm:$0xff]
      %v213 = vld [vmem:[%s1 + $0x18] sm:$0xff]
      %215 = vset.pattern.permute.xlu0 0
      %216 = vperm.xlu0 %215, %v210
      %v217 = vpop.permute.xlu0 %216
      %220 = vset.pattern.permute.xlu0 0
      %221 = vperm.xlu0 %220, %v211
      %v222 = vpop.permute.xlu0 %221
      %225 = vset.pattern.permute.xlu0 0
      %226 = vperm.xlu0 %225, %v212
      %v227 = vpop.permute.xlu0 %226
      %230 = vset.pattern.permute.xlu0 0
      %231 = vperm.xlu0 %230, %v213
      %v232 = vpop.permute.xlu0 %231
      %v234 = vmul.f32 %v206, %v217
      %v235 = vmul.f32 %v207, %v222
      %v236 = vmul.f32 %v208, %v227
      %v237 = vmul.f32 %v209, %v232
      %v238 = vld [vmem:[%s2] sm:$0xff]
      %v239 = vld [vmem:[%s2 + $0x8] sm:$0xff]
      %v240 = vld [vmem:[%s2 + $0x10] sm:$0xff]
      %v241 = vld [vmem:[%s2 + $0x18] sm:$0xff]
      %243 = vset.pattern.permute.xlu0 0
      %244 = vperm.xlu0 %243, %v238
      %v245 = vpop.permute.xlu0 %244
      %248 = vset.pattern.permute.xlu0 0
      %249 = vperm.xlu0 %248, %v239
      %v250 = vpop.permute.xlu0 %249
      %253 = vset.pattern.permute.xlu0 0
      %254 = vperm.xlu0 %253, %v240
      %v255 = vpop.permute.xlu0 %254
      %258 = vset.pattern.permute.xlu0 0
      %259 = vperm.xlu0 %258, %v241
      %v260 = vpop.permute.xlu0 %259
      %v262 = vadd.f32 %v234, %v245
      %v263 = vadd.f32 %v235, %v250
      %v264 = vadd.f32 %v236, %v255
      %v265 = vadd.f32 %v237, %v260
      %v266 = vmax.f32 %v262, 0.0
      %v267 = vmax.f32 %v263, 0.0
      %v268 = vmax.f32 %v264, 0.0
      %v269 = vmax.f32 %v265, 0.0
      %v270 = vpack.c.bf16 %v267, %v266
      %v271 = vpack.c.bf16 %v269, %v268
      %v274 = vunpack.c.l.b16 %v270
      %v275 = vunpack.c.h.b16 %v270
      %v276 = vunpack.c.l.b16 %v271
      %v277 = vunpack.c.h.b16 %v271
      %v278 = vpack.c.b16 %v274, %v274
      %v279 = vpack.c.b16 %v275, %v275
      %v280 = vpack.c.b16 %v276, %v276
      %v281 = vpack.c.b16 %v277, %v277
      %vm286 = vcmask 257024
      %287 = vst.msk [vmem:[%s201] sm:$0xf] %vm286, %v278
      %288 = vst.msk [vmem:[%s201 + $0x4] sm:$0xf] %vm286, %v279
      %289 = vst.msk [vmem:[%s201 + $0x8] sm:$0xf] %vm286, %v280
      %290 = vst.msk [vmem:[%s201 + $0xc] sm:$0xf] %vm286, %v281
      %p291 = scmp.lt.s32.totalorder %s18, 3
      %s292 = scalar_select %p291, %s18, 3
      %p293 = scmp.lt.s32.totalorder %s19, 0
      %s294 = scalar_select %p293, %s19, 0
      %s295 = smul.addr %s292, 4
      %s296 = sadd.s32 %s294, %s295
      %s297 = smul.addr %s296, 4
      %s298 = scalar_lea.vmem %s3, %s297
      // Predicated region
      $region33: #{generator_forward.12} parent=31 // pred_check
        %p299 = pneg %p116
      $region34: #{generator_forward.12} parent=31 // pred_check_branch
        %301 = sbr.rel (%p299) target = $region36
      $region35: #{generator_forward.12} parent=31 // pred_region
        _
      $region36: #{generator_forward.12} parent=31 // pred_fallthru
        _
    $region32: #{generator_forward.12} parent=5 // pred_fallthru
      _
    %p302 = scmp.le.s32.totalorder 2, %s9
    // Predicated region
    $region37: #{generator_forward.12} parent=5 // pred_check
      %p303 = pneg %p302
    $region38: #{generator_forward.12} parent=5 // pred_check_branch
      %305 = sbr.rel (%p303) target = $region40
    $region39: #{generator_forward.12} parent=5 // pred_region
      %s306 = ssub.s32 %s9, 2
      // Predicated region
      $region41: #{generator_forward.12} parent=39 // pred_check
        %p307 = pneg %p122
      $region42: #{generator_forward.12} parent=39 // pred_check_branch
        %309 = sbr.rel (%p307) target = $region44
      $region43: #{generator_forward.12} parent=39 // pred_region
        %p310 = scmp.lt.s32.totalorder %s20, 3
        %s311 = scalar_select %p310, %s20, 3
        %p312 = scmp.lt.s32.totalorder %s21, 0
        %s313 = scalar_select %p312, %s21, 0
        %s314 = smul.addr %s311, 4
        %s315 = sadd.s32 %s313, %s314
        %s316 = smul.addr %s315, 4
        %s317 = scalar_lea.vmem %s3, %s316
      $region44: #{generator_forward.12} parent=39 // pred_fallthru
        _
    $region40: #{generator_forward.12} parent=5 // pred_fallthru
      _
  $region6: #{generator_forward.12} parent=0 // loop_footer
    %s13 = sadd.s32 1, %s9
  $region7: #{generator_forward.12} parent=0 // loop_footer_branch
    %8 = sbr.rel target = $region3
  $region8: #{generator_forward.12} parent=0 // loop_exit
    _

// kernel: generator_forward.13
$region0: #{generator_forward.13}
  #allocation0 [shape = 'u32[]', space=smem, size = 0x4, offset = 0x4, fixed_abs, tag = 'smem constant byte address 0x4 - core index']
  #allocation1 [shape = 'u32[144,128]{1,0:T(1,128)}', space=vmem, size = 0x12000, scoped, tag = 'internal scratch']
  #allocation2 [shape = 'f32[16,128]{1,0:T(8,128)}', space=vmem, size = 0x2000, scoped, tag = 'scratch operand']
  %s0 = inlined_call_operand.vmem [shape: bf16[4,16,128], index: 0, kind: input, shape index: {}]
  %s1 = inlined_call_operand.vmem [shape: bf16[4,128,128], index: 1, kind: input, shape index: {}]
  %s2 = inlined_call_operand.vmem [shape: bf16[4,16,128], index: 2, kind: output, shape index: {0}]
  %s3 = inlined_call_operand.vmem [shape: f32[4,16,1], index: 3, kind: output, shape index: {1}]
  %s4 = inlined_call_operand.vmem [shape: f32[4,16,1], index: 4, kind: output, shape index: {2}]
  %5 = xla_tuple %s2, %s3, %s4
  %s6 = sld [smem:[#allocation0]]
  $region65: #{generator_forward.13} parent=0
    _
  %s8 = ssub.s32 1, %s6
  %s9 = scalar_select 0, %s8, %s6
  loop: start=0, step=1, limit=6
  $region2: #{generator_forward.13} parent=0 // loop_pre_header
    _
  $region3: #{generator_forward.13} parent=0 // loop_header
    %s11 = sphi 0, %s15
    %p12 = scmp.ge.s32.totalorder %s11, 6
    %s18 = sphi 0, %s37
    %s19 = sphi 0, %s33
    %s20 = sphi 0, %s29
    %s21 = sphi 0, %s18
    %s22 = sphi 0, %s19
    %s23 = sphi 0, %s20
    %s24 = sphi 0, %s21
    %s25 = sphi 0, %s22
    %s26 = sphi 0, %s23
    %s42 = sphi 0, %s44
    %s45 = sphi 0, %s42
    %s46 = sphi 0, %s45
    %s62 = sphi 0, %s46
    %s72 = sphi 0, %s74
    %s75 = sphi 0, %s72
    %s76 = sphi 0, %s75
    %s92 = sphi 0, %s76
    %s100 = sphi 0, %s102
    %s103 = sphi 0, %s100
    %s104 = sphi 0, %s103
    %s120 = sphi 0, %s104
    %s128 = sphi 0, %s130
    %s131 = sphi 0, %s128
    %s132 = sphi 0, %s131
    %s148 = sphi 0, %s132
    %s156 = sphi 0, %s158
    %s159 = sphi 0, %s156
    %s160 = sphi 0, %s159
    %s176 = sphi 0, %s160
  $region4: #{generator_forward.13} parent=0 // loop_header_branch
    %14 = sbr.rel (%p12) target = $region8
  $region5: #{generator_forward.13} parent=0 // loop_body
    %s16 = ssub.s32 %s11, 1
    %s17 = ssub.s32 %s11, 2
    %s27 = sadd.s32 1, %s20
    %p28 = scmp.ge.s32.totalorder %s27, 1
    %s29 = scalar_select %p28, 0, %s27
    %s30 = sadd.s32 1, %s19
    %s31 = scalar_select %p28, %s30, %s19
    %p32 = scmp.ge.s32.totalorder %s31, 1
    %s33 = scalar_select %p32, 0, %s31
    %s34 = sadd.s32 1, %s18
    %s35 = scalar_select %p32, %s34, %s18
    %p36 = scmp.ge.s32.totalorder %s35, 4
    %s37 = scalar_select %p36, 0, %s35
    %s38 = ssub.s32 %s18, %s37
    %s39 = ssub.s32 %s20, %s29
    %s40 = sor.u32 %s38, %s39
    %p41 = scmp.eq.s32.totalorder %s40, 0
    %s43 = sadd.s32 %s42, 1
    %s44 = scalar_select %p41, %s42, %s43
    %p47 = pneg %p41
    %p48 = scmp.eq.s32.totalorder %s11, 3
    %p49 = por %p47, %p48
    %p50 = scmp.ne.s32.totalorder %s42, %s45
    %p51 = scmp.eq.s32.totalorder %s11, 0
    %p52 = por %p50, %p51
    %p53 = scmp.ne.s32.totalorder %s42, %s45
    %p54 = scmp.eq.s32.totalorder %s16, 3
    %p55 = por %p53, %p54
    %p56 = scmp.ne.s32.totalorder %s45, %s46
    %p57 = scmp.eq.s32.totalorder %s16, 0
    %p58 = por %p56, %p57
    %p59 = scmp.ne.s32.totalorder %s45, %s46
    %p60 = scmp.eq.s32.totalorder %s17, 3
    %p61 = por %p59, %p60
    %p63 = scmp.ne.s32.totalorder %s46, %s62
    %p64 = scmp.eq.s32.totalorder %s17, 0
    %p65 = por %p63, %p64
    %s66 = ssub.s32 %s18, %s37
    %s67 = ssub.s32 %s20, %s29
    %s68 = sor.u32 %s66, %s67
    %s69 = ssub.s32 %s19, %s33
    %s70 = sor.u32 %s68, %s69
    %p71 = scmp.eq.s32.totalorder %s70, 0
    %s73 = sadd.s32 %s72, 1
    %s74 = scalar_select %p71, %s72, %s73
    %p77 = pneg %p71
    %p78 = scmp.eq.s32.totalorder %s11, 3
    %p79 = por %p77, %p78
    %p80 = scmp.ne.s32.totalorder %s72, %s75
    %p81 = scmp.eq.s32.totalorder %s11, 0
    %p82 = por %p80, %p81
    %p83 = scmp.ne.s32.totalorder %s72, %s75
    %p84 = scmp.eq.s32.totalorder %s16, 3
    %p85 = por %p83, %p84
    %p86 = scmp.ne.s32.totalorder %s75, %s76
    %p87 = scmp.eq.s32.totalorder %s16, 0
    %p88 = por %p86, %p87
    %p89 = scmp.ne.s32.totalorder %s75, %s76
    %p90 = scmp.eq.s32.totalorder %s17, 3
    %p91 = por %p89, %p90
    %p93 = scmp.ne.s32.totalorder %s76, %s92
    %p94 = scmp.eq.s32.totalorder %s17, 0
    %p95 = por %p93, %p94
    %s96 = ssub.s32 %s18, %s37
    %s97 = ssub.s32 %s19, %s33
    %s98 = sor.u32 %s96, %s97
    %p99 = scmp.eq.s32.totalorder %s98, 0
    %s101 = sadd.s32 %s100, 1
    %s102 = scalar_select %p99, %s100, %s101
    %p105 = pneg %p99
    %p106 = scmp.eq.s32.totalorder %s11, 3
    %p107 = por %p105, %p106
    %p108 = scmp.ne.s32.totalorder %s100, %s103
    %p109 = scmp.eq.s32.totalorder %s11, 0
    %p110 = por %p108, %p109
    %p111 = scmp.ne.s32.totalorder %s100, %s103
    %p112 = scmp.eq.s32.totalorder %s16, 3
    %p113 = por %p111, %p112
    %p114 = scmp.ne.s32.totalorder %s103, %s104
    %p115 = scmp.eq.s32.totalorder %s16, 0
    %p116 = por %p114, %p115
    %p117 = scmp.ne.s32.totalorder %s103, %s104
    %p118 = scmp.eq.s32.totalorder %s17, 3
    %p119 = por %p117, %p118
    %p121 = scmp.ne.s32.totalorder %s104, %s120
    %p122 = scmp.eq.s32.totalorder %s17, 0
    %p123 = por %p121, %p122
    %s124 = sadd.s32 %s18, %s19
    %s125 = sadd.s32 %s37, %s33
    %s126 = ssub.s32 %s124, %s125
    %p127 = scmp.eq.s32.totalorder %s126, 0
    %s129 = sadd.s32 %s128, 1
    %s130 = scalar_select %p127, %s128, %s129
    %p133 = pneg %p127
    %p134 = scmp.eq.s32.totalorder %s11, 3
    %p135 = por %p133, %p134
    %p136 = scmp.ne.s32.totalorder %s128, %s131
    %p137 = scmp.eq.s32.totalorder %s11, 0
    %p138 = por %p136, %p137
    %p139 = scmp.ne.s32.totalorder %s128, %s131
    %p140 = scmp.eq.s32.totalorder %s16, 3
    %p141 = por %p139, %p140
    %p142 = scmp.ne.s32.totalorder %s131, %s132
    %p143 = scmp.eq.s32.totalorder %s16, 0
    %p144 = por %p142, %p143
    %p145 = scmp.ne.s32.totalorder %s131, %s132
    %p146 = scmp.eq.s32.totalorder %s17, 3
    %p147 = por %p145, %p146
    %p149 = scmp.ne.s32.totalorder %s132, %s148
    %p150 = scmp.eq.s32.totalorder %s17, 0
    %p151 = por %p149, %p150
    %s152 = sadd.s32 %s18, %s19
    %s153 = sadd.s32 %s37, %s33
    %s154 = ssub.s32 %s152, %s153
    %p155 = scmp.eq.s32.totalorder %s154, 0
    %s157 = sadd.s32 %s156, 1
    %s158 = scalar_select %p155, %s156, %s157
    %p161 = pneg %p155
    %p162 = scmp.eq.s32.totalorder %s11, 3
    %p163 = por %p161, %p162
    %p164 = scmp.ne.s32.totalorder %s156, %s159
    %p165 = scmp.eq.s32.totalorder %s11, 0
    %p166 = por %p164, %p165
    %p167 = scmp.ne.s32.totalorder %s156, %s159
    %p168 = scmp.eq.s32.totalorder %s16, 3
    %p169 = por %p167, %p168
    %p170 = scmp.ne.s32.totalorder %s159, %s160
    %p171 = scmp.eq.s32.totalorder %s16, 0
    %p172 = por %p170, %p171
    %p173 = scmp.ne.s32.totalorder %s159, %s160
    %p174 = scmp.eq.s32.totalorder %s17, 3
    %p175 = por %p173, %p174
    %p177 = scmp.ne.s32.totalorder %s160, %s176
    %p178 = scmp.eq.s32.totalorder %s17, 0
    %p179 = por %p177, %p178
    %p180 = scmp.le.s32.totalorder 1, %s11
    %p181 = scmp.lt.s32.totalorder %s11, 5
    %p182 = pnand %p180, %p181
    %p183 = pneg %p182
    // Predicated region
    $region9: #{generator_forward.13} parent=5 // pred_check
      _
    $region10: #{generator_forward.13} parent=5 // pred_check_branch
      %185 = sbr.rel (%p182) target = $region12
    $region11: #{generator_forward.13} parent=5 // pred_region
      %s186 = ssub.s32 %s11, 1
    $region12: #{generator_forward.13} parent=5 // pred_fallthru
      _
    %p187 = scmp.lt.s32.totalorder %s11, 4
    // Predicated region
    $region13: #{generator_forward.13} parent=5 // pred_check
      %p188 = pneg %p187
    $region14: #{generator_forward.13} parent=5 // pred_check_branch
      %190 = sbr.rel (%p188) target = $region16
    $region15: #{generator_forward.13} parent=5 // pred_region
      // Predicated region
      $region17: #{generator_forward.13} parent=15 // pred_check
        %p191 = pneg %p52
      $region18: #{generator_forward.13} parent=15 // pred_check_branch
        %193 = sbr.rel (%p191) target = $region20
      $region19: #{generator_forward.13} parent=15 // pred_region
        %p194 = scmp.lt.s32.totalorder %s18, 3
        %s195 = scalar_select %p194, %s18, 3
        %p196 = scmp.lt.s32.totalorder %s20, 0
        %s197 = scalar_select %p196, %s20, 0
        %s198 = smul.addr %s195, 2
        %s199 = sadd.s32 %s197, %s198
        %s200 = smul.addr %s199, 4
        %s201 = scalar_lea.vmem %s0, %s200
      $region20: #{generator_forward.13} parent=15 // pred_fallthru
        _
      // Predicated region
      $region21: #{generator_forward.13} parent=15 // pred_check
        %p202 = pneg %p82
      $region22: #{generator_forward.13} parent=15 // pred_check_branch
        %204 = sbr.rel (%p202) target = $region24
      $region23: #{generator_forward.13} parent=15 // pred_region
        %s205 = smul.u32 16, %s20
        %p206 = scmp.lt.s32.totalorder %s18, 3
        %s207 = scalar_select %p206, %s18, 3
        %p208 = scmp.lt.s32.totalorder %s205, 15
        %s209 = scalar_select %p208, %s205, 15
        %p210 = scmp.lt.s32.totalorder %s19, 0
        %s211 = scalar_select %p210, %s19, 0
        %s212 = sadd.s32 %s211, %s209
        %s213 = smul.addr %s207, 16
        %s214 = sadd.s32 %s212, %s213
        %s215 = smul.addr %s214, 4
        %s216 = scalar_lea.vmem %s1, %s215
        %s217 = smul.u32 16, %s20
      $region24: #{generator_forward.13} parent=15 // pred_fallthru
        _
    $region16: #{generator_forward.13} parent=5 // pred_fallthru
      _
    %p218 = scmp.le.s32.totalorder 1, %s11
    %p219 = scmp.lt.s32.totalorder %s11, 5
    %p220 = pnand %p218, %p219
    %p221 = pneg %p220
    // Predicated region
    $region25: #{generator_forward.13} parent=5 // pred_check
      _
    $region26: #{generator_forward.13} parent=5 // pred_check_branch
      %223 = sbr.rel (%p220) target = $region28
    $region27: #{generator_forward.13} parent=5 // pred_region
      %s224 = ssub.s32 %s11, 1
      %p225 = scmp.lt.s32.totalorder %s21, 3
      %s226 = scalar_select %p225, %s21, 3
      %p227 = scmp.lt.s32.totalorder %s23, 0
      %s228 = scalar_select %p227, %s23, 0
      %s229 = smul.addr %s226, 2
      %s230 = sadd.s32 %s228, %s229
      %s231 = smul.addr %s230, 4
      %s232 = scalar_lea.vmem %s0, %s231
      %p233 = pneg %p58
      %p234 = pneg %p55
      %s235 = smul.u32 16, %s23
      %p236 = scmp.lt.s32.totalorder %s21, 3
      %s237 = scalar_select %p236, %s21, 3
      %p238 = scmp.lt.s32.totalorder %s235, 15
      %s239 = scalar_select %p238, %s235, 15
      %p240 = scmp.lt.s32.totalorder %s22, 0
      %s241 = scalar_select %p240, %s22, 0
      %s242 = sadd.s32 %s241, %s239
      %s243 = smul.addr %s237, 16
      %s244 = sadd.s32 %s242, %s243
      %s245 = smul.addr %s244, 4
      %s246 = scalar_lea.vmem %s1, %s245
      %p247 = pneg %p88
      %p248 = pneg %p85
      %p249 = pneg %p116
      %p250 = pneg %p113
      %p251 = scmp.lt.s32.totalorder %s21, 3
      %s252 = scalar_select %p251, %s21, 3
      %p253 = scmp.lt.s32.totalorder %s22, 0
      %s254 = scalar_select %p253, %s22, 0
      %s255 = smul.addr %s252, 2
      %s256 = sadd.s32 %s254, %s255
      %s257 = smul.addr %s256, 4
      %s258 = scalar_lea.vmem %s2, %s257
      %p259 = pneg %p144
      %p260 = pneg %p141
      %s261 = sadd.s32 %s21, %s22
      %p262 = scmp.lt.s32.totalorder %s261, 3
      %s263 = scalar_select %p262, %s261, 3
      %s264 = smul.addr %s263, 2
      %s265 = smul.addr %s264, 8
      %s266 = scalar_lea.vmem %s3, %s265
      %p267 = pneg %p172
      %p268 = pneg %p169
      %s269 = sadd.s32 %s21, %s22
      %p270 = scmp.lt.s32.totalorder %s269, 3
      %s271 = scalar_select %p270, %s269, 3
      %s272 = smul.addr %s271, 2
      %s273 = smul.addr %s272, 8
      %s274 = scalar_lea.vmem %s4, %s273
      %p275 = scmp.lt.s32.totalorder %s21, 3
      %s276 = scalar_select %p275, %s21, 3
      %p277 = scmp.lt.s32.totalorder %s23, 0
      %s278 = scalar_select %p277, %s23, 0
      %s279 = smul.addr %s276, 2
      %s280 = sadd.s32 %s278, %s279
      %s281 = smul.addr %s280, 4
      %s282 = scalar_lea.vmem %s0, %s281
      %s283 = smul.u32 16, %s23
      %p284 = scmp.lt.s32.totalorder %s21, 3
      %s285 = scalar_select %p284, %s21, 3
      %p286 = scmp.lt.s32.totalorder %s283, 15
      %s287 = scalar_select %p286, %s283, 15
      %p288 = scmp.lt.s32.totalorder %s22, 0
      %s289 = scalar_select %p288, %s22, 0
      %s290 = sadd.s32 %s289, %s287
      %s291 = smul.addr %s285, 16
      %s292 = sadd.s32 %s290, %s291
      %s293 = smul.addr %s292, 4
      %s294 = scalar_lea.vmem %s1, %s293
      %s295 = smul.u32 16, %s23
      %p296 = scmp.lt.s32.totalorder %s21, 3
      %s297 = scalar_select %p296, %s21, 3
      %p298 = scmp.lt.s32.totalorder %s22, 0
      %s299 = scalar_select %p298, %s22, 0
      %s300 = smul.addr %s297, 2
      %s301 = sadd.s32 %s299, %s300
      %s302 = smul.addr %s301, 4
      %s303 = scalar_lea.vmem %s2, %s302
      %s304 = sadd.s32 %s21, %s22
      %p305 = scmp.lt.s32.totalorder %s304, 3
      %s306 = scalar_select %p305, %s304, 3
      %s307 = smul.addr %s306, 2
      %s308 = smul.addr %s307, 8
      %s309 = scalar_lea.vmem %s3, %s308
      %s310 = sadd.s32 %s21, %s22
      %s311 = sadd.s32 %s21, %s22
      %p312 = scmp.lt.s32.totalorder %s311, 3
      %s313 = scalar_select %p312, %s311, 3
      %s314 = smul.addr %s313, 2
      %s315 = smul.addr %s314, 8
      %s316 = scalar_lea.vmem %s4, %s315
      %s317 = sadd.s32 %s21, %s22
      %p319 = scmp.eq.s32.totalorder %s23, 0
      // Predicated region
      $region29: #{generator_forward.13} parent=27 // pred_check
        %p320 = pneg %p319
      $region30: #{generator_forward.13} parent=27 // pred_check_branch
        %322 = sbr.rel (%p320) target = $region32
      $region31: #{generator_forward.13} parent=27 // pred_region
        %323 = vst [vmem:[#allocation2] sm:$0xff] 0.0
        %324 = vst [vmem:[#allocation2 + $0x8] sm:$0xff] 0.0
      $region32: #{generator_forward.13} parent=27 // pred_fallthru
        _
      %v325 = vld [vmem:[#allocation2] sm:$0xff]
      %v326 = vld [vmem:[#allocation2 + $0x8] sm:$0xff]
      %v327 = vld [vmem:[%s282] sm:$0xf]
      %v328 = vld [vmem:[%s282 + $0x4] sm:$0xf]
      %v329 = vld [vmem:[%s294] sm:$0xf]
      %v330 = vld [vmem:[%s294 + $0x4] sm:$0xf]
      %v331 = vld [vmem:[%s294 + $0x8] sm:$0xf]
      %v332 = vld [vmem:[%s294 + $0xc] sm:$0xf]
      %v333 = vld [vmem:[%s294 + $0x10] sm:$0xf]
      %v334 = vld [vmem:[%s294 + $0x14] sm:$0xf]
      %v335 = vld [vmem:[%s294 + $0x18] sm:$0xf]
      %v336 = vld [vmem:[%s294 + $0x1c] sm:$0xf]
      %v337 = vld [vmem:[%s294 + $0x20] sm:$0xf]
      %v338 = vld [vmem:[%s294 + $0x24] sm:$0xf]
      %v339 = vld [vmem:[%s294 + $0x28] sm:$0xf]
      %v340 = vld [vmem:[%s294 + $0x2c] sm:$0xf]
      %v341 = vld [vmem:[%s294 + $0x30] sm:$0xf]
      %v342 = vld [vmem:[%s294 + $0x34] sm:$0xf]
      %v343 = vld [vmem:[%s294 + $0x38] sm:$0xf]
      %v344 = vld [vmem:[%s294 + $0x3c] sm:$0xf]
      %v347 = vunpack.c.l.b16 %v327
      %v348 = vunpack.c.l.b16 %v328
      %v349 = vpack.c.b16 %v348, %v347
      %v367 = vunpack.c.l.b16 %v329
      %v368 = vunpack.c.l.b16 %v330
      %v369 = vunpack.c.l.b16 %v331
      %v370 = vunpack.c.l.b16 %v332
      %v371 = vunpack.c.l.b16 %v333
      %v372 = vunpack.c.l.b16 %v334
      %v373 = vunpack.c.l.b16 %v335
      %v374 = vunpack.c.l.b16 %v336
      %v375 = vunpack.c.l.b16 %v337
      %v376 = vunpack.c.l.b16 %v338
      %v377 = vunpack.c.l.b16 %v339
      %v378 = vunpack.c.l.b16 %v340
      %v379 = vunpack.c.l.b16 %v341
      %v380 = vunpack.c.l.b16 %v342
      %v381 = vunpack.c.l.b16 %v343
      %v382 = vunpack.c.l.b16 %v344
      %v383 = vpack.c.b16 %v368, %v367
      %v384 = vpack.c.b16 %v370, %v369
      %v385 = vpack.c.b16 %v372, %v371
      %v386 = vpack.c.b16 %v374, %v373
      %v387 = vpack.c.b16 %v376, %v375
      %v388 = vpack.c.b16 %v378, %v377
      %v389 = vpack.c.b16 %v380, %v379
      %v390 = vpack.c.b16 %v382, %v381
      %399 = vmatprep.subr.bf16.mxu0 0
      %400 = vmatpush1.bf16.msra.mxu0 %v383
      %401 = vmatprep.subr.bf16.mxu0 0
      %402 = vmatpush1.bf16.msra.mxu0 %v384
      %403 = vmatprep.subr.bf16.mxu0 0
      %404 = vmatpush1.bf16.msra.mxu0 %v385
      %405 = vmatprep.subr.bf16.mxu0 0
      %406 = vmatpush1.bf16.msra.mxu0 %v386
      %407 = vmatprep.subr.bf16.mxu0 0
      %408 = vmatpush1.bf16.msra.mxu0 %v387
      %409 = vmatprep.subr.bf16.mxu0 0
      %410 = vmatpush1.bf16.msra.mxu0 %v388
      %411 = vmatprep.subr.bf16.mxu0 0
      %412 = vmatpush1.bf16.msra.mxu0 %v389
      %413 = vmatprep.subr.bf16.mxu0 0
      %414 = vmatpush1.bf16.msra.mxu0 %v390
      %415 = vmatprep.subr.bf16.mxu0 0
      %416 = vmatpush1.bf16.msra.mxu0 0
      %417 = vmatprep.subr.bf16.mxu0 0
      %418 = vmatpush1.bf16.msra.mxu0 0
      %419 = vmatprep.subr.bf16.mxu0 0
      %420 = vmatpush1.bf16.msra.mxu0 0
      %421 = vmatprep.subr.bf16.mxu0 0
      %422 = vmatpush1.bf16.msra.mxu0 0
      %423 = vmatprep.subr.bf16.mxu0 0
      %424 = vmatpush1.bf16.msra.mxu0 0
      %425 = vmatprep.subr.bf16.mxu0 0
      %426 = vmatpush1.bf16.msra.mxu0 0
      %427 = vmatprep.subr.bf16.mxu0 0
      %428 = vmatpush1.bf16.msra.mxu0 0
      %429 = vmatprep.subr.bf16.mxu0 0
      %430 = vmatpush1.bf16.msra.mxu0 0
      %431 = vmatprep.mubr.bf16.mxu0 0
      %432 = vmatmul.mubr.bf16.gmra.mrb[0].mxu0 %v349
      %v433 = vpop.f32.mrb[0].mxu0
      %v434 = vadd.f32 0.0, %v433
      %v435 = vpop.f32.mrb[0].mxu0
      %v436 = vpop.f32.mrb[0].mxu0
      %v437 = vadd.f32 0.0, %v436
      %v438 = vpop.f32.mrb[0].mxu0
      %439 = vdwg.mxu0
      %v440 = vadd.f32 %v325, %v434
      %v441 = vadd.f32 %v326, %v437
      %442 = vst [vmem:[#allocation2] sm:$0xff] %v440
      %443 = vst [vmem:[#allocation2 + $0x8] sm:$0xff] %v441
      // Predicated region
      $region33: #{generator_forward.13} parent=27 // pred_check
        %p444 = pneg %p319
      $region34: #{generator_forward.13} parent=27 // pred_check_branch
        %446 = sbr.rel (%p444) target = $region36
      $region35: #{generator_forward.13} parent=27 // pred_region
        %v447 = vld [vmem:[#allocation2] sm:$0xff]
        %v448 = vld [vmem:[#allocation2 + $0x8] sm:$0xff]
        %v449 = vpack.c.bf16 %v448, %v447
        %v451 = vunpack.c.l.b16 %v449
        %v452 = vunpack.c.h.b16 %v449
        %v453 = vpack.c.b16 %v451, %v451
        %v454 = vpack.c.b16 %v452, %v452
        %457 = vst [vmem:[%s303] sm:$0xf] %v453
        %458 = vst [vmem:[%s303 + $0x4] sm:$0xf] %v454
        %459 = vadd.xlane.f32.xlu0 %v447
        %v460 = vpop.xlane.xlu0 %459
        %461 = vadd.xlane.f32.xlu0 %v448
        %v462 = vpop.xlane.xlu0 %461
        %vm463 = vcmask 7168
        %464 = vst.msk [vmem:[%s309] sm:$0xff] %vm463, %v460
        %465 = vst.msk [vmem:[%s309 + $0x8] sm:$0xff] %vm463, %v462
        %v466 = vmul.f32 %v447, %v447
        %v467 = vmul.f32 %v448, %v448
        %468 = vadd.xlane.f32.xlu0 %v466
        %v469 = vpop.xlane.xlu0 %468
        %470 = vadd.xlane.f32.xlu0 %v467
        %v471 = vpop.xlane.xlu0 %470
        %472 = vst.msk [vmem:[%s316] sm:$0xff] %vm463, %v469
        %473 = vst.msk [vmem:[%s316 + $0x8] sm:$0xff] %vm463, %v471
      $region36: #{generator_forward.13} parent=27 // pred_fallthru
        _
      %p474 = scmp.lt.s32.totalorder %s21, 3
      %s475 = scalar_select %p474, %s21, 3
      %p476 = scmp.lt.s32.totalorder %s22, 0
      %s477 = scalar_select %p476, %s22, 0
      %s478 = smul.addr %s475, 2
      %s479 = sadd.s32 %s477, %s478
      %s480 = smul.addr %s479, 4
      %s481 = scalar_lea.vmem %s2, %s480
      %s482 = sadd.s32 %s21, %s22
      %p483 = scmp.lt.s32.totalorder %s482, 3
      %s484 = scalar_select %p483, %s482, 3
      %s485 = smul.addr %s484, 2
      %s486 = smul.addr %s485, 8
      %s487 = scalar_lea.vmem %s3, %s486
      %s488 = sadd.s32 %s21, %s22
      %p489 = scmp.lt.s32.totalorder %s488, 3
      %s490 = scalar_select %p489, %s488, 3
      %s491 = smul.addr %s490, 2
      %s492 = smul.addr %s491, 8
      %s493 = scalar_lea.vmem %s4, %s492
      // Predicated region
      $region37: #{generator_forward.13} parent=27 // pred_check
        %p494 = pneg %p113
      $region38: #{generator_forward.13} parent=27 // pred_check_branch
        %496 = sbr.rel (%p494) target = $region40
      $region39: #{generator_forward.13} parent=27 // pred_region
        _
      $region40: #{generator_forward.13} parent=27 // pred_fallthru
        _
      // Predicated region
      $region41: #{generator_forward.13} parent=27 // pred_check
        %p497 = pneg %p141
      $region42: #{generator_forward.13} parent=27 // pred_check_branch
        %499 = sbr.rel (%p497) target = $region44
      $region43: #{generator_forward.13} parent=27 // pred_region
        %s500 = sadd.s32 %s21, %s22
      $region44: #{generator_forward.13} parent=27 // pred_fallthru
        _
      // Predicated region
      $region45: #{generator_forward.13} parent=27 // pred_check
        %p501 = pneg %p169
      $region46: #{generator_forward.13} parent=27 // pred_check_branch
        %503 = sbr.rel (%p501) target = $region48
      $region47: #{generator_forward.13} parent=27 // pred_region
        %s504 = sadd.s32 %s21, %s22
      $region48: #{generator_forward.13} parent=27 // pred_fallthru
        _
    $region28: #{generator_forward.13} parent=5 // pred_fallthru
      _
    %p505 = scmp.le.s32.totalorder 2, %s11
    // Predicated region
    $region49: #{generator_forward.13} parent=5 // pred_check
      %p506 = pneg %p505
    $region50: #{generator_forward.13} parent=5 // pred_check_branch
      %508 = sbr.rel (%p506) target = $region52
    $region51: #{generator_forward.13} parent=5 // pred_region
      %s509 = ssub.s32 %s11, 2
      // Predicated region
      $region53: #{generator_forward.13} parent=51 // pred_check
        %p510 = pneg %p119
      $region54: #{generator_forward.13} parent=51 // pred_check_branch
        %512 = sbr.rel (%p510) target = $region56
      $region55: #{generator_forward.13} parent=51 // pred_region
        %p513 = scmp.lt.s32.totalorder %s24, 3
        %s514 = scalar_select %p513, %s24, 3
        %p515 = scmp.lt.s32.totalorder %s25, 0
        %s516 = scalar_select %p515, %s25, 0
        %s517 = smul.addr %s514, 2
        %s518 = sadd.s32 %s516, %s517
        %s519 = smul.addr %s518, 4
        %s520 = scalar_lea.vmem %s2, %s519
      $region56: #{generator_forward.13} parent=51 // pred_fallthru
        _
      // Predicated region
      $region57: #{generator_forward.13} parent=51 // pred_check
        %p521 = pneg %p147
      $region58: #{generator_forward.13} parent=51 // pred_check_branch
        %523 = sbr.rel (%p521) target = $region60
      $region59: #{generator_forward.13} parent=51 // pred_region
        %s524 = sadd.s32 %s24, %s25
        %p525 = scmp.lt.s32.totalorder %s524, 3
        %s526 = scalar_select %p525, %s524, 3
        %s527 = smul.addr %s526, 2
        %s528 = smul.addr %s527, 8
        %s529 = scalar_lea.vmem %s3, %s528
      $region60: #{generator_forward.13} parent=51 // pred_fallthru
        _
      // Predicated region
      $region61: #{generator_forward.13} parent=51 // pred_check
        %p530 = pneg %p175
      $region62: #{generator_forward.13} parent=51 // pred_check_branch
        %532 = sbr.rel (%p530) target = $region64
      $region63: #{generator_forward.13} parent=51 // pred_region
        %s533 = sadd.s32 %s24, %s25
        %p534 = scmp.lt.s32.totalorder %s533, 3
        %s535 = scalar_select %p534, %s533, 3
        %s536 = smul.addr %s535, 2
        %s537 = smul.addr %s536, 8
        %s538 = scalar_lea.vmem %s4, %s537
      $region64: #{generator_forward.13} parent=51 // pred_fallthru
        _
    $region52: #{generator_forward.13} parent=5 // pred_fallthru
      _
  $region6: #{generator_forward.13} parent=0 // loop_footer
    %s15 = sadd.s32 1, %s11
  $region7: #{generator_forward.13} parent=0 // loop_footer_branch
    %10 = sbr.rel target = $region3
  $region8: #{generator_forward.13} parent=0 // loop_exit
    _

// kernel: generator_forward.14
$region0: #{generator_forward.14}
  #allocation0 [shape = 'u32[]', space=smem, size = 0x4, offset = 0x4, fixed_abs, tag = 'smem constant byte address 0x4 - core index']
  #allocation1 [shape = 'u32[144,128]{1,0:T(1,128)}', space=vmem, size = 0x12000, scoped, tag = 'internal scratch']
  %s0 = inlined_call_operand.vmem [shape: bf16[4,16,128], index: 0, kind: input, shape index: {}]
  %s1 = inlined_call_operand.vmem [shape: f32[1,16,1], index: 1, kind: input, shape index: {}]
  %s2 = inlined_call_operand.vmem [shape: f32[1,16,1], index: 2, kind: input, shape index: {}]
  %s3 = inlined_call_operand.vmem [shape: bf16[4,16,128], index: 3, kind: output, shape index: {}]
  %s4 = sld [smem:[#allocation0]]
  $region45: #{generator_forward.14} parent=0
    _
  %s6 = ssub.s32 1, %s4
  %s7 = scalar_select 0, %s6, %s4
  loop: start=0, step=1, limit=6
  $region2: #{generator_forward.14} parent=0 // loop_pre_header
    _
  $region3: #{generator_forward.14} parent=0 // loop_header
    %s9 = sphi 0, %s13
    %p10 = scmp.ge.s32.totalorder %s9, 6
    %s16 = sphi 0, %s28
    %s17 = sphi 0, %s24
    %s18 = sphi 0, %s16
    %s19 = sphi 0, %s17
    %s20 = sphi 0, %s18
    %s21 = sphi 0, %s19
    %s33 = sphi 0, %s35
    %s36 = sphi 0, %s33
    %s37 = sphi 0, %s36
    %s53 = sphi 0, %s37
    %s57 = sphi 0, %s57
    %s59 = sphi 0, %s57
    %s60 = sphi 0, %s59
    %s74 = sphi 0, %s60
    %s78 = sphi 0, %s78
    %s80 = sphi 0, %s78
    %s81 = sphi 0, %s80
    %s95 = sphi 0, %s81
    %s103 = sphi 0, %s105
    %s106 = sphi 0, %s103
    %s107 = sphi 0, %s106
    %s123 = sphi 0, %s107
  $region4: #{generator_forward.14} parent=0 // loop_header_branch
    %12 = sbr.rel (%p10) target = $region8
  $region5: #{generator_forward.14} parent=0 // loop_body
    %s14 = ssub.s32 %s9, 1
    %s15 = ssub.s32 %s9, 2
    %s22 = sadd.s32 1, %s17
    %p23 = scmp.ge.s32.totalorder %s22, 1
    %s24 = scalar_select %p23, 0, %s22
    %s25 = sadd.s32 1, %s16
    %s26 = scalar_select %p23, %s25, %s16
    %p27 = scmp.ge.s32.totalorder %s26, 4
    %s28 = scalar_select %p27, 0, %s26
    %s29 = ssub.s32 %s16, %s28
    %s30 = ssub.s32 %s17, %s24
    %s31 = sor.u32 %s29, %s30
    %p32 = scmp.eq.s32.totalorder %s31, 0
    %s34 = sadd.s32 %s33, 1
    %s35 = scalar_select %p32, %s33, %s34
    %p38 = pneg %p32
    %p39 = scmp.eq.s32.totalorder %s9, 3
    %p40 = por %p38, %p39
    %p41 = scmp.ne.s32.totalorder %s33, %s36
    %p42 = scmp.eq.s32.totalorder %s9, 0
    %p43 = por %p41, %p42
    %p44 = scmp.ne.s32.totalorder %s33, %s36
    %p45 = scmp.eq.s32.totalorder %s14, 3
    %p46 = por %p44, %p45
    %p47 = scmp.ne.s32.totalorder %s36, %s37
    %p48 = scmp.eq.s32.totalorder %s14, 0
    %p49 = por %p47, %p48
    %p50 = scmp.ne.s32.totalorder %s36, %s37
    %p51 = scmp.eq.s32.totalorder %s15, 3
    %p52 = por %p50, %p51
    %p54 = scmp.ne.s32.totalorder %s37, %s53
    %p55 = scmp.eq.s32.totalorder %s15, 0
    %p56 = por %p54, %p55
    %s58 = sadd.s32 %s57, 1
    %p61 = scmp.eq.s32.totalorder %s9, 3
    %p62 = scmp.ne.s32.totalorder %s57, %s59
    %p63 = scmp.eq.s32.totalorder %s9, 0
    %p64 = por %p62, %p63
    %p65 = scmp.ne.s32.totalorder %s57, %s59
    %p66 = scmp.eq.s32.totalorder %s14, 3
    %p67 = por %p65, %p66
    %p68 = scmp.ne.s32.totalorder %s59, %s60
    %p69 = scmp.eq.s32.totalorder %s14, 0
    %p70 = por %p68, %p69
    %p71 = scmp.ne.s32.totalorder %s59, %s60
    %p72 = scmp.eq.s32.totalorder %s15, 3
    %p73 = por %p71, %p72
    %p75 = scmp.ne.s32.totalorder %s60, %s74
    %p76 = scmp.eq.s32.totalorder %s15, 0
    %p77 = por %p75, %p76
    %s79 = sadd.s32 %s78, 1
    %p82 = scmp.eq.s32.totalorder %s9, 3
    %p83 = scmp.ne.s32.totalorder %s78, %s80
    %p84 = scmp.eq.s32.totalorder %s9, 0
    %p85 = por %p83, %p84
    %p86 = scmp.ne.s32.totalorder %s78, %s80
    %p87 = scmp.eq.s32.totalorder %s14, 3
    %p88 = por %p86, %p87
    %p89 = scmp.ne.s32.totalorder %s80, %s81
    %p90 = scmp.eq.s32.totalorder %s14, 0
    %p91 = por %p89, %p90
    %p92 = scmp.ne.s32.totalorder %s80, %s81
    %p93 = scmp.eq.s32.totalorder %s15, 3
    %p94 = por %p92, %p93
    %p96 = scmp.ne.s32.totalorder %s81, %s95
    %p97 = scmp.eq.s32.totalorder %s15, 0
    %p98 = por %p96, %p97
    %s99 = ssub.s32 %s16, %s28
    %s100 = ssub.s32 %s17, %s24
    %s101 = sor.u32 %s99, %s100
    %p102 = scmp.eq.s32.totalorder %s101, 0
    %s104 = sadd.s32 %s103, 1
    %s105 = scalar_select %p102, %s103, %s104
    %p108 = pneg %p102
    %p109 = scmp.eq.s32.totalorder %s9, 3
    %p110 = por %p108, %p109
    %p111 = scmp.ne.s32.totalorder %s103, %s106
    %p112 = scmp.eq.s32.totalorder %s9, 0
    %p113 = por %p111, %p112
    %p114 = scmp.ne.s32.totalorder %s103, %s106
    %p115 = scmp.eq.s32.totalorder %s14, 3
    %p116 = por %p114, %p115
    %p117 = scmp.ne.s32.totalorder %s106, %s107
    %p118 = scmp.eq.s32.totalorder %s14, 0
    %p119 = por %p117, %p118
    %p120 = scmp.ne.s32.totalorder %s106, %s107
    %p121 = scmp.eq.s32.totalorder %s15, 3
    %p122 = por %p120, %p121
    %p124 = scmp.ne.s32.totalorder %s107, %s123
    %p125 = scmp.eq.s32.totalorder %s15, 0
    %p126 = por %p124, %p125
    %p127 = scmp.le.s32.totalorder 1, %s9
    %p128 = scmp.lt.s32.totalorder %s9, 5
    %p129 = pnand %p127, %p128
    %p130 = pneg %p129
    // Predicated region
    $region9: #{generator_forward.14} parent=5 // pred_check
      _
    $region10: #{generator_forward.14} parent=5 // pred_check_branch
      %132 = sbr.rel (%p129) target = $region12
    $region11: #{generator_forward.14} parent=5 // pred_region
      %s133 = ssub.s32 %s9, 1
      // Predicated region
      $region13: #{generator_forward.14} parent=11 // pred_check
        %p134 = pneg %p70
      $region14: #{generator_forward.14} parent=11 // pred_check_branch
        %136 = sbr.rel (%p134) target = $region16
      $region15: #{generator_forward.14} parent=11 // pred_region
        _
      $region16: #{generator_forward.14} parent=11 // pred_fallthru
        _
      // Predicated region
      $region17: #{generator_forward.14} parent=11 // pred_check
        %p137 = pneg %p91
      $region18: #{generator_forward.14} parent=11 // pred_check_branch
        %139 = sbr.rel (%p137) target = $region20
      $region19: #{generator_forward.14} parent=11 // pred_region
        _
      $region20: #{generator_forward.14} parent=11 // pred_fallthru
        _
    $region12: #{generator_forward.14} parent=5 // pred_fallthru
      _
    %p140 = scmp.lt.s32.totalorder %s9, 4
    // Predicated region
    $region21: #{generator_forward.14} parent=5 // pred_check
      %p141 = pneg %p140
    $region22: #{generator_forward.14} parent=5 // pred_check_branch
      %143 = sbr.rel (%p141) target = $region24
    $region23: #{generator_forward.14} parent=5 // pred_region
      // Predicated region
      $region25: #{generator_forward.14} parent=23 // pred_check
        %p144 = pneg %p43
      $region26: #{generator_forward.14} parent=23 // pred_check_branch
        %146 = sbr.rel (%p144) target = $region28
      $region27: #{generator_forward.14} parent=23 // pred_region
        %p147 = scmp.lt.s32.totalorder %s16, 3
        %s148 = scalar_select %p147, %s16, 3
        %p149 = scmp.lt.s32.totalorder %s17, 0
        %s150 = scalar_select %p149, %s17, 0
        %s151 = smul.addr %s148, 2
        %s152 = sadd.s32 %s150, %s151
        %s153 = smul.addr %s152, 4
        %s154 = scalar_lea.vmem %s0, %s153
      $region28: #{generator_forward.14} parent=23 // pred_fallthru
        _
    $region24: #{generator_forward.14} parent=5 // pred_fallthru
      _
    %p155 = scmp.le.s32.totalorder 1, %s9
    %p156 = scmp.lt.s32.totalorder %s9, 5
    %p157 = pnand %p155, %p156
    %p158 = pneg %p157
    // Predicated region
    $region29: #{generator_forward.14} parent=5 // pred_check
      _
    $region30: #{generator_forward.14} parent=5 // pred_check_branch
      %160 = sbr.rel (%p157) target = $region32
    $region31: #{generator_forward.14} parent=5 // pred_region
      %s161 = ssub.s32 %s9, 1
      %p162 = scmp.lt.s32.totalorder %s18, 3
      %s163 = scalar_select %p162, %s18, 3
      %p164 = scmp.lt.s32.totalorder %s19, 0
      %s165 = scalar_select %p164, %s19, 0
      %s166 = smul.addr %s163, 2
      %s167 = sadd.s32 %s165, %s166
      %s168 = smul.addr %s167, 4
      %s169 = scalar_lea.vmem %s0, %s168
      %p170 = pneg %p49
      %p171 = pneg %p46
      %p172 = pneg %p70
      %p173 = pneg %p67
      %p174 = pneg %p91
      %p175 = pneg %p88
      %p176 = pneg %p119
      %p177 = pneg %p116
      %p178 = scmp.lt.s32.totalorder %s18, 3
      %s179 = scalar_select %p178, %s18, 3
      %p180 = scmp.lt.s32.totalorder %s19, 0
      %s181 = scalar_select %p180, %s19, 0
      %s182 = smul.addr %s179, 2
      %s183 = sadd.s32 %s181, %s182
      %s184 = smul.addr %s183, 4
      %s185 = scalar_lea.vmem %s3, %s184
      %p186 = scmp.lt.s32.totalorder %s18, 3
      %s187 = scalar_select %p186, %s18, 3
      %p188 = scmp.lt.s32.totalorder %s19, 0
      %s189 = scalar_select %p188, %s19, 0
      %s190 = smul.addr %s187, 2
      %s191 = sadd.s32 %s189, %s190
      %s192 = smul.addr %s191, 4
      %s193 = scalar_lea.vmem %s0, %s192
      %p194 = scmp.lt.s32.totalorder %s18, 3
      %s195 = scalar_select %p194, %s18, 3
      %p196 = scmp.lt.s32.totalorder %s19, 0
      %s197 = scalar_select %p196, %s19, 0
      %s198 = smul.addr %s195, 2
      %s199 = sadd.s32 %s197, %s198
      %s200 = smul.addr %s199, 4
      %s201 = scalar_lea.vmem %s3, %s200
      %v202 = vld [vmem:[%s193] sm:$0xf]
      %v203 = vld [vmem:[%s193 + $0x4] sm:$0xf]
      %v204 = vunpack.c.l.bf16 %v202
      %v205 = vunpack.c.l.bf16 %v203
      %v206 = vld [vmem:[%s1] sm:$0xff]
      %v207 = vld [vmem:[%s1 + $0x8] sm:$0xff]
      %209 = vset.pattern.permute.xlu0 0
      %210 = vperm.xlu0 %209, %v206
      %v211 = vpop.permute.xlu0 %210
      %214 = vset.pattern.permute.xlu0 0
      %215 = vperm.xlu0 %214, %v207
      %v216 = vpop.permute.xlu0 %215
      %v218 = vmul.f32 %v204, %v211
      %v219 = vmul.f32 %v205, %v216
      %v220 = vld [vmem:[%s2] sm:$0xff]
      %v221 = vld [vmem:[%s2 + $0x8] sm:$0xff]
      %223 = vset.pattern.permute.xlu0 0
      %224 = vperm.xlu0 %223, %v220
      %v225 = vpop.permute.xlu0 %224
      %228 = vset.pattern.permute.xlu0 0
      %229 = vperm.xlu0 %228, %v221
      %v230 = vpop.permute.xlu0 %229
      %v232 = vadd.f32 %v218, %v225
      %v233 = vadd.f32 %v219, %v230
      %v234 = vmax.f32 %v232, 0.0
      %v235 = vmax.f32 %v233, 0.0
      %v236 = vpack.c.bf16 %v235, %v234
      %v238 = vunpack.c.l.b16 %v236
      %v239 = vunpack.c.h.b16 %v236
      %v240 = vpack.c.b16 %v238, %v238
      %v241 = vpack.c.b16 %v239, %v239
      %244 = vst [vmem:[%s201] sm:$0xf] %v240
      %245 = vst [vmem:[%s201 + $0x4] sm:$0xf] %v241
      %p246 = scmp.lt.s32.totalorder %s18, 3
      %s247 = scalar_select %p246, %s18, 3
      %p248 = scmp.lt.s32.totalorder %s19, 0
      %s249 = scalar_select %p248, %s19, 0
      %s250 = smul.addr %s247, 2
      %s251 = sadd.s32 %s249, %s250
      %s252 = smul.addr %s251, 4
      %s253 = scalar_lea.vmem %s3, %s252
      // Predicated region
      $region33: #{generator_forward.14} parent=31 // pred_check
        %p254 = pneg %p116
      $region34: #{generator_forward.14} parent=31 // pred_check_branch
        %256 = sbr.rel (%p254) target = $region36
      $region35: #{generator_forward.14} parent=31 // pred_region
        _
      $region36: #{generator_forward.14} parent=31 // pred_fallthru
        _
    $region32: #{generator_forward.14} parent=5 // pred_fallthru
      _
    %p257 = scmp.le.s32.totalorder 2, %s9
    // Predicated region
    $region37: #{generator_forward.14} parent=5 // pred_check
      %p258 = pneg %p257
    $region38: #{generator_forward.14} parent=5 // pred_check_branch
      %260 = sbr.rel (%p258) target = $region40
    $region39: #{generator_forward.14} parent=5 // pred_region
      %s261 = ssub.s32 %s9, 2
      // Predicated region
      $region41: #{generator_forward.14} parent=39 // pred_check
        %p262 = pneg %p122
      $region42: #{generator_forward.14} parent=39 // pred_check_branch
        %264 = sbr.rel (%p262) target = $region44
      $region43: #{generator_forward.14} parent=39 // pred_region
        %p265 = scmp.lt.s32.totalorder %s20, 3
        %s266 = scalar_select %p265, %s20, 3
        %p267 = scmp.lt.s32.totalorder %s21, 0
        %s268 = scalar_select %p267, %s21, 0
        %s269 = smul.addr %s266, 2
        %s270 = sadd.s32 %s268, %s269
        %s271 = smul.addr %s270, 4
        %s272 = scalar_lea.vmem %s3, %s271
      $region44: #{generator_forward.14} parent=39 // pred_fallthru
        _
    $region40: #{generator_forward.14} parent=5 // pred_fallthru
      _
  $region6: #{generator_forward.14} parent=0 // loop_footer
    %s13 = sadd.s32 1, %s9
  $region7: #{generator_forward.14} parent=0 // loop_footer_branch
    %8 = sbr.rel target = $region3
  $region8: #{generator_forward.14} parent=0 // loop_exit
    _

// kernel: generator_forward.15
$region0: #{generator_forward.15}
  #allocation0 [shape = 'u32[]', space=smem, size = 0x4, offset = 0x4, fixed_abs, tag = 'smem constant byte address 0x4 - core index']
  #allocation1 [shape = 'u32[144,128]{1,0:T(1,128)}', space=vmem, size = 0x12000, scoped, tag = 'internal scratch']
  #allocation2 [shape = 'f32[8,512]{1,0:T(8,128)}', space=vmem, size = 0x4000, scoped, tag = 'scratch operand']
  %s0 = inlined_call_operand.vmem [shape: bf16[4,8,64], index: 0, kind: input, shape index: {}]
  %s1 = inlined_call_operand.vmem [shape: bf16[4,64,512], index: 1, kind: input, shape index: {}]
  %s2 = inlined_call_operand.vmem [shape: bf16[4,8,512], index: 2, kind: output, shape index: {0}]
  %s3 = inlined_call_operand.vmem [shape: f32[4,8,1], index: 3, kind: output, shape index: {1}]
  %s4 = inlined_call_operand.vmem [shape: f32[4,8,1], index: 4, kind: output, shape index: {2}]
  %5 = xla_tuple %s2, %s3, %s4
  %s6 = sld [smem:[#allocation0]]
  $region65: #{generator_forward.15} parent=0
    _
  %s8 = ssub.s32 1, %s6
  %s9 = scalar_select 0, %s8, %s6
  loop: start=0, step=1, limit=6
  $region2: #{generator_forward.15} parent=0 // loop_pre_header
    _
  $region3: #{generator_forward.15} parent=0 // loop_header
    %s11 = sphi 0, %s15
    %p12 = scmp.ge.s32.totalorder %s11, 6
    %s18 = sphi 0, %s37
    %s19 = sphi 0, %s33
    %s20 = sphi 0, %s29
    %s21 = sphi 0, %s18
    %s22 = sphi 0, %s19
    %s23 = sphi 0, %s20
    %s24 = sphi 0, %s21
    %s25 = sphi 0, %s22
    %s26 = sphi 0, %s23
    %s42 = sphi 0, %s44
    %s45 = sphi 0, %s42
    %s46 = sphi 0, %s45
    %s62 = sphi 0, %s46
    %s72 = sphi 0, %s74
    %s75 = sphi 0, %s72
    %s76 = sphi 0, %s75
    %s92 = sphi 0, %s76
    %s100 = sphi 0, %s102
    %s103 = sphi 0, %s100
    %s104 = sphi 0, %s103
    %s120 = sphi 0, %s104
    %s128 = sphi 0, %s130
    %s131 = sphi 0, %s128
    %s132 = sphi 0, %s131
    %s148 = sphi 0, %s132
    %s156 = sphi 0, %s158
    %s159 = sphi 0, %s156
    %s160 = sphi 0, %s159
    %s176 = sphi 0, %s160
  $region4: #{generator_forward.15} parent=0 // loop_header_branch
    %14 = sbr.rel (%p12) target = $region8
  $region5: #{generator_forward.15} parent=0 // loop_body
    %s16 = ssub.s32 %s11, 1
    %s17 = ssub.s32 %s11, 2
    %s27 = sadd.s32 1, %s20
    %p28 = scmp.ge.s32.totalorder %s27, 1
    %s29 = scalar_select %p28, 0, %s27
    %s30 = sadd.s32 1, %s19
    %s31 = scalar_select %p28, %s30, %s19
    %p32 = scmp.ge.s32.totalorder %s31, 1
    %s33 = scalar_select %p32, 0, %s31
    %s34 = sadd.s32 1, %s18
    %s35 = scalar_select %p32, %s34, %s18
    %p36 = scmp.ge.s32.totalorder %s35, 4
    %s37 = scalar_select %p36, 0, %s35
    %s38 = ssub.s32 %s18, %s37
    %s39 = ssub.s32 %s20, %s29
    %s40 = sor.u32 %s38, %s39
    %p41 = scmp.eq.s32.totalorder %s40, 0
    %s43 = sadd.s32 %s42, 1
    %s44 = scalar_select %p41, %s42, %s43
    %p47 = pneg %p41
    %p48 = scmp.eq.s32.totalorder %s11, 3
    %p49 = por %p47, %p48
    %p50 = scmp.ne.s32.totalorder %s42, %s45
    %p51 = scmp.eq.s32.totalorder %s11, 0
    %p52 = por %p50, %p51
    %p53 = scmp.ne.s32.totalorder %s42, %s45
    %p54 = scmp.eq.s32.totalorder %s16, 3
    %p55 = por %p53, %p54
    %p56 = scmp.ne.s32.totalorder %s45, %s46
    %p57 = scmp.eq.s32.totalorder %s16, 0
    %p58 = por %p56, %p57
    %p59 = scmp.ne.s32.totalorder %s45, %s46
    %p60 = scmp.eq.s32.totalorder %s17, 3
    %p61 = por %p59, %p60
    %p63 = scmp.ne.s32.totalorder %s46, %s62
    %p64 = scmp.eq.s32.totalorder %s17, 0
    %p65 = por %p63, %p64
    %s66 = ssub.s32 %s18, %s37
    %s67 = ssub.s32 %s20, %s29
    %s68 = sor.u32 %s66, %s67
    %s69 = ssub.s32 %s19, %s33
    %s70 = sor.u32 %s68, %s69
    %p71 = scmp.eq.s32.totalorder %s70, 0
    %s73 = sadd.s32 %s72, 1
    %s74 = scalar_select %p71, %s72, %s73
    %p77 = pneg %p71
    %p78 = scmp.eq.s32.totalorder %s11, 3
    %p79 = por %p77, %p78
    %p80 = scmp.ne.s32.totalorder %s72, %s75
    %p81 = scmp.eq.s32.totalorder %s11, 0
    %p82 = por %p80, %p81
    %p83 = scmp.ne.s32.totalorder %s72, %s75
    %p84 = scmp.eq.s32.totalorder %s16, 3
    %p85 = por %p83, %p84
    %p86 = scmp.ne.s32.totalorder %s75, %s76
    %p87 = scmp.eq.s32.totalorder %s16, 0
    %p88 = por %p86, %p87
    %p89 = scmp.ne.s32.totalorder %s75, %s76
    %p90 = scmp.eq.s32.totalorder %s17, 3
    %p91 = por %p89, %p90
    %p93 = scmp.ne.s32.totalorder %s76, %s92
    %p94 = scmp.eq.s32.totalorder %s17, 0
    %p95 = por %p93, %p94
    %s96 = ssub.s32 %s18, %s37
    %s97 = ssub.s32 %s19, %s33
    %s98 = sor.u32 %s96, %s97
    %p99 = scmp.eq.s32.totalorder %s98, 0
    %s101 = sadd.s32 %s100, 1
    %s102 = scalar_select %p99, %s100, %s101
    %p105 = pneg %p99
    %p106 = scmp.eq.s32.totalorder %s11, 3
    %p107 = por %p105, %p106
    %p108 = scmp.ne.s32.totalorder %s100, %s103
    %p109 = scmp.eq.s32.totalorder %s11, 0
    %p110 = por %p108, %p109
    %p111 = scmp.ne.s32.totalorder %s100, %s103
    %p112 = scmp.eq.s32.totalorder %s16, 3
    %p113 = por %p111, %p112
    %p114 = scmp.ne.s32.totalorder %s103, %s104
    %p115 = scmp.eq.s32.totalorder %s16, 0
    %p116 = por %p114, %p115
    %p117 = scmp.ne.s32.totalorder %s103, %s104
    %p118 = scmp.eq.s32.totalorder %s17, 3
    %p119 = por %p117, %p118
    %p121 = scmp.ne.s32.totalorder %s104, %s120
    %p122 = scmp.eq.s32.totalorder %s17, 0
    %p123 = por %p121, %p122
    %s124 = sadd.s32 %s18, %s19
    %s125 = sadd.s32 %s37, %s33
    %s126 = ssub.s32 %s124, %s125
    %p127 = scmp.eq.s32.totalorder %s126, 0
    %s129 = sadd.s32 %s128, 1
    %s130 = scalar_select %p127, %s128, %s129
    %p133 = pneg %p127
    %p134 = scmp.eq.s32.totalorder %s11, 3
    %p135 = por %p133, %p134
    %p136 = scmp.ne.s32.totalorder %s128, %s131
    %p137 = scmp.eq.s32.totalorder %s11, 0
    %p138 = por %p136, %p137
    %p139 = scmp.ne.s32.totalorder %s128, %s131
    %p140 = scmp.eq.s32.totalorder %s16, 3
    %p141 = por %p139, %p140
    %p142 = scmp.ne.s32.totalorder %s131, %s132
    %p143 = scmp.eq.s32.totalorder %s16, 0
    %p144 = por %p142, %p143
    %p145 = scmp.ne.s32.totalorder %s131, %s132
    %p146 = scmp.eq.s32.totalorder %s17, 3
    %p147 = por %p145, %p146
    %p149 = scmp.ne.s32.totalorder %s132, %s148
    %p150 = scmp.eq.s32.totalorder %s17, 0
    %p151 = por %p149, %p150
    %s152 = sadd.s32 %s18, %s19
    %s153 = sadd.s32 %s37, %s33
    %s154 = ssub.s32 %s152, %s153
    %p155 = scmp.eq.s32.totalorder %s154, 0
    %s157 = sadd.s32 %s156, 1
    %s158 = scalar_select %p155, %s156, %s157
    %p161 = pneg %p155
    %p162 = scmp.eq.s32.totalorder %s11, 3
    %p163 = por %p161, %p162
    %p164 = scmp.ne.s32.totalorder %s156, %s159
    %p165 = scmp.eq.s32.totalorder %s11, 0
    %p166 = por %p164, %p165
    %p167 = scmp.ne.s32.totalorder %s156, %s159
    %p168 = scmp.eq.s32.totalorder %s16, 3
    %p169 = por %p167, %p168
    %p170 = scmp.ne.s32.totalorder %s159, %s160
    %p171 = scmp.eq.s32.totalorder %s16, 0
    %p172 = por %p170, %p171
    %p173 = scmp.ne.s32.totalorder %s159, %s160
    %p174 = scmp.eq.s32.totalorder %s17, 3
    %p175 = por %p173, %p174
    %p177 = scmp.ne.s32.totalorder %s160, %s176
    %p178 = scmp.eq.s32.totalorder %s17, 0
    %p179 = por %p177, %p178
    %p180 = scmp.le.s32.totalorder 1, %s11
    %p181 = scmp.lt.s32.totalorder %s11, 5
    %p182 = pnand %p180, %p181
    %p183 = pneg %p182
    // Predicated region
    $region9: #{generator_forward.15} parent=5 // pred_check
      _
    $region10: #{generator_forward.15} parent=5 // pred_check_branch
      %185 = sbr.rel (%p182) target = $region12
    $region11: #{generator_forward.15} parent=5 // pred_region
      %s186 = ssub.s32 %s11, 1
    $region12: #{generator_forward.15} parent=5 // pred_fallthru
      _
    %p187 = scmp.lt.s32.totalorder %s11, 4
    // Predicated region
    $region13: #{generator_forward.15} parent=5 // pred_check
      %p188 = pneg %p187
    $region14: #{generator_forward.15} parent=5 // pred_check_branch
      %190 = sbr.rel (%p188) target = $region16
    $region15: #{generator_forward.15} parent=5 // pred_region
      // Predicated region
      $region17: #{generator_forward.15} parent=15 // pred_check
        %p191 = pneg %p52
      $region18: #{generator_forward.15} parent=15 // pred_check_branch
        %193 = sbr.rel (%p191) target = $region20
      $region19: #{generator_forward.15} parent=15 // pred_region
        %p194 = scmp.lt.s32.totalorder %s18, 3
        %s195 = scalar_select %p194, %s18, 3
        %p196 = scmp.lt.s32.totalorder %s20, 0
        %s197 = scalar_select %p196, %s20, 0
        %s198 = sadd.s32 %s197, %s195
        %s199 = smul.addr %s198, 4
        %s200 = scalar_lea.vmem %s0, %s199
      $region20: #{generator_forward.15} parent=15 // pred_fallthru
        _
      // Predicated region
      $region21: #{generator_forward.15} parent=15 // pred_check
        %p201 = pneg %p82
      $region22: #{generator_forward.15} parent=15 // pred_check_branch
        %203 = sbr.rel (%p201) target = $region24
      $region23: #{generator_forward.15} parent=15 // pred_region
        %s204 = smul.u32 8, %s20
        %s205 = smul.u32 4, %s19
        %p206 = scmp.lt.s32.totalorder %s18, 3
        %s207 = scalar_select %p206, %s18, 3
        %p208 = scmp.lt.s32.totalorder %s204, 7
        %s209 = scalar_select %p208, %s204, 7
        %p210 = scmp.lt.s32.totalorder %s205, 3
        %s211 = scalar_select %p210, %s205, 3
        %s212 = smul.addr %s209, 4
        %s213 = sadd.s32 %s211, %s212
        %s214 = smul.addr %s207, 32
        %s215 = sadd.s32 %s213, %s214
        %s216 = smul.addr %s215, 4
        %s217 = scalar_lea.vmem %s1, %s216
        %s218 = smul.u32 8, %s20
        %s219 = smul.u32 4, %s19
      $region24: #{generator_forward.15} parent=15 // pred_fallthru
        _
    $region16: #{generator_forward.15} parent=5 // pred_fallthru
      _
    %p220 = scmp.le.s32.totalorder 1, %s11
    %p221 = scmp.lt.s32.totalorder %s11, 5
    %p222 = pnand %p220, %p221
    %p223 = pneg %p222
    // Predicated region
    $region25: #{generator_forward.15} parent=5 // pred_check
      _
    $region26: #{generator_forward.15} parent=5 // pred_check_branch
      %225 = sbr.rel (%p222) target = $region28
    $region27: #{generator_forward.15} parent=5 // pred_region
      %s226 = ssub.s32 %s11, 1
      %p227 = scmp.lt.s32.totalorder %s21, 3
      %s228 = scalar_select %p227, %s21, 3
      %p229 = scmp.lt.s32.totalorder %s23, 0
      %s230 = scalar_select %p229, %s23, 0
      %s231 = sadd.s32 %s230, %s228
      %s232 = smul.addr %s231, 4
      %s233 = scalar_lea.vmem %s0, %s232
      %p234 = pneg %p58
      %p235 = pneg %p55
      %s236 = smul.u32 8, %s23
      %s237 = smul.u32 4, %s22
      %p238 = scmp.lt.s32.totalorder %s21, 3
      %s239 = scalar_select %p238, %s21, 3
      %p240 = scmp.lt.s32.totalorder %s236, 7
      %s241 = scalar_select %p240, %s236, 7
      %p242 = scmp.lt.s32.totalorder %s237, 3
      %s243 = scalar_select %p242, %s237, 3
      %s244 = smul.addr %s241, 4
      %s245 = sadd.s32 %s243, %s244
      %s246 = smul.addr %s239, 32
      %s247 = sadd.s32 %s245, %s246
      %s248 = smul.addr %s247, 4
      %s249 = scalar_lea.vmem %s1, %s248
      %p250 = pneg %p88
      %p251 = pneg %p85
      %p252 = pneg %p116
      %p253 = pneg %p113
      %s254 = smul.u32 4, %s22
      %p255 = scmp.lt.s32.totalorder %s21, 3
      %s256 = scalar_select %p255, %s21, 3
      %p257 = scmp.lt.s32.totalorder %s254, 3
      %s258 = scalar_select %p257, %s254, 3
      %s259 = smul.addr %s256, 4
      %s260 = sadd.s32 %s258, %s259
      %s261 = smul.addr %s260, 4
      %s262 = scalar_lea.vmem %s2, %s261
      %p263 = pneg %p144
      %p264 = pneg %p141
      %s265 = sadd.s32 %s21, %s22
      %p266 = scmp.lt.s32.totalorder %s265, 3
      %s267 = scalar_select %p266, %s265, 3
      %s268 = smul.addr %s267, 8
      %s269 = scalar_lea.vmem %s3, %s268
      %p270 = pneg %p172
      %p271 = pneg %p169
      %s272 = sadd.s32 %s21, %s22
      %p273 = scmp.lt.s32.totalorder %s272, 3
      %s274 = scalar_select %p273, %s272, 3
      %s275 = smul.addr %s274, 8
      %s276 = scalar_lea.vmem %s4, %s275
      %p277 = scmp.lt.s32.totalorder %s21, 3
      %s278 = scalar_select %p277, %s21, 3
      %p279 = scmp.lt.s32.totalorder %s23, 0
      %s280 = scalar_select %p279, %s23, 0
      %s281 = sadd.s32 %s280, %s278
      %s282 = smul.addr %s281, 4
      %s283 = scalar_lea.vmem %s0, %s282
      %s284 = smul.u32 8, %s23
      %s285 = smul.u32 4, %s22
      %p286 = scmp.lt.s32.totalorder %s21, 3
      %s287 = scalar_select %p286, %s21, 3
      %p288 = scmp.lt.s32.totalorder %s284, 7
      %s289 = scalar_select %p288, %s284, 7
      %p290 = scmp.lt.s32.totalorder %s285, 3
      %s291 = scalar_select %p290, %s285, 3
      %s292 = smul.addr %s289, 4
      %s293 = sadd.s32 %s291, %s292
      %s294 = smul.addr %s287, 32
      %s295 = sadd.s32 %s293, %s294
      %s296 = smul.addr %s295, 4
      %s297 = scalar_lea.vmem %s1, %s296
      %s298 = smul.u32 8, %s23
      %s299 = smul.u32 4, %s22
      %s300 = smul.u32 4, %s22
      %p301 = scmp.lt.s32.totalorder %s21, 3
      %s302 = scalar_select %p301, %s21, 3
      %p303 = scmp.lt.s32.totalorder %s300, 3
      %s304 = scalar_select %p303, %s300, 3
      %s305 = smul.addr %s302, 4
      %s306 = sadd.s32 %s304, %s305
      %s307 = smul.addr %s306, 4
      %s308 = scalar_lea.vmem %s2, %s307
      %s309 = smul.u32 4, %s22
      %s310 = sadd.s32 %s21, %s22
      %p311 = scmp.lt.s32.totalorder %s310, 3
      %s312 = scalar_select %p311, %s310, 3
      %s313 = smul.addr %s312, 8
      %s314 = scalar_lea.vmem %s3, %s313
      %s315 = sadd.s32 %s21, %s22
      %s316 = sadd.s32 %s21, %s22
      %p317 = scmp.lt.s32.totalorder %s316, 3
      %s318 = scalar_select %p317, %s316, 3
      %s319 = smul.addr %s318, 8
      %s320 = scalar_lea.vmem %s4, %s319
      %s321 = sadd.s32 %s21, %s22
      %p323 = scmp.eq.s32.totalorder %s23, 0
      // Predicated region
      $region29: #{generator_forward.15} parent=27 // pred_check
        %p324 = pneg %p323
      $region30: #{generator_forward.15} parent=27 // pred_check_branch
        %326 = sbr.rel (%p324) target = $region32
      $region31: #{generator_forward.15} parent=27 // pred_region
        %327 = vst [vmem:[#allocation2] sm:$0xff] 0.0
        %328 = vst [vmem:[#allocation2 + $0x8] sm:$0xff] 0.0
        %329 = vst [vmem:[#allocation2 + $0x10] sm:$0xff] 0.0
        %330 = vst [vmem:[#allocation2 + $0x18] sm:$0xff] 0.0
      $region32: #{generator_forward.15} parent=27 // pred_fallthru
        _
      %v331 = vld [vmem:[#allocation2] sm:$0xff]
      %v332 = vld [vmem:[#allocation2 + $0x8] sm:$0xff]
      %v333 = vld [vmem:[#allocation2 + $0x10] sm:$0xff]
      %v334 = vld [vmem:[#allocation2 + $0x18] sm:$0xff]
      %v335 = vld [vmem:[%s283] sm:$0xf]
      %v336 = vld [vmem:[%s297] sm:$0xff]
      %v337 = vld [vmem:[%s297 + $0x8] sm:$0xff]
      %v338 = vld [vmem:[%s297 + $0x10] sm:$0xff]
      %v339 = vld [vmem:[%s297 + $0x18] sm:$0xff]
      %v340 = vld [vmem:[%s297 + $0x20] sm:$0xff]
      %v341 = vld [vmem:[%s297 + $0x28] sm:$0xff]
      %v342 = vld [vmem:[%s297 + $0x30] sm:$0xff]
      %v343 = vld [vmem:[%s297 + $0x38] sm:$0xff]
      %v344 = vld [vmem:[%s297 + $0x40] sm:$0xff]
      %v345 = vld [vmem:[%s297 + $0x48] sm:$0xff]
      %v346 = vld [vmem:[%s297 + $0x50] sm:$0xff]
      %v347 = vld [vmem:[%s297 + $0x58] sm:$0xff]
      %v348 = vld [vmem:[%s297 + $0x60] sm:$0xff]
      %v349 = vld [vmem:[%s297 + $0x68] sm:$0xff]
      %v350 = vld [vmem:[%s297 + $0x70] sm:$0xff]
      %v351 = vld [vmem:[%s297 + $0x78] sm:$0xff]
      %v368 = vunpack.c.l.b16 %v336
      %v369 = vunpack.c.h.b16 %v336
      %v370 = vunpack.c.l.b16 %v337
      %v371 = vunpack.c.h.b16 %v337
      %v372 = vunpack.c.l.b16 %v338
      %v373 = vunpack.c.h.b16 %v338
      %v374 = vunpack.c.l.b16 %v339
      %v375 = vunpack.c.h.b16 %v339
      %v376 = vunpack.c.l.b16 %v340
      %v377 = vunpack.c.h.b16 %v340
      %v378 = vunpack.c.l.b16 %v341
      %v379 = vunpack.c.h.b16 %v341
      %v380 = vunpack.c.l.b16 %v342
      %v381 = vunpack.c.h.b16 %v342
      %v382 = vunpack.c.l.b16 %v343
      %v383 = vunpack.c.h.b16 %v343
      %v384 = vunpack.c.l.b16 %v344
      %v385 = vunpack.c.h.b16 %v344
      %v386 = vunpack.c.l.b16 %v345
      %v387 = vunpack.c.h.b16 %v345
      %v388 = vunpack.c.l.b16 %v346
      %v389 = vunpack.c.h.b16 %v346
      %v390 = vunpack.c.l.b16 %v347
      %v391 = vunpack.c.h.b16 %v347
      %v392 = vunpack.c.l.b16 %v348
      %v393 = vunpack.c.h.b16 %v348
      %v394 = vunpack.c.l.b16 %v349
      %v395 = vunpack.c.h.b16 %v349
      %v396 = vunpack.c.l.b16 %v350
      %v397 = vunpack.c.h.b16 %v350
      %v398 = vunpack.c.l.b16 %v351
      %v399 = vunpack.c.h.b16 %v351
      %v400 = vpack.c.b16 %v372, %v368
      %v401 = vpack.c.b16 %v373, %v369
      %v402 = vpack.c.b16 %v374, %v370
      %v403 = vpack.c.b16 %v375, %v371
      %v404 = vpack.c.b16 %v380, %v376
      %v405 = vpack.c.b16 %v381, %v377
      %v406 = vpack.c.b16 %v382, %v378
      %v407 = vpack.c.b16 %v383, %v379
      %v408 = vpack.c.b16 %v388, %v384
      %v409 = vpack.c.b16 %v389, %v385
      %v410 = vpack.c.b16 %v390, %v386
      %v411 = vpack.c.b16 %v391, %v387
      %v412 = vpack.c.b16 %v396, %v392
      %v413 = vpack.c.b16 %v397, %v393
      %v414 = vpack.c.b16 %v398, %v394
      %v415 = vpack.c.b16 %v399, %v395
      %vm432 = vcmask 523264
      %v434 = vsel %vm432, %v335, 0
      %436 = vmatprep.subr.bf16.mxu0 %v401
      %437 = vmatpush1.bf16.msra.mxu0 %v400
      %438 = vmatprep.subr.bf16.mxu0 %v405
      %439 = vmatpush1.bf16.msra.mxu0 %v404
      %440 = vmatprep.subr.bf16.mxu0 %v409
      %441 = vmatpush1.bf16.msra.mxu0 %v408
      %442 = vmatprep.subr.bf16.mxu0 %v413
      %443 = vmatpush1.bf16.msra.mxu0 %v412
      %444 = vmatprep.subr.bf16.mxu0 0
      %445 = vmatpush1.bf16.msra.mxu0 0
      %446 = vmatprep.subr.bf16.mxu0 0
      %447 = vmatpush1.bf16.msra.mxu0 0
      %448 = vmatprep.subr.bf16.mxu0 0
      %449 = vmatpush1.bf16.msra.mxu0 0
      %450 = vmatprep.subr.bf16.mxu0 0
      %451 = vmatpush1.bf16.msra.mxu0 0
      %452 = vmatprep.subr.bf16.mxu0 0
      %453 = vmatpush1.bf16.msra.mxu0 0
      %454 = vmatprep.subr.bf16.mxu0 0
      %455 = vmatpush1.bf16.msra.mxu0 0
      %456 = vmatprep.subr.bf16.mxu0 0
      %457 = vmatpush1.bf16.msra.mxu0 0
      %458 = vmatprep.subr.bf16.mxu0 0
      %459 = vmatpush1.bf16.msra.mxu0 0
      %460 = vmatprep.subr.bf16.mxu0 0
      %461 = vmatpush1.bf16.msra.mxu0 0
      %462 = vmatprep.subr.bf16.mxu0 0
      %463 = vmatpush1.bf16.msra.mxu0 0
      %464 = vmatprep.subr.bf16.mxu0 0
      %465 = vmatpush1.bf16.msra.mxu0 0
      %466 = vmatprep.subr.bf16.mxu0 0
      %467 = vmatpush1.bf16.msra.mxu0 0
      %468 = vmatprep.mubr.bf16.mxu0 0
      %469 = vmatmul.mubr.bf16.gmra.mrb[0].mxu0 %v434
      %v470 = vpop.f32.mrb[0].mxu0
      %v471 = vadd.f32 0.0, %v470
      %v472 = vpop.f32.mrb[0].mxu0
      %v473 = vadd.f32 0.0, %v472
      %v474 = vpop.f32.mrb[0].mxu0
      %v475 = vpop.f32.mrb[0].mxu0
      %476 = vdwg.mxu0
      %477 = vmatprep.subr.bf16.mxu0 %v403
      %478 = vmatpush1.bf16.msra.mxu0 %v402
      %479 = vmatprep.subr.bf16.mxu0 %v407
      %480 = vmatpush1.bf16.msra.mxu0 %v406
      %481 = vmatprep.subr.bf16.mxu0 %v411
      %482 = vmatpush1.bf16.msra.mxu0 %v410
      %483 = vmatprep.subr.bf16.mxu0 %v415
      %484 = vmatpush1.bf16.msra.mxu0 %v414
      %485 = vmatprep.subr.bf16.mxu0 0
      %486 = vmatpush1.bf16.msra.mxu0 0
      %487 = vmatprep.subr.bf16.mxu0 0
      %488 = vmatpush1.bf16.msra.mxu0 0
      %489 = vmatprep.subr.bf16.mxu0 0
      %490 = vmatpush1.bf16.msra.mxu0 0
      %491 = vmatprep.subr.bf16.mxu0 0
      %492 = vmatpush1.bf16.msra.mxu0 0
      %493 = vmatprep.subr.bf16.mxu0 0
      %494 = vmatpush1.bf16.msra.mxu0 0
      %495 = vmatprep.subr.bf16.mxu0 0
      %496 = vmatpush1.bf16.msra.mxu0 0
      %497 = vmatprep.subr.bf16.mxu0 0
      %498 = vmatpush1.bf16.msra.mxu0 0
      %499 = vmatprep.subr.bf16.mxu0 0
      %500 = vmatpush1.bf16.msra.mxu0 0
      %501 = vmatprep.subr.bf16.mxu0 0
      %502 = vmatpush1.bf16.msra.mxu0 0
      %503 = vmatprep.subr.bf16.mxu0 0
      %504 = vmatpush1.bf16.msra.mxu0 0
      %505 = vmatprep.subr.bf16.mxu0 0
      %506 = vmatpush1.bf16.msra.mxu0 0
      %507 = vmatprep.subr.bf16.mxu0 0
      %508 = vmatpush1.bf16.msra.mxu0 0
      %509 = vmatprep.mubr.bf16.mxu0 0
      %510 = vmatmul.mubr.bf16.gmra.mrb[0].mxu0 %v434
      %v511 = vpop.f32.mrb[0].mxu0
      %v512 = vadd.f32 0.0, %v511
      %v513 = vpop.f32.mrb[0].mxu0
      %v514 = vadd.f32 0.0, %v513
      %v515 = vpop.f32.mrb[0].mxu0
      %v516 = vpop.f32.mrb[0].mxu0
      %517 = vdwg.mxu0
      %v518 = vadd.f32 %v331, %v471
      %v519 = vadd.f32 %v332, %v473
      %v520 = vadd.f32 %v333, %v512
      %v521 = vadd.f32 %v334, %v514
      %522 = vst [vmem:[#allocation2] sm:$0xff] %v518
      %523 = vst [vmem:[#allocation2 + $0x8] sm:$0xff] %v519
      %524 = vst [vmem:[#allocation2 + $0x10] sm:$0xff] %v520
      %525 = vst [vmem:[#allocation2 + $0x18] sm:$0xff] %v521
      // Predicated region
      $region33: #{generator_forward.15} parent=27 // pred_check
        %p526 = pneg %p323
      $region34: #{generator_forward.15} parent=27 // pred_check_branch
        %528 = sbr.rel (%p526) target = $region36
      $region35: #{generator_forward.15} parent=27 // pred_region
        %v529 = vld [vmem:[#allocation2] sm:$0xff]
        %v530 = vld [vmem:[#allocation2 + $0x8] sm:$0xff]
        %v531 = vld [vmem:[#allocation2 + $0x10] sm:$0xff]
        %v532 = vld [vmem:[#allocation2 + $0x18] sm:$0xff]
        %v533 = vpack.c.bf16 %v529, %v529
        %v534 = vpack.c.bf16 %v530, %v530
        %v535 = vpack.c.bf16 %v531, %v531
        %v536 = vpack.c.bf16 %v532, %v532
        %v541 = vunpack.c.l.b16 %v533
        %v542 = vunpack.c.l.b16 %v534
        %v543 = vunpack.c.l.b16 %v535
        %v544 = vunpack.c.l.b16 %v536
        %v545 = vpack.c.b16 %v542, %v541
        %v546 = vpack.c.b16 %v544, %v543
        %549 = vst [vmem:[%s308] sm:$0xff] %v545
        %550 = vst [vmem:[%s308 + $0x8] sm:$0xff] %v546
        %v551 = vadd.f32 %v529, %v530
        %v552 = vadd.f32 %v551, %v531
        %v553 = vadd.f32 %v552, %v532
        %554 = vadd.xlane.f32.xlu0 %v553
        %v555 = vpop.xlane.xlu0 %554
        %vm556 = vcmask 7168
        %557 = vst.msk [vmem:[%s314] sm:$0xff] %vm556, %v555
        %v558 = vmul.f32 %v529, %v529
        %v559 = vmul.f32 %v530, %v530
        %v560 = vmul.f32 %v531, %v531
        %v561 = vmul.f32 %v532, %v532
        %v562 = vadd.f32 %v558, %v559
        %v563 = vadd.f32 %v562, %v560
        %v564 = vadd.f32 %v563, %v561
        %565 = vadd.xlane.f32.xlu0 %v564
        %v566 = vpop.xlane.xlu0 %565
        %567 = vst.msk [vmem:[%s320] sm:$0xff] %vm556, %v566
      $region36: #{generator_forward.15} parent=27 // pred_fallthru
        _
      %s568 = smul.u32 4, %s22
      %p569 = scmp.lt.s32.totalorder %s21, 3
      %s570 = scalar_select %p569, %s21, 3
      %p571 = scmp.lt.s32.totalorder %s568, 3
      %s572 = scalar_select %p571, %s568, 3
      %s573 = smul.addr %s570, 4
      %s574 = sadd.s32 %s572, %s573
      %s575 = smul.addr %s574, 4
      %s576 = scalar_lea.vmem %s2, %s575
      %s577 = sadd.s32 %s21, %s22
      %p578 = scmp.lt.s32.totalorder %s577, 3
      %s579 = scalar_select %p578, %s577, 3
      %s580 = smul.addr %s579, 8
      %s581 = scalar_lea.vmem %s3, %s580
      %s582 = sadd.s32 %s21, %s22
      %p583 = scmp.lt.s32.totalorder %s582, 3
      %s584 = scalar_select %p583, %s582, 3
      %s585 = smul.addr %s584, 8
      %s586 = scalar_lea.vmem %s4, %s585
      // Predicated region
      $region37: #{generator_forward.15} parent=27 // pred_check
        %p587 = pneg %p113
      $region38: #{generator_forward.15} parent=27 // pred_check_branch
        %589 = sbr.rel (%p587) target = $region40
      $region39: #{generator_forward.15} parent=27 // pred_region
        %s590 = smul.u32 4, %s22
      $region40: #{generator_forward.15} parent=27 // pred_fallthru
        _
      // Predicated region
      $region41: #{generator_forward.15} parent=27 // pred_check
        %p591 = pneg %p141
      $region42: #{generator_forward.15} parent=27 // pred_check_branch
        %593 = sbr.rel (%p591) target = $region44
      $region43: #{generator_forward.15} parent=27 // pred_region
        %s594 = sadd.s32 %s21, %s22
      $region44: #{generator_forward.15} parent=27 // pred_fallthru
        _
      // Predicated region
      $region45: #{generator_forward.15} parent=27 // pred_check
        %p595 = pneg %p169
      $region46: #{generator_forward.15} parent=27 // pred_check_branch
        %597 = sbr.rel (%p595) target = $region48
      $region47: #{generator_forward.15} parent=27 // pred_region
        %s598 = sadd.s32 %s21, %s22
      $region48: #{generator_forward.15} parent=27 // pred_fallthru
        _
    $region28: #{generator_forward.15} parent=5 // pred_fallthru
      _
    %p599 = scmp.le.s32.totalorder 2, %s11
    // Predicated region
    $region49: #{generator_forward.15} parent=5 // pred_check
      %p600 = pneg %p599
    $region50: #{generator_forward.15} parent=5 // pred_check_branch
      %602 = sbr.rel (%p600) target = $region52
    $region51: #{generator_forward.15} parent=5 // pred_region
      %s603 = ssub.s32 %s11, 2
      // Predicated region
      $region53: #{generator_forward.15} parent=51 // pred_check
        %p604 = pneg %p119
      $region54: #{generator_forward.15} parent=51 // pred_check_branch
        %606 = sbr.rel (%p604) target = $region56
      $region55: #{generator_forward.15} parent=51 // pred_region
        %s607 = smul.u32 4, %s25
        %p608 = scmp.lt.s32.totalorder %s24, 3
        %s609 = scalar_select %p608, %s24, 3
        %p610 = scmp.lt.s32.totalorder %s607, 3
        %s611 = scalar_select %p610, %s607, 3
        %s612 = smul.addr %s609, 4
        %s613 = sadd.s32 %s611, %s612
        %s614 = smul.addr %s613, 4
        %s615 = scalar_lea.vmem %s2, %s614
      $region56: #{generator_forward.15} parent=51 // pred_fallthru
        _
      // Predicated region
      $region57: #{generator_forward.15} parent=51 // pred_check
        %p616 = pneg %p147
      $region58: #{generator_forward.15} parent=51 // pred_check_branch
        %618 = sbr.rel (%p616) target = $region60
      $region59: #{generator_forward.15} parent=51 // pred_region
        %s619 = sadd.s32 %s24, %s25
        %p620 = scmp.lt.s32.totalorder %s619, 3
        %s621 = scalar_select %p620, %s619, 3
        %s622 = smul.addr %s621, 8
        %s623 = scalar_lea.vmem %s3, %s622
      $region60: #{generator_forward.15} parent=51 // pred_fallthru
        _
      // Predicated region
      $region61: #{generator_forward.15} parent=51 // pred_check
        %p624 = pneg %p175
      $region62: #{generator_forward.15} parent=51 // pred_check_branch
        %626 = sbr.rel (%p624) target = $region64
      $region63: #{generator_forward.15} parent=51 // pred_region
        %s627 = sadd.s32 %s24, %s25
        %p628 = scmp.lt.s32.totalorder %s627, 3
        %s629 = scalar_select %p628, %s627, 3
        %s630 = smul.addr %s629, 8
        %s631 = scalar_lea.vmem %s4, %s630
      $region64: #{generator_forward.15} parent=51 // pred_fallthru
        _
    $region52: #{generator_forward.15} parent=5 // pred_fallthru
      _
  $region6: #{generator_forward.15} parent=0 // loop_footer
    %s15 = sadd.s32 1, %s11
  $region7: #{generator_forward.15} parent=0 // loop_footer_branch
    %10 = sbr.rel target = $region3
  $region8: #{generator_forward.15} parent=0 // loop_exit
    _

// kernel: generator_forward.16
$region0: #{generator_forward.16}
  #allocation0 [shape = 'u32[]', space=smem, size = 0x4, offset = 0x4, fixed_abs, tag = 'smem constant byte address 0x4 - core index']
  #allocation1 [shape = 'u32[144,128]{1,0:T(1,128)}', space=vmem, size = 0x12000, scoped, tag = 'internal scratch']
  %s0 = inlined_call_operand.vmem [shape: bf16[4,8,512], index: 0, kind: input, shape index: {}]
  %s1 = inlined_call_operand.vmem [shape: f32[1,8,1], index: 1, kind: input, shape index: {}]
  %s2 = inlined_call_operand.vmem [shape: f32[1,8,1], index: 2, kind: input, shape index: {}]
  %s3 = inlined_call_operand.vmem [shape: bf16[4,8,512], index: 3, kind: output, shape index: {}]
  %s4 = sld [smem:[#allocation0]]
  $region45: #{generator_forward.16} parent=0
    _
  %s6 = ssub.s32 1, %s4
  %s7 = scalar_select 0, %s6, %s4
  loop: start=0, step=1, limit=6
  $region2: #{generator_forward.16} parent=0 // loop_pre_header
    _
  $region3: #{generator_forward.16} parent=0 // loop_header
    %s9 = sphi 0, %s13
    %p10 = scmp.ge.s32.totalorder %s9, 6
    %s16 = sphi 0, %s28
    %s17 = sphi 0, %s24
    %s18 = sphi 0, %s16
    %s19 = sphi 0, %s17
    %s20 = sphi 0, %s18
    %s21 = sphi 0, %s19
    %s33 = sphi 0, %s35
    %s36 = sphi 0, %s33
    %s37 = sphi 0, %s36
    %s53 = sphi 0, %s37
    %s57 = sphi 0, %s57
    %s59 = sphi 0, %s57
    %s60 = sphi 0, %s59
    %s74 = sphi 0, %s60
    %s78 = sphi 0, %s78
    %s80 = sphi 0, %s78
    %s81 = sphi 0, %s80
    %s95 = sphi 0, %s81
    %s103 = sphi 0, %s105
    %s106 = sphi 0, %s103
    %s107 = sphi 0, %s106
    %s123 = sphi 0, %s107
  $region4: #{generator_forward.16} parent=0 // loop_header_branch
    %12 = sbr.rel (%p10) target = $region8
  $region5: #{generator_forward.16} parent=0 // loop_body
    %s14 = ssub.s32 %s9, 1
    %s15 = ssub.s32 %s9, 2
    %s22 = sadd.s32 1, %s17
    %p23 = scmp.ge.s32.totalorder %s22, 1
    %s24 = scalar_select %p23, 0, %s22
    %s25 = sadd.s32 1, %s16
    %s26 = scalar_select %p23, %s25, %s16
    %p27 = scmp.ge.s32.totalorder %s26, 4
    %s28 = scalar_select %p27, 0, %s26
    %s29 = ssub.s32 %s16, %s28
    %s30 = ssub.s32 %s17, %s24
    %s31 = sor.u32 %s29, %s30
    %p32 = scmp.eq.s32.totalorder %s31, 0
    %s34 = sadd.s32 %s33, 1
    %s35 = scalar_select %p32, %s33, %s34
    %p38 = pneg %p32
    %p39 = scmp.eq.s32.totalorder %s9, 3
    %p40 = por %p38, %p39
    %p41 = scmp.ne.s32.totalorder %s33, %s36
    %p42 = scmp.eq.s32.totalorder %s9, 0
    %p43 = por %p41, %p42
    %p44 = scmp.ne.s32.totalorder %s33, %s36
    %p45 = scmp.eq.s32.totalorder %s14, 3
    %p46 = por %p44, %p45
    %p47 = scmp.ne.s32.totalorder %s36, %s37
    %p48 = scmp.eq.s32.totalorder %s14, 0
    %p49 = por %p47, %p48
    %p50 = scmp.ne.s32.totalorder %s36, %s37
    %p51 = scmp.eq.s32.totalorder %s15, 3
    %p52 = por %p50, %p51
    %p54 = scmp.ne.s32.totalorder %s37, %s53
    %p55 = scmp.eq.s32.totalorder %s15, 0
    %p56 = por %p54, %p55
    %s58 = sadd.s32 %s57, 1
    %p61 = scmp.eq.s32.totalorder %s9, 3
    %p62 = scmp.ne.s32.totalorder %s57, %s59
    %p63 = scmp.eq.s32.totalorder %s9, 0
    %p64 = por %p62, %p63
    %p65 = scmp.ne.s32.totalorder %s57, %s59
    %p66 = scmp.eq.s32.totalorder %s14, 3
    %p67 = por %p65, %p66
    %p68 = scmp.ne.s32.totalorder %s59, %s60
    %p69 = scmp.eq.s32.totalorder %s14, 0
    %p70 = por %p68, %p69
    %p71 = scmp.ne.s32.totalorder %s59, %s60
    %p72 = scmp.eq.s32.totalorder %s15, 3
    %p73 = por %p71, %p72
    %p75 = scmp.ne.s32.totalorder %s60, %s74
    %p76 = scmp.eq.s32.totalorder %s15, 0
    %p77 = por %p75, %p76
    %s79 = sadd.s32 %s78, 1
    %p82 = scmp.eq.s32.totalorder %s9, 3
    %p83 = scmp.ne.s32.totalorder %s78, %s80
    %p84 = scmp.eq.s32.totalorder %s9, 0
    %p85 = por %p83, %p84
    %p86 = scmp.ne.s32.totalorder %s78, %s80
    %p87 = scmp.eq.s32.totalorder %s14, 3
    %p88 = por %p86, %p87
    %p89 = scmp.ne.s32.totalorder %s80, %s81
    %p90 = scmp.eq.s32.totalorder %s14, 0
    %p91 = por %p89, %p90
    %p92 = scmp.ne.s32.totalorder %s80, %s81
    %p93 = scmp.eq.s32.totalorder %s15, 3
    %p94 = por %p92, %p93
    %p96 = scmp.ne.s32.totalorder %s81, %s95
    %p97 = scmp.eq.s32.totalorder %s15, 0
    %p98 = por %p96, %p97
    %s99 = ssub.s32 %s16, %s28
    %s100 = ssub.s32 %s17, %s24
    %s101 = sor.u32 %s99, %s100
    %p102 = scmp.eq.s32.totalorder %s101, 0
    %s104 = sadd.s32 %s103, 1
    %s105 = scalar_select %p102, %s103, %s104
    %p108 = pneg %p102
    %p109 = scmp.eq.s32.totalorder %s9, 3
    %p110 = por %p108, %p109
    %p111 = scmp.ne.s32.totalorder %s103, %s106
    %p112 = scmp.eq.s32.totalorder %s9, 0
    %p113 = por %p111, %p112
    %p114 = scmp.ne.s32.totalorder %s103, %s106
    %p115 = scmp.eq.s32.totalorder %s14, 3
    %p116 = por %p114, %p115
    %p117 = scmp.ne.s32.totalorder %s106, %s107
    %p118 = scmp.eq.s32.totalorder %s14, 0
    %p119 = por %p117, %p118
    %p120 = scmp.ne.s32.totalorder %s106, %s107
    %p121 = scmp.eq.s32.totalorder %s15, 3
    %p122 = por %p120, %p121
    %p124 = scmp.ne.s32.totalorder %s107, %s123
    %p125 = scmp.eq.s32.totalorder %s15, 0
    %p126 = por %p124, %p125
    %p127 = scmp.le.s32.totalorder 1, %s9
    %p128 = scmp.lt.s32.totalorder %s9, 5
    %p129 = pnand %p127, %p128
    %p130 = pneg %p129
    // Predicated region
    $region9: #{generator_forward.16} parent=5 // pred_check
      _
    $region10: #{generator_forward.16} parent=5 // pred_check_branch
      %132 = sbr.rel (%p129) target = $region12
    $region11: #{generator_forward.16} parent=5 // pred_region
      %s133 = ssub.s32 %s9, 1
      // Predicated region
      $region13: #{generator_forward.16} parent=11 // pred_check
        %p134 = pneg %p70
      $region14: #{generator_forward.16} parent=11 // pred_check_branch
        %136 = sbr.rel (%p134) target = $region16
      $region15: #{generator_forward.16} parent=11 // pred_region
        _
      $region16: #{generator_forward.16} parent=11 // pred_fallthru
        _
      // Predicated region
      $region17: #{generator_forward.16} parent=11 // pred_check
        %p137 = pneg %p91
      $region18: #{generator_forward.16} parent=11 // pred_check_branch
        %139 = sbr.rel (%p137) target = $region20
      $region19: #{generator_forward.16} parent=11 // pred_region
        _
      $region20: #{generator_forward.16} parent=11 // pred_fallthru
        _
    $region12: #{generator_forward.16} parent=5 // pred_fallthru
      _
    %p140 = scmp.lt.s32.totalorder %s9, 4
    // Predicated region
    $region21: #{generator_forward.16} parent=5 // pred_check
      %p141 = pneg %p140
    $region22: #{generator_forward.16} parent=5 // pred_check_branch
      %143 = sbr.rel (%p141) target = $region24
    $region23: #{generator_forward.16} parent=5 // pred_region
      // Predicated region
      $region25: #{generator_forward.16} parent=23 // pred_check
        %p144 = pneg %p43
      $region26: #{generator_forward.16} parent=23 // pred_check_branch
        %146 = sbr.rel (%p144) target = $region28
      $region27: #{generator_forward.16} parent=23 // pred_region
        %s147 = smul.u32 4, %s17
        %p148 = scmp.lt.s32.totalorder %s16, 3
        %s149 = scalar_select %p148, %s16, 3
        %p150 = scmp.lt.s32.totalorder %s147, 3
        %s151 = scalar_select %p150, %s147, 3
        %s152 = smul.addr %s149, 4
        %s153 = sadd.s32 %s151, %s152
        %s154 = smul.addr %s153, 4
        %s155 = scalar_lea.vmem %s0, %s154
        %s156 = smul.u32 4, %s17
      $region28: #{generator_forward.16} parent=23 // pred_fallthru
        _
    $region24: #{generator_forward.16} parent=5 // pred_fallthru
      _
    %p157 = scmp.le.s32.totalorder 1, %s9
    %p158 = scmp.lt.s32.totalorder %s9, 5
    %p159 = pnand %p157, %p158
    %p160 = pneg %p159
    // Predicated region
    $region29: #{generator_forward.16} parent=5 // pred_check
      _
    $region30: #{generator_forward.16} parent=5 // pred_check_branch
      %162 = sbr.rel (%p159) target = $region32
    $region31: #{generator_forward.16} parent=5 // pred_region
      %s163 = ssub.s32 %s9, 1
      %s164 = smul.u32 4, %s19
      %p165 = scmp.lt.s32.totalorder %s18, 3
      %s166 = scalar_select %p165, %s18, 3
      %p167 = scmp.lt.s32.totalorder %s164, 3
      %s168 = scalar_select %p167, %s164, 3
      %s169 = smul.addr %s166, 4
      %s170 = sadd.s32 %s168, %s169
      %s171 = smul.addr %s170, 4
      %s172 = scalar_lea.vmem %s0, %s171
      %p173 = pneg %p49
      %p174 = pneg %p46
      %p175 = pneg %p70
      %p176 = pneg %p67
      %p177 = pneg %p91
      %p178 = pneg %p88
      %p179 = pneg %p119
      %p180 = pneg %p116
      %s181 = smul.u32 4, %s19
      %p182 = scmp.lt.s32.totalorder %s18, 3
      %s183 = scalar_select %p182, %s18, 3
      %p184 = scmp.lt.s32.totalorder %s181, 3
      %s185 = scalar_select %p184, %s181, 3
      %s186 = smul.addr %s183, 4
      %s187 = sadd.s32 %s185, %s186
      %s188 = smul.addr %s187, 4
      %s189 = scalar_lea.vmem %s3, %s188
      %s190 = smul.u32 4, %s19
      %p191 = scmp.lt.s32.totalorder %s18, 3
      %s192 = scalar_select %p191, %s18, 3
      %p193 = scmp.lt.s32.totalorder %s190, 3
      %s194 = scalar_select %p193, %s190, 3
      %s195 = smul.addr %s192, 4
      %s196 = sadd.s32 %s194, %s195
      %s197 = smul.addr %s196, 4
      %s198 = scalar_lea.vmem %s0, %s197
      %s199 = smul.u32 4, %s19
      %s200 = smul.u32 4, %s19
      %p201 = scmp.lt.s32.totalorder %s18, 3
      %s202 = scalar_select %p201, %s18, 3
      %p203 = scmp.lt.s32.totalorder %s200, 3
      %s204 = scalar_select %p203, %s200, 3
      %s205 = smul.addr %s202, 4
      %s206 = sadd.s32 %s204, %s205
      %s207 = smul.addr %s206, 4
      %s208 = scalar_lea.vmem %s3, %s207
      %s209 = smul.u32 4, %s19
      %v210 = vld [vmem:[%s198] sm:$0xff]
      %v211 = vld [vmem:[%s198 + $0x8] sm:$0xff]
      %v212 = vunpack.c.l.bf16 %v210
      %v213 = vunpack.c.h.bf16 %v210
      %v214 = vunpack.c.l.bf16 %v211
      %v215 = vunpack.c.h.bf16 %v211
      %v216 = vld [vmem:[%s1] sm:$0xff]
      %218 = vset.pattern.permute.xlu0 0
      %219 = vperm.xlu0 %218, %v216
      %v220 = vpop.permute.xlu0 %219
      %v222 = vmul.f32 %v212, %v220
      %v223 = vmul.f32 %v213, %v220
      %v224 = vmul.f32 %v214, %v220
      %v225 = vmul.f32 %v215, %v220
      %v226 = vld [vmem:[%s2] sm:$0xff]
      %228 = vset.pattern.permute.xlu0 0
      %229 = vperm.xlu0 %228, %v226
      %v230 = vpop.permute.xlu0 %229
      %v232 = vadd.f32 %v222, %v230
      %v233 = vadd.f32 %v223, %v230
      %v234 = vadd.f32 %v224, %v230
      %v235 = vadd.f32 %v225, %v230
      %v236 = vmax.f32 %v232, 0.0
      %v237 = vmax.f32 %v233, 0.0
      %v238 = vmax.f32 %v234, 0.0
      %v239 = vmax.f32 %v235, 0.0
      %v240 = vpack.c.bf16 %v236, %v236
      %v241 = vpack.c.bf16 %v237, %v237
      %v242 = vpack.c.bf16 %v238, %v238
      %v243 = vpack.c.bf16 %v239, %v239
      %v248 = vunpack.c.l.b16 %v240
      %v249 = vunpack.c.l.b16 %v241
      %v250 = vunpack.c.l.b16 %v242
      %v251 = vunpack.c.l.b16 %v243
      %v252 = vpack.c.b16 %v249, %v248
      %v253 = vpack.c.b16 %v251, %v250
      %256 = vst [vmem:[%s208] sm:$0xff] %v252
      %257 = vst [vmem:[%s208 + $0x8] sm:$0xff] %v253
      %s258 = smul.u32 4, %s19
      %p259 = scmp.lt.s32.totalorder %s18, 3
      %s260 = scalar_select %p259, %s18, 3
      %p261 = scmp.lt.s32.totalorder %s258, 3
      %s262 = scalar_select %p261, %s258, 3
      %s263 = smul.addr %s260, 4
      %s264 = sadd.s32 %s262, %s263
      %s265 = smul.addr %s264, 4
      %s266 = scalar_lea.vmem %s3, %s265
      // Predicated region
      $region33: #{generator_forward.16} parent=31 // pred_check
        %p267 = pneg %p116
      $region34: #{generator_forward.16} parent=31 // pred_check_branch
        %269 = sbr.rel (%p267) target = $region36
      $region35: #{generator_forward.16} parent=31 // pred_region
        %s270 = smul.u32 4, %s19
      $region36: #{generator_forward.16} parent=31 // pred_fallthru
        _
    $region32: #{generator_forward.16} parent=5 // pred_fallthru
      _
    %p271 = scmp.le.s32.totalorder 2, %s9
    // Predicated region
    $region37: #{generator_forward.16} parent=5 // pred_check
      %p272 = pneg %p271
    $region38: #{generator_forward.16} parent=5 // pred_check_branch
      %274 = sbr.rel (%p272) target = $region40
    $region39: #{generator_forward.16} parent=5 // pred_region
      %s275 = ssub.s32 %s9, 2
      // Predicated region
      $region41: #{generator_forward.16} parent=39 // pred_check
        %p276 = pneg %p122
      $region42: #{generator_forward.16} parent=39 // pred_check_branch
        %278 = sbr.rel (%p276) target = $region44
      $region43: #{generator_forward.16} parent=39 // pred_region
        %s279 = smul.u32 4, %s21
        %p280 = scmp.lt.s32.totalorder %s20, 3
        %s281 = scalar_select %p280, %s20, 3
        %p282 = scmp.lt.s32.totalorder %s279, 3
        %s283 = scalar_select %p282, %s279, 3
        %s284 = smul.addr %s281, 4
        %s285 = sadd.s32 %s283, %s284
        %s286 = smul.addr %s285, 4
        %s287 = scalar_lea.vmem %s3, %s286
      $region44: #{generator_forward.16} parent=39 // pred_fallthru
        _
    $region40: #{generator_forward.16} parent=5 // pred_fallthru
      _
  $region6: #{generator_forward.16} parent=0 // loop_footer
    %s13 = sadd.s32 1, %s9
  $region7: #{generator_forward.16} parent=0 // loop_footer_branch
    %8 = sbr.rel target = $region3
  $region8: #{generator_forward.16} parent=0 // loop_exit
    _

// kernel: generator_forward.17
$region0: #{generator_forward.17}
  #allocation0 [shape = 'u32[]', space=smem, size = 0x4, offset = 0x4, fixed_abs, tag = 'smem constant byte address 0x4 - core index']
  #allocation1 [shape = 'u32[144,128]{1,0:T(1,128)}', space=vmem, size = 0x12000, scoped, tag = 'internal scratch']
  #allocation2 [shape = 'f32[3,2048]{1,0:T(4,128)}', space=vmem, size = 0x8000, scoped, tag = 'scratch operand']
  %s0 = inlined_call_operand.vmem [shape: bf16[9,3,32], index: 0, kind: input, shape index: {}]
  %s1 = inlined_call_operand.vmem [shape: bf16[9,32,2048], index: 1, kind: input, shape index: {}]
  %s2 = inlined_call_operand.vmem [shape: f32[9,3,2048], index: 2, kind: output, shape index: {}]
  %s3 = sld [smem:[#allocation0]]
  $region49: #{generator_forward.17} parent=0
    _
  %s5 = ssub.s32 1, %s3
  %s6 = scalar_select 0, %s5, %s3
  loop: start=0, step=1, limit=11
  $region2: #{generator_forward.17} parent=0 // loop_pre_header
    _
  $region3: #{generator_forward.17} parent=0 // loop_header
    %s8 = sphi 0, %s12
    %p9 = scmp.ge.s32.totalorder %s8, 11
    %s15 = sphi 0, %s34
    %s16 = sphi 0, %s30
    %s17 = sphi 0, %s26
    %s18 = sphi 0, %s15
    %s19 = sphi 0, %s16
    %s20 = sphi 0, %s17
    %s21 = sphi 0, %s18
    %s22 = sphi 0, %s19
    %s23 = sphi 0, %s20
    %s39 = sphi 0, %s41
    %s42 = sphi 0, %s39
    %s43 = sphi 0, %s42
    %s59 = sphi 0, %s43
    %s69 = sphi 0, %s71
    %s72 = sphi 0, %s69
    %s73 = sphi 0, %s72
    %s89 = sphi 0, %s73
    %s97 = sphi 0, %s99
    %s100 = sphi 0, %s97
    %s101 = sphi 0, %s100
    %s117 = sphi 0, %s101
  $region4: #{generator_forward.17} parent=0 // loop_header_branch
    %11 = sbr.rel (%p9) target = $region8
  $region5: #{generator_forward.17} parent=0 // loop_body
    %s13 = ssub.s32 %s8, 1
    %s14 = ssub.s32 %s8, 2
    %s24 = sadd.s32 1, %s17
    %p25 = scmp.ge.s32.totalorder %s24, 1
    %s26 = scalar_select %p25, 0, %s24
    %s27 = sadd.s32 1, %s16
    %s28 = scalar_select %p25, %s27, %s16
    %p29 = scmp.ge.s32.totalorder %s28, 1
    %s30 = scalar_select %p29, 0, %s28
    %s31 = sadd.s32 1, %s15
    %s32 = scalar_select %p29, %s31, %s15
    %p33 = scmp.ge.s32.totalorder %s32, 9
    %s34 = scalar_select %p33, 0, %s32
    %s35 = ssub.s32 %s15, %s34
    %s36 = ssub.s32 %s17, %s26
    %s37 = sor.u32 %s35, %s36
    %p38 = scmp.eq.s32.totalorder %s37, 0
    %s40 = sadd.s32 %s39, 1
    %s41 = scalar_select %p38, %s39, %s40
    %p44 = pneg %p38
    %p45 = scmp.eq.s32.totalorder %s8, 8
    %p46 = por %p44, %p45
    %p47 = scmp.ne.s32.totalorder %s39, %s42
    %p48 = scmp.eq.s32.totalorder %s8, 0
    %p49 = por %p47, %p48
    %p50 = scmp.ne.s32.totalorder %s39, %s42
    %p51 = scmp.eq.s32.totalorder %s13, 8
    %p52 = por %p50, %p51
    %p53 = scmp.ne.s32.totalorder %s42, %s43
    %p54 = scmp.eq.s32.totalorder %s13, 0
    %p55 = por %p53, %p54
    %p56 = scmp.ne.s32.totalorder %s42, %s43
    %p57 = scmp.eq.s32.totalorder %s14, 8
    %p58 = por %p56, %p57
    %p60 = scmp.ne.s32.totalorder %s43, %s59
    %p61 = scmp.eq.s32.totalorder %s14, 0
    %p62 = por %p60, %p61
    %s63 = ssub.s32 %s15, %s34
    %s64 = ssub.s32 %s17, %s26
    %s65 = sor.u32 %s63, %s64
    %s66 = ssub.s32 %s16, %s30
    %s67 = sor.u32 %s65, %s66
    %p68 = scmp.eq.s32.totalorder %s67, 0
    %s70 = sadd.s32 %s69, 1
    %s71 = scalar_select %p68, %s69, %s70
    %p74 = pneg %p68
    %p75 = scmp.eq.s32.totalorder %s8, 8
    %p76 = por %p74, %p75
    %p77 = scmp.ne.s32.totalorder %s69, %s72
    %p78 = scmp.eq.s32.totalorder %s8, 0
    %p79 = por %p77, %p78
    %p80 = scmp.ne.s32.totalorder %s69, %s72
    %p81 = scmp.eq.s32.totalorder %s13, 8
    %p82 = por %p80, %p81
    %p83 = scmp.ne.s32.totalorder %s72, %s73
    %p84 = scmp.eq.s32.totalorder %s13, 0
    %p85 = por %p83, %p84
    %p86 = scmp.ne.s32.totalorder %s72, %s73
    %p87 = scmp.eq.s32.totalorder %s14, 8
    %p88 = por %p86, %p87
    %p90 = scmp.ne.s32.totalorder %s73, %s89
    %p91 = scmp.eq.s32.totalorder %s14, 0
    %p92 = por %p90, %p91
    %s93 = ssub.s32 %s15, %s34
    %s94 = ssub.s32 %s16, %s30
    %s95 = sor.u32 %s93, %s94
    %p96 = scmp.eq.s32.totalorder %s95, 0
    %s98 = sadd.s32 %s97, 1
    %s99 = scalar_select %p96, %s97, %s98
    %p102 = pneg %p96
    %p103 = scmp.eq.s32.totalorder %s8, 8
    %p104 = por %p102, %p103
    %p105 = scmp.ne.s32.totalorder %s97, %s100
    %p106 = scmp.eq.s32.totalorder %s8, 0
    %p107 = por %p105, %p106
    %p108 = scmp.ne.s32.totalorder %s97, %s100
    %p109 = scmp.eq.s32.totalorder %s13, 8
    %p110 = por %p108, %p109
    %p111 = scmp.ne.s32.totalorder %s100, %s101
    %p112 = scmp.eq.s32.totalorder %s13, 0
    %p113 = por %p111, %p112
    %p114 = scmp.ne.s32.totalorder %s100, %s101
    %p115 = scmp.eq.s32.totalorder %s14, 8
    %p116 = por %p114, %p115
    %p118 = scmp.ne.s32.totalorder %s101, %s117
    %p119 = scmp.eq.s32.totalorder %s14, 0
    %p120 = por %p118, %p119
    %p121 = scmp.le.s32.totalorder 1, %s8
    %p122 = scmp.lt.s32.totalorder %s8, 10
    %p123 = pnand %p121, %p122
    %p124 = pneg %p123
    // Predicated region
    $region9: #{generator_forward.17} parent=5 // pred_check
      _
    $region10: #{generator_forward.17} parent=5 // pred_check_branch
      %126 = sbr.rel (%p123) target = $region12
    $region11: #{generator_forward.17} parent=5 // pred_region
      %s127 = ssub.s32 %s8, 1
    $region12: #{generator_forward.17} parent=5 // pred_fallthru
      _
    %p128 = scmp.lt.s32.totalorder %s8, 9
    // Predicated region
    $region13: #{generator_forward.17} parent=5 // pred_check
      %p129 = pneg %p128
    $region14: #{generator_forward.17} parent=5 // pred_check_branch
      %131 = sbr.rel (%p129) target = $region16
    $region15: #{generator_forward.17} parent=5 // pred_region
      // Predicated region
      $region17: #{generator_forward.17} parent=15 // pred_check
        %p132 = pneg %p49
      $region18: #{generator_forward.17} parent=15 // pred_check_branch
        %134 = sbr.rel (%p132) target = $region20
      $region19: #{generator_forward.17} parent=15 // pred_region
        %p135 = scmp.lt.s32.totalorder %s15, 8
        %s136 = scalar_select %p135, %s15, 8
        %p137 = scmp.lt.s32.totalorder %s17, 0
        %s138 = scalar_select %p137, %s17, 0
        %s139 = sadd.s32 %s138, %s136
        %s140 = smul.addr %s139, 2
        %s141 = scalar_lea.vmem %s0, %s140
      $region20: #{generator_forward.17} parent=15 // pred_fallthru
        _
      // Predicated region
      $region21: #{generator_forward.17} parent=15 // pred_check
        %p142 = pneg %p79
      $region22: #{generator_forward.17} parent=15 // pred_check_branch
        %144 = sbr.rel (%p142) target = $region24
      $region23: #{generator_forward.17} parent=15 // pred_region
        %s145 = smul.u32 4, %s17
        %s146 = smul.u32 16, %s16
        %p147 = scmp.lt.s32.totalorder %s15, 8
        %s148 = scalar_select %p147, %s15, 8
        %p149 = scmp.lt.s32.totalorder %s145, 3
        %s150 = scalar_select %p149, %s145, 3
        %p151 = scmp.lt.s32.totalorder %s146, 15
        %s152 = scalar_select %p151, %s146, 15
        %s153 = smul.addr %s150, 16
        %s154 = sadd.s32 %s152, %s153
        %s155 = smul.addr %s148, 64
        %s156 = sadd.s32 %s154, %s155
        %s157 = smul.addr %s156, 4
        %s158 = scalar_lea.vmem %s1, %s157
        %s159 = smul.u32 4, %s17
        %s160 = smul.u32 16, %s16
      $region24: #{generator_forward.17} parent=15 // pred_fallthru
        _
    $region16: #{generator_forward.17} parent=5 // pred_fallthru
      _
    %p161 = scmp.le.s32.totalorder 1, %s8
    %p162 = scmp.lt.s32.totalorder %s8, 10
    %p163 = pnand %p161, %p162
    %p164 = pneg %p163
    // Predicated region
    $region25: #{generator_forward.17} parent=5 // pred_check
      _
    $region26: #{generator_forward.17} parent=5 // pred_check_branch
      %166 = sbr.rel (%p163) target = $region28
    $region27: #{generator_forward.17} parent=5 // pred_region
      %s167 = ssub.s32 %s8, 1
      %p168 = scmp.lt.s32.totalorder %s18, 8
      %s169 = scalar_select %p168, %s18, 8
      %p170 = scmp.lt.s32.totalorder %s20, 0
      %s171 = scalar_select %p170, %s20, 0
      %s172 = sadd.s32 %s171, %s169
      %s173 = smul.addr %s172, 2
      %s174 = scalar_lea.vmem %s0, %s173
      %p175 = pneg %p55
      %p176 = pneg %p52
      %s177 = smul.u32 4, %s20
      %s178 = smul.u32 16, %s19
      %p179 = scmp.lt.s32.totalorder %s18, 8
      %s180 = scalar_select %p179, %s18, 8
      %p181 = scmp.lt.s32.totalorder %s177, 3
      %s182 = scalar_select %p181, %s177, 3
      %p183 = scmp.lt.s32.totalorder %s178, 15
      %s184 = scalar_select %p183, %s178, 15
      %s185 = smul.addr %s182, 16
      %s186 = sadd.s32 %s184, %s185
      %s187 = smul.addr %s180, 64
      %s188 = sadd.s32 %s186, %s187
      %s189 = smul.addr %s188, 4
      %s190 = scalar_lea.vmem %s1, %s189
      %p191 = pneg %p85
      %p192 = pneg %p82
      %p193 = pneg %p113
      %p194 = pneg %p110
      %s195 = smul.u32 16, %s19
      %p196 = scmp.lt.s32.totalorder %s18, 8
      %s197 = scalar_select %p196, %s18, 8
      %p198 = scmp.lt.s32.totalorder %s195, 15
      %s199 = scalar_select %p198, %s195, 15
      %s200 = smul.addr %s197, 16
      %s201 = sadd.s32 %s199, %s200
      %s202 = smul.addr %s201, 4
      %s203 = scalar_lea.vmem %s2, %s202
      %p204 = scmp.lt.s32.totalorder %s18, 8
      %s205 = scalar_select %p204, %s18, 8
      %p206 = scmp.lt.s32.totalorder %s20, 0
      %s207 = scalar_select %p206, %s20, 0
      %s208 = sadd.s32 %s207, %s205
      %s209 = smul.addr %s208, 2
      %s210 = scalar_lea.vmem %s0, %s209
      %s211 = smul.u32 4, %s20
      %s212 = smul.u32 16, %s19
      %p213 = scmp.lt.s32.totalorder %s18, 8
      %s214 = scalar_select %p213, %s18, 8
      %p215 = scmp.lt.s32.totalorder %s211, 3
      %s216 = scalar_select %p215, %s211, 3
      %p217 = scmp.lt.s32.totalorder %s212, 15
      %s218 = scalar_select %p217, %s212, 15
      %s219 = smul.addr %s216, 16
      %s220 = sadd.s32 %s218, %s219
      %s221 = smul.addr %s214, 64
      %s222 = sadd.s32 %s220, %s221
      %s223 = smul.addr %s222, 4
      %s224 = scalar_lea.vmem %s1, %s223
      %s225 = smul.u32 4, %s20
      %s226 = smul.u32 16, %s19
      %s227 = smul.u32 16, %s19
      %p228 = scmp.lt.s32.totalorder %s18, 8
      %s229 = scalar_select %p228, %s18, 8
      %p230 = scmp.lt.s32.totalorder %s227, 15
      %s231 = scalar_select %p230, %s227, 15
      %s232 = smul.addr %s229, 16
      %s233 = sadd.s32 %s231, %s232
      %s234 = smul.addr %s233, 4
      %s235 = scalar_lea.vmem %s2, %s234
      %s236 = smul.u32 16, %s19
      %p238 = scmp.eq.s32.totalorder %s20, 0
      // Predicated region
      $region29: #{generator_forward.17} parent=27 // pred_check
        %p239 = pneg %p238
      $region30: #{generator_forward.17} parent=27 // pred_check_branch
        %241 = sbr.rel (%p239) target = $region32
      $region31: #{generator_forward.17} parent=27 // pred_region
        %242 = vst [vmem:[#allocation2] sm:$0x77] 0.0
        %243 = vst [vmem:[#allocation2 + $0x8] sm:$0x77] 0.0
        %244 = vst [vmem:[#allocation2 + $0x10] sm:$0x77] 0.0
        %245 = vst [vmem:[#allocation2 + $0x18] sm:$0x77] 0.0
        %246 = vst [vmem:[#allocation2 + $0x20] sm:$0x77] 0.0
        %247 = vst [vmem:[#allocation2 + $0x28] sm:$0x77] 0.0
        %248 = vst [vmem:[#allocation2 + $0x30] sm:$0x77] 0.0
        %249 = vst [vmem:[#allocation2 + $0x38] sm:$0x77] 0.0
      $region32: #{generator_forward.17} parent=27 // pred_fallthru
        _
      %v250 = vld [vmem:[#allocation2] sm:$0x77]
      %v251 = vld [vmem:[#allocation2 + $0x8] sm:$0x77]
      %v252 = vld [vmem:[#allocation2 + $0x10] sm:$0x77]
      %v253 = vld [vmem:[#allocation2 + $0x18] sm:$0x77]
      %v254 = vld [vmem:[#allocation2 + $0x20] sm:$0x77]
      %v255 = vld [vmem:[#allocation2 + $0x28] sm:$0x77]
      %v256 = vld [vmem:[#allocation2 + $0x30] sm:$0x77]
      %v257 = vld [vmem:[#allocation2 + $0x38] sm:$0x77]
      %v258 = vld [vmem:[%s210] sm:$0x3]
      %v259 = vld [vmem:[%s224] sm:$0xff]
      %v260 = vld [vmem:[%s224 + $0x8] sm:$0xff]
      %v261 = vld [vmem:[%s224 + $0x10] sm:$0xff]
      %v262 = vld [vmem:[%s224 + $0x18] sm:$0xff]
      %v263 = vld [vmem:[%s224 + $0x20] sm:$0xff]
      %v264 = vld [vmem:[%s224 + $0x28] sm:$0xff]
      %v265 = vld [vmem:[%s224 + $0x30] sm:$0xff]
      %v266 = vld [vmem:[%s224 + $0x38] sm:$0xff]
      %v267 = vld [vmem:[%s224 + $0x40] sm:$0xff]
      %v268 = vld [vmem:[%s224 + $0x48] sm:$0xff]
      %v269 = vld [vmem:[%s224 + $0x50] sm:$0xff]
      %v270 = vld [vmem:[%s224 + $0x58] sm:$0xff]
      %v271 = vld [vmem:[%s224 + $0x60] sm:$0xff]
      %v272 = vld [vmem:[%s224 + $0x68] sm:$0xff]
      %v273 = vld [vmem:[%s224 + $0x70] sm:$0xff]
      %v274 = vld [vmem:[%s224 + $0x78] sm:$0xff]
      %v275 = vld [vmem:[%s224 + $0x80] sm:$0xff]
      %v276 = vld [vmem:[%s224 + $0x88] sm:$0xff]
      %v277 = vld [vmem:[%s224 + $0x90] sm:$0xff]
      %v278 = vld [vmem:[%s224 + $0x98] sm:$0xff]
      %v279 = vld [vmem:[%s224 + $0xa0] sm:$0xff]
      %v280 = vld [vmem:[%s224 + $0xa8] sm:$0xff]
      %v281 = vld [vmem:[%s224 + $0xb0] sm:$0xff]
      %v282 = vld [vmem:[%s224 + $0xb8] sm:$0xff]
      %v283 = vld [vmem:[%s224 + $0xc0] sm:$0xff]
      %v284 = vld [vmem:[%s224 + $0xc8] sm:$0xff]
      %v285 = vld [vmem:[%s224 + $0xd0] sm:$0xff]
      %v286 = vld [vmem:[%s224 + $0xd8] sm:$0xff]
      %v287 = vld [vmem:[%s224 + $0xe0] sm:$0xff]
      %v288 = vld [vmem:[%s224 + $0xe8] sm:$0xff]
      %v289 = vld [vmem:[%s224 + $0xf0] sm:$0xff]
      %v290 = vld [vmem:[%s224 + $0xf8] sm:$0xff]
      %v323 = vunpack.c.l.b16 %v259
      %v324 = vunpack.c.h.b16 %v259
      %v325 = vunpack.c.l.b16 %v260
      %v326 = vunpack.c.h.b16 %v260
      %v327 = vunpack.c.l.b16 %v261
      %v328 = vunpack.c.h.b16 %v261
      %v329 = vunpack.c.l.b16 %v262
      %v330 = vunpack.c.h.b16 %v262
      %v331 = vunpack.c.l.b16 %v263
      %v332 = vunpack.c.h.b16 %v263
      %v333 = vunpack.c.l.b16 %v264
      %v334 = vunpack.c.h.b16 %v264
      %v335 = vunpack.c.l.b16 %v265
      %v336 = vunpack.c.h.b16 %v265
      %v337 = vunpack.c.l.b16 %v266
      %v338 = vunpack.c.h.b16 %v266
      %v339 = vunpack.c.l.b16 %v267
      %v340 = vunpack.c.h.b16 %v267
      %v341 = vunpack.c.l.b16 %v268
      %v342 = vunpack.c.h.b16 %v268
      %v343 = vunpack.c.l.b16 %v269
      %v344 = vunpack.c.h.b16 %v269
      %v345 = vunpack.c.l.b16 %v270
      %v346 = vunpack.c.h.b16 %v270
      %v347 = vunpack.c.l.b16 %v271
      %v348 = vunpack.c.h.b16 %v271
      %v349 = vunpack.c.l.b16 %v272
      %v350 = vunpack.c.h.b16 %v272
      %v351 = vunpack.c.l.b16 %v273
      %v352 = vunpack.c.h.b16 %v273
      %v353 = vunpack.c.l.b16 %v274
      %v354 = vunpack.c.h.b16 %v274
      %v355 = vunpack.c.l.b16 %v275
      %v356 = vunpack.c.h.b16 %v275
      %v357 = vunpack.c.l.b16 %v276
      %v358 = vunpack.c.h.b16 %v276
      %v359 = vunpack.c.l.b16 %v277
      %v360 = vunpack.c.h.b16 %v277
      %v361 = vunpack.c.l.b16 %v278
      %v362 = vunpack.c.h.b16 %v278
      %v363 = vunpack.c.l.b16 %v279
      %v364 = vunpack.c.h.b16 %v279
      %v365 = vunpack.c.l.b16 %v280
      %v366 = vunpack.c.h.b16 %v280
      %v367 = vunpack.c.l.b16 %v281
      %v368 = vunpack.c.h.b16 %v281
      %v369 = vunpack.c.l.b16 %v282
      %v370 = vunpack.c.h.b16 %v282
      %v371 = vunpack.c.l.b16 %v283
      %v372 = vunpack.c.h.b16 %v283
      %v373 = vunpack.c.l.b16 %v284
      %v374 = vunpack.c.h.b16 %v284
      %v375 = vunpack.c.l.b16 %v285
      %v376 = vunpack.c.h.b16 %v285
      %v377 = vunpack.c.l.b16 %v286
      %v378 = vunpack.c.h.b16 %v286
      %v379 = vunpack.c.l.b16 %v287
      %v380 = vunpack.c.h.b16 %v287
      %v381 = vunpack.c.l.b16 %v288
      %v382 = vunpack.c.h.b16 %v288
      %v383 = vunpack.c.l.b16 %v289
      %v384 = vunpack.c.h.b16 %v289
      %v385 = vunpack.c.l.b16 %v290
      %v386 = vunpack.c.h.b16 %v290
      %v387 = vpack.c.b16 %v339, %v323
      %v388 = vpack.c.b16 %v340, %v324
      %v389 = vpack.c.b16 %v341, %v325
      %v390 = vpack.c.b16 %v342, %v326
      %v391 = vpack.c.b16 %v343, %v327
      %v392 = vpack.c.b16 %v344, %v328
      %v393 = vpack.c.b16 %v345, %v329
      %v394 = vpack.c.b16 %v346, %v330
      %v395 = vpack.c.b16 %v347, %v331
      %v396 = vpack.c.b16 %v348, %v332
      %v397 = vpack.c.b16 %v349, %v333
      %v398 = vpack.c.b16 %v350, %v334
      %v399 = vpack.c.b16 %v351, %v335
      %v400 = vpack.c.b16 %v352, %v336
      %v401 = vpack.c.b16 %v353, %v337
      %v402 = vpack.c.b16 %v354, %v338
      %v403 = vpack.c.b16 %v371, %v355
      %v404 = vpack.c.b16 %v372, %v356
      %v405 = vpack.c.b16 %v373, %v357
      %v406 = vpack.c.b16 %v374, %v358
      %v407 = vpack.c.b16 %v375, %v359
      %v408 = vpack.c.b16 %v376, %v360
      %v409 = vpack.c.b16 %v377, %v361
      %v410 = vpack.c.b16 %v378, %v362
      %v411 = vpack.c.b16 %v379, %v363
      %v412 = vpack.c.b16 %v380, %v364
      %v413 = vpack.c.b16 %v381, %v365
      %v414 = vpack.c.b16 %v382, %v366
      %v415 = vpack.c.b16 %v383, %v367
      %v416 = vpack.c.b16 %v384, %v368
      %v417 = vpack.c.b16 %v385, %v369
      %v418 = vpack.c.b16 %v386, %v370
      %vm451 = vcmask 261120
      %v453 = vsel %vm451, %v258, 0
      %455 = vmatprep.subr.bf16.mxu0 %v388
      %456 = vmatpush1.bf16.msra.mxu0 %v387
      %457 = vmatprep.subr.bf16.mxu0 %v404
      %458 = vmatpush1.bf16.msra.mxu0 %v403
      %459 = vmatprep.subr.bf16.mxu0 0
      %460 = vmatpush1.bf16.msra.mxu0 0
      %461 = vmatprep.subr.bf16.mxu0 0
      %462 = vmatpush1.bf16.msra.mxu0 0
      %463 = vmatprep.subr.bf16.mxu0 0
      %464 = vmatpush1.bf16.msra.mxu0 0
      %465 = vmatprep.subr.bf16.mxu0 0
      %466 = vmatpush1.bf16.msra.mxu0 0
      %467 = vmatprep.subr.bf16.mxu0 0
      %468 = vmatpush1.bf16.msra.mxu0 0
      %469 = vmatprep.subr.bf16.mxu0 0
      %470 = vmatpush1.bf16.msra.mxu0 0
      %471 = vmatprep.subr.bf16.mxu0 0
      %472 = vmatpush1.bf16.msra.mxu0 0
      %473 = vmatprep.subr.bf16.mxu0 0
      %474 = vmatpush1.bf16.msra.mxu0 0
      %475 = vmatprep.subr.bf16.mxu0 0
      %476 = vmatpush1.bf16.msra.mxu0 0
      %477 = vmatprep.subr.bf16.mxu0 0
      %478 = vmatpush1.bf16.msra.mxu0 0
      %479 = vmatprep.subr.bf16.mxu0 0
      %480 = vmatpush1.bf16.msra.mxu0 0
      %481 = vmatprep.subr.bf16.mxu0 0
      %482 = vmatpush1.bf16.msra.mxu0 0
      %483 = vmatprep.subr.bf16.mxu0 0
      %484 = vmatpush1.bf16.msra.mxu0 0
      %485 = vmatprep.subr.bf16.mxu0 0
      %486 = vmatpush1.bf16.msra.mxu0 0
      %487 = vmatprep.mubr.bf16.mxu0 0
      %488 = vmatmul.mubr.bf16.gmra.mrb[0].mxu0 %v453
      %v489 = vpop.f32.mrb[0].mxu0
      %v490 = vadd.f32 0.0, %v489
      %v491 = vpop.f32.mrb[0].mxu0
      %v492 = vadd.f32 0.0, %v491
      %v493 = vpop.f32.mrb[0].mxu0
      %v494 = vpop.f32.mrb[0].mxu0
      %495 = vdwg.mxu0
      %496 = vmatprep.subr.bf16.mxu0 %v390
      %497 = vmatpush1.bf16.msra.mxu0 %v389
      %498 = vmatprep.subr.bf16.mxu0 %v406
      %499 = vmatpush1.bf16.msra.mxu0 %v405
      %500 = vmatprep.subr.bf16.mxu0 0
      %501 = vmatpush1.bf16.msra.mxu0 0
      %502 = vmatprep.subr.bf16.mxu0 0
      %503 = vmatpush1.bf16.msra.mxu0 0
      %504 = vmatprep.subr.bf16.mxu0 0
      %505 = vmatpush1.bf16.msra.mxu0 0
      %506 = vmatprep.subr.bf16.mxu0 0
      %507 = vmatpush1.bf16.msra.mxu0 0
      %508 = vmatprep.subr.bf16.mxu0 0
      %509 = vmatpush1.bf16.msra.mxu0 0
      %510 = vmatprep.subr.bf16.mxu0 0
      %511 = vmatpush1.bf16.msra.mxu0 0
      %512 = vmatprep.subr.bf16.mxu0 0
      %513 = vmatpush1.bf16.msra.mxu0 0
      %514 = vmatprep.subr.bf16.mxu0 0
      %515 = vmatpush1.bf16.msra.mxu0 0
      %516 = vmatprep.subr.bf16.mxu0 0
      %517 = vmatpush1.bf16.msra.mxu0 0
      %518 = vmatprep.subr.bf16.mxu0 0
      %519 = vmatpush1.bf16.msra.mxu0 0
      %520 = vmatprep.subr.bf16.mxu0 0
      %521 = vmatpush1.bf16.msra.mxu0 0
      %522 = vmatprep.subr.bf16.mxu0 0
      %523 = vmatpush1.bf16.msra.mxu0 0
      %524 = vmatprep.subr.bf16.mxu0 0
      %525 = vmatpush1.bf16.msra.mxu0 0
      %526 = vmatprep.subr.bf16.mxu0 0
      %527 = vmatpush1.bf16.msra.mxu0 0
      %528 = vmatprep.mubr.bf16.mxu0 0
      %529 = vmatmul.mubr.bf16.gmra.mrb[0].mxu0 %v453
      %v530 = vpop.f32.mrb[0].mxu0
      %v531 = vadd.f32 0.0, %v530
      %v532 = vpop.f32.mrb[0].mxu0
      %v533 = vadd.f32 0.0, %v532
      %v534 = vpop.f32.mrb[0].mxu0
      %v535 = vpop.f32.mrb[0].mxu0
      %536 = vdwg.mxu0
      %537 = vmatprep.subr.bf16.mxu0 %v392
      %538 = vmatpush1.bf16.msra.mxu0 %v391
      %539 = vmatprep.subr.bf16.mxu0 %v408
      %540 = vmatpush1.bf16.msra.mxu0 %v407
      %541 = vmatprep.subr.bf16.mxu0 0
      %542 = vmatpush1.bf16.msra.mxu0 0
      %543 = vmatprep.subr.bf16.mxu0 0
      %544 = vmatpush1.bf16.msra.mxu0 0
      %545 = vmatprep.subr.bf16.mxu0 0
      %546 = vmatpush1.bf16.msra.mxu0 0
      %547 = vmatprep.subr.bf16.mxu0 0
      %548 = vmatpush1.bf16.msra.mxu0 0
      %549 = vmatprep.subr.bf16.mxu0 0
      %550 = vmatpush1.bf16.msra.mxu0 0
      %551 = vmatprep.subr.bf16.mxu0 0
      %552 = vmatpush1.bf16.msra.mxu0 0
      %553 = vmatprep.subr.bf16.mxu0 0
      %554 = vmatpush1.bf16.msra.mxu0 0
      %555 = vmatprep.subr.bf16.mxu0 0
      %556 = vmatpush1.bf16.msra.mxu0 0
      %557 = vmatprep.subr.bf16.mxu0 0
      %558 = vmatpush1.bf16.msra.mxu0 0
      %559 = vmatprep.subr.bf16.mxu0 0
      %560 = vmatpush1.bf16.msra.mxu0 0
      %561 = vmatprep.subr.bf16.mxu0 0
      %562 = vmatpush1.bf16.msra.mxu0 0
      %563 = vmatprep.subr.bf16.mxu0 0
      %564 = vmatpush1.bf16.msra.mxu0 0
      %565 = vmatprep.subr.bf16.mxu0 0
      %566 = vmatpush1.bf16.msra.mxu0 0
      %567 = vmatprep.subr.bf16.mxu0 0
      %568 = vmatpush1.bf16.msra.mxu0 0
      %569 = vmatprep.mubr.bf16.mxu0 0
      %570 = vmatmul.mubr.bf16.gmra.mrb[0].mxu0 %v453
      %v571 = vpop.f32.mrb[0].mxu0
      %v572 = vadd.f32 0.0, %v571
      %v573 = vpop.f32.mrb[0].mxu0
      %v574 = vadd.f32 0.0, %v573
      %v575 = vpop.f32.mrb[0].mxu0
      %v576 = vpop.f32.mrb[0].mxu0
      %577 = vdwg.mxu0
      %578 = vmatprep.subr.bf16.mxu0 %v394
      %579 = vmatpush1.bf16.msra.mxu0 %v393
      %580 = vmatprep.subr.bf16.mxu0 %v410
      %581 = vmatpush1.bf16.msra.mxu0 %v409
      %582 = vmatprep.subr.bf16.mxu0 0
      %583 = vmatpush1.bf16.msra.mxu0 0
      %584 = vmatprep.subr.bf16.mxu0 0
      %585 = vmatpush1.bf16.msra.mxu0 0
      %586 = vmatprep.subr.bf16.mxu0 0
      %587 = vmatpush1.bf16.msra.mxu0 0
      %588 = vmatprep.subr.bf16.mxu0 0
      %589 = vmatpush1.bf16.msra.mxu0 0
      %590 = vmatprep.subr.bf16.mxu0 0
      %591 = vmatpush1.bf16.msra.mxu0 0
      %592 = vmatprep.subr.bf16.mxu0 0
      %593 = vmatpush1.bf16.msra.mxu0 0
      %594 = vmatprep.subr.bf16.mxu0 0
      %595 = vmatpush1.bf16.msra.mxu0 0
      %596 = vmatprep.subr.bf16.mxu0 0
      %597 = vmatpush1.bf16.msra.mxu0 0
      %598 = vmatprep.subr.bf16.mxu0 0
      %599 = vmatpush1.bf16.msra.mxu0 0
      %600 = vmatprep.subr.bf16.mxu0 0
      %601 = vmatpush1.bf16.msra.mxu0 0
      %602 = vmatprep.subr.bf16.mxu0 0
      %603 = vmatpush1.bf16.msra.mxu0 0
      %604 = vmatprep.subr.bf16.mxu0 0
      %605 = vmatpush1.bf16.msra.mxu0 0
      %606 = vmatprep.subr.bf16.mxu0 0
      %607 = vmatpush1.bf16.msra.mxu0 0
      %608 = vmatprep.subr.bf16.mxu0 0
      %609 = vmatpush1.bf16.msra.mxu0 0
      %610 = vmatprep.mubr.bf16.mxu0 0
      %611 = vmatmul.mubr.bf16.gmra.mrb[0].mxu0 %v453
      %v612 = vpop.f32.mrb[0].mxu0
      %v613 = vadd.f32 0.0, %v612
      %v614 = vpop.f32.mrb[0].mxu0
      %v615 = vadd.f32 0.0, %v614
      %v616 = vpop.f32.mrb[0].mxu0
      %v617 = vpop.f32.mrb[0].mxu0
      %618 = vdwg.mxu0
      %619 = vmatprep.subr.bf16.mxu0 %v396
      %620 = vmatpush1.bf16.msra.mxu0 %v395
      %621 = vmatprep.subr.bf16.mxu0 %v412
      %622 = vmatpush1.bf16.msra.mxu0 %v411
      %623 = vmatprep.subr.bf16.mxu0 0
      %624 = vmatpush1.bf16.msra.mxu0 0
      %625 = vmatprep.subr.bf16.mxu0 0
      %626 = vmatpush1.bf16.msra.mxu0 0
      %627 = vmatprep.subr.bf16.mxu0 0
      %628 = vmatpush1.bf16.msra.mxu0 0
      %629 = vmatprep.subr.bf16.mxu0 0
      %630 = vmatpush1.bf16.msra.mxu0 0
      %631 = vmatprep.subr.bf16.mxu0 0
      %632 = vmatpush1.bf16.msra.mxu0 0
      %633 = vmatprep.subr.bf16.mxu0 0
      %634 = vmatpush1.bf16.msra.mxu0 0
      %635 = vmatprep.subr.bf16.mxu0 0
      %636 = vmatpush1.bf16.msra.mxu0 0
      %637 = vmatprep.subr.bf16.mxu0 0
      %638 = vmatpush1.bf16.msra.mxu0 0
      %639 = vmatprep.subr.bf16.mxu0 0
      %640 = vmatpush1.bf16.msra.mxu0 0
      %641 = vmatprep.subr.bf16.mxu0 0
      %642 = vmatpush1.bf16.msra.mxu0 0
      %643 = vmatprep.subr.bf16.mxu0 0
      %644 = vmatpush1.bf16.msra.mxu0 0
      %645 = vmatprep.subr.bf16.mxu0 0
      %646 = vmatpush1.bf16.msra.mxu0 0
      %647 = vmatprep.subr.bf16.mxu0 0
      %648 = vmatpush1.bf16.msra.mxu0 0
      %649 = vmatprep.subr.bf16.mxu0 0
      %650 = vmatpush1.bf16.msra.mxu0 0
      %651 = vmatprep.mubr.bf16.mxu0 0
      %652 = vmatmul.mubr.bf16.gmra.mrb[0].mxu0 %v453
      %v653 = vpop.f32.mrb[0].mxu0
      %v654 = vadd.f32 0.0, %v653
      %v655 = vpop.f32.mrb[0].mxu0
      %v656 = vadd.f32 0.0, %v655
      %v657 = vpop.f32.mrb[0].mxu0
      %v658 = vpop.f32.mrb[0].mxu0
      %659 = vdwg.mxu0
      %660 = vmatprep.subr.bf16.mxu0 %v398
      %661 = vmatpush1.bf16.msra.mxu0 %v397
      %662 = vmatprep.subr.bf16.mxu0 %v414
      %663 = vmatpush1.bf16.msra.mxu0 %v413
      %664 = vmatprep.subr.bf16.mxu0 0
      %665 = vmatpush1.bf16.msra.mxu0 0
      %666 = vmatprep.subr.bf16.mxu0 0
      %667 = vmatpush1.bf16.msra.mxu0 0
      %668 = vmatprep.subr.bf16.mxu0 0
      %669 = vmatpush1.bf16.msra.mxu0 0
      %670 = vmatprep.subr.bf16.mxu0 0
      %671 = vmatpush1.bf16.msra.mxu0 0
      %672 = vmatprep.subr.bf16.mxu0 0
      %673 = vmatpush1.bf16.msra.mxu0 0
      %674 = vmatprep.subr.bf16.mxu0 0
      %675 = vmatpush1.bf16.msra.mxu0 0
      %676 = vmatprep.subr.bf16.mxu0 0
      %677 = vmatpush1.bf16.msra.mxu0 0
      %678 = vmatprep.subr.bf16.mxu0 0
      %679 = vmatpush1.bf16.msra.mxu0 0
      %680 = vmatprep.subr.bf16.mxu0 0
      %681 = vmatpush1.bf16.msra.mxu0 0
      %682 = vmatprep.subr.bf16.mxu0 0
      %683 = vmatpush1.bf16.msra.mxu0 0
      %684 = vmatprep.subr.bf16.mxu0 0
      %685 = vmatpush1.bf16.msra.mxu0 0
      %686 = vmatprep.subr.bf16.mxu0 0
      %687 = vmatpush1.bf16.msra.mxu0 0
      %688 = vmatprep.subr.bf16.mxu0 0
      %689 = vmatpush1.bf16.msra.mxu0 0
      %690 = vmatprep.subr.bf16.mxu0 0
      %691 = vmatpush1.bf16.msra.mxu0 0
      %692 = vmatprep.mubr.bf16.mxu0 0
      %693 = vmatmul.mubr.bf16.gmra.mrb[0].mxu0 %v453
      %v694 = vpop.f32.mrb[0].mxu0
      %v695 = vadd.f32 0.0, %v694
      %v696 = vpop.f32.mrb[0].mxu0
      %v697 = vadd.f32 0.0, %v696
      %v698 = vpop.f32.mrb[0].mxu0
      %v699 = vpop.f32.mrb[0].mxu0
      %700 = vdwg.mxu0
      %701 = vmatprep.subr.bf16.mxu0 %v400
      %702 = vmatpush1.bf16.msra.mxu0 %v399
      %703 = vmatprep.subr.bf16.mxu0 %v416
      %704 = vmatpush1.bf16.msra.mxu0 %v415
      %705 = vmatprep.subr.bf16.mxu0 0
      %706 = vmatpush1.bf16.msra.mxu0 0
      %707 = vmatprep.subr.bf16.mxu0 0
      %708 = vmatpush1.bf16.msra.mxu0 0
      %709 = vmatprep.subr.bf16.mxu0 0
      %710 = vmatpush1.bf16.msra.mxu0 0
      %711 = vmatprep.subr.bf16.mxu0 0
      %712 = vmatpush1.bf16.msra.mxu0 0
      %713 = vmatprep.subr.bf16.mxu0 0
      %714 = vmatpush1.bf16.msra.mxu0 0
      %715 = vmatprep.subr.bf16.mxu0 0
      %716 = vmatpush1.bf16.msra.mxu0 0
      %717 = vmatprep.subr.bf16.mxu0 0
      %718 = vmatpush1.bf16.msra.mxu0 0
      %719 = vmatprep.subr.bf16.mxu0 0
      %720 = vmatpush1.bf16.msra.mxu0 0
      %721 = vmatprep.subr.bf16.mxu0 0
      %722 = vmatpush1.bf16.msra.mxu0 0
      %723 = vmatprep.subr.bf16.mxu0 0
      %724 = vmatpush1.bf16.msra.mxu0 0
      %725 = vmatprep.subr.bf16.mxu0 0
      %726 = vmatpush1.bf16.msra.mxu0 0
      %727 = vmatprep.subr.bf16.mxu0 0
      %728 = vmatpush1.bf16.msra.mxu0 0
      %729 = vmatprep.subr.bf16.mxu0 0
      %730 = vmatpush1.bf16.msra.mxu0 0
      %731 = vmatprep.subr.bf16.mxu0 0
      %732 = vmatpush1.bf16.msra.mxu0 0
      %733 = vmatprep.mubr.bf16.mxu0 0
      %734 = vmatmul.mubr.bf16.gmra.mrb[0].mxu0 %v453
      %v735 = vpop.f32.mrb[0].mxu0
      %v736 = vadd.f32 0.0, %v735
      %v737 = vpop.f32.mrb[0].mxu0
      %v738 = vadd.f32 0.0, %v737
      %v739 = vpop.f32.mrb[0].mxu0
      %v740 = vpop.f32.mrb[0].mxu0
      %741 = vdwg.mxu0
      %742 = vmatprep.subr.bf16.mxu0 %v402
      %743 = vmatpush1.bf16.msra.mxu0 %v401
      %744 = vmatprep.subr.bf16.mxu0 %v418
      %745 = vmatpush1.bf16.msra.mxu0 %v417
      %746 = vmatprep.subr.bf16.mxu0 0
      %747 = vmatpush1.bf16.msra.mxu0 0
      %748 = vmatprep.subr.bf16.mxu0 0
      %749 = vmatpush1.bf16.msra.mxu0 0
      %750 = vmatprep.subr.bf16.mxu0 0
      %751 = vmatpush1.bf16.msra.mxu0 0
      %752 = vmatprep.subr.bf16.mxu0 0
      %753 = vmatpush1.bf16.msra.mxu0 0
      %754 = vmatprep.subr.bf16.mxu0 0
      %755 = vmatpush1.bf16.msra.mxu0 0
      %756 = vmatprep.subr.bf16.mxu0 0
      %757 = vmatpush1.bf16.msra.mxu0 0
      %758 = vmatprep.subr.bf16.mxu0 0
      %759 = vmatpush1.bf16.msra.mxu0 0
      %760 = vmatprep.subr.bf16.mxu0 0
      %761 = vmatpush1.bf16.msra.mxu0 0
      %762 = vmatprep.subr.bf16.mxu0 0
      %763 = vmatpush1.bf16.msra.mxu0 0
      %764 = vmatprep.subr.bf16.mxu0 0
      %765 = vmatpush1.bf16.msra.mxu0 0
      %766 = vmatprep.subr.bf16.mxu0 0
      %767 = vmatpush1.bf16.msra.mxu0 0
      %768 = vmatprep.subr.bf16.mxu0 0
      %769 = vmatpush1.bf16.msra.mxu0 0
      %770 = vmatprep.subr.bf16.mxu0 0
      %771 = vmatpush1.bf16.msra.mxu0 0
      %772 = vmatprep.subr.bf16.mxu0 0
      %773 = vmatpush1.bf16.msra.mxu0 0
      %774 = vmatprep.mubr.bf16.mxu0 0
      %775 = vmatmul.mubr.bf16.gmra.mrb[0].mxu0 %v453
      %v776 = vpop.f32.mrb[0].mxu0
      %v777 = vadd.f32 0.0, %v776
      %v778 = vpop.f32.mrb[0].mxu0
      %v779 = vadd.f32 0.0, %v778
      %v780 = vpop.f32.mrb[0].mxu0
      %v781 = vpop.f32.mrb[0].mxu0
      %782 = vdwg.mxu0
      %v799 = vcombine.low %v490, %v492
      %v800 = vcombine.low %v531, %v533
      %v801 = vcombine.low %v572, %v574
      %v802 = vcombine.low %v613, %v615
      %v803 = vcombine.low %v654, %v656
      %v804 = vcombine.low %v695, %v697
      %v805 = vcombine.low %v736, %v738
      %v806 = vcombine.low %v777, %v779
      %v815 = vadd.f32 %v250, %v799
      %v816 = vadd.f32 %v251, %v800
      %v817 = vadd.f32 %v252, %v801
      %v818 = vadd.f32 %v253, %v802
      %v819 = vadd.f32 %v254, %v803
      %v820 = vadd.f32 %v255, %v804
      %v821 = vadd.f32 %v256, %v805
      %v822 = vadd.f32 %v257, %v806
      %823 = vst [vmem:[#allocation2] sm:$0x77] %v815
      %824 = vst [vmem:[#allocation2 + $0x8] sm:$0x77] %v816
      %825 = vst [vmem:[#allocation2 + $0x10] sm:$0x77] %v817
      %826 = vst [vmem:[#allocation2 + $0x18] sm:$0x77] %v818
      %827 = vst [vmem:[#allocation2 + $0x20] sm:$0x77] %v819
      %828 = vst [vmem:[#allocation2 + $0x28] sm:$0x77] %v820
      %829 = vst [vmem:[#allocation2 + $0x30] sm:$0x77] %v821
      %830 = vst [vmem:[#allocation2 + $0x38] sm:$0x77] %v822
      // Predicated region
      $region33: #{generator_forward.17} parent=27 // pred_check
        %p831 = pneg %p238
      $region34: #{generator_forward.17} parent=27 // pred_check_branch
        %833 = sbr.rel (%p831) target = $region36
      $region35: #{generator_forward.17} parent=27 // pred_region
        %v834 = vld [vmem:[#allocation2] sm:$0x77]
        %v835 = vld [vmem:[#allocation2 + $0x8] sm:$0x77]
        %v836 = vld [vmem:[#allocation2 + $0x10] sm:$0x77]
        %v837 = vld [vmem:[#allocation2 + $0x18] sm:$0x77]
        %v838 = vld [vmem:[#allocation2 + $0x20] sm:$0x77]
        %v839 = vld [vmem:[#allocation2 + $0x28] sm:$0x77]
        %v840 = vld [vmem:[#allocation2 + $0x30] sm:$0x77]
        %v841 = vld [vmem:[#allocation2 + $0x38] sm:$0x77]
        %v842 = vtanh.pop %v834
        %v843 = vtanh.pop %v835
        %v844 = vtanh.pop %v836
        %v845 = vtanh.pop %v837
        %v846 = vtanh.pop %v838
        %v847 = vtanh.pop %v839
        %v848 = vtanh.pop %v840
        %v849 = vtanh.pop %v841
        %850 = vst [vmem:[%s235] sm:$0x77] %v842
        %851 = vst [vmem:[%s235 + $0x8] sm:$0x77] %v843
        %852 = vst [vmem:[%s235 + $0x10] sm:$0x77] %v844
        %853 = vst [vmem:[%s235 + $0x18] sm:$0x77] %v845
        %854 = vst [vmem:[%s235 + $0x20] sm:$0x77] %v846
        %855 = vst [vmem:[%s235 + $0x28] sm:$0x77] %v847
        %856 = vst [vmem:[%s235 + $0x30] sm:$0x77] %v848
        %857 = vst [vmem:[%s235 + $0x38] sm:$0x77] %v849
      $region36: #{generator_forward.17} parent=27 // pred_fallthru
        _
      %s858 = smul.u32 16, %s19
      %p859 = scmp.lt.s32.totalorder %s18, 8
      %s860 = scalar_select %p859, %s18, 8
      %p861 = scmp.lt.s32.totalorder %s858, 15
      %s862 = scalar_select %p861, %s858, 15
      %s863 = smul.addr %s860, 16
      %s864 = sadd.s32 %s862, %s863
      %s865 = smul.addr %s864, 4
      %s866 = scalar_lea.vmem %s2, %s865
      // Predicated region
      $region37: #{generator_forward.17} parent=27 // pred_check
        %p867 = pneg %p110
      $region38: #{generator_forward.17} parent=27 // pred_check_branch
        %869 = sbr.rel (%p867) target = $region40
      $region39: #{generator_forward.17} parent=27 // pred_region
        %s870 = smul.u32 16, %s19
      $region40: #{generator_forward.17} parent=27 // pred_fallthru
        _
    $region28: #{generator_forward.17} parent=5 // pred_fallthru
      _
    %p871 = scmp.le.s32.totalorder 2, %s8
    // Predicated region
    $region41: #{generator_forward.17} parent=5 // pred_check
      %p872 = pneg %p871
    $region42: #{generator_forward.17} parent=5 // pred_check_branch
      %874 = sbr.rel (%p872) target = $region44
    $region43: #{generator_forward.17} parent=5 // pred_region
      %s875 = ssub.s32 %s8, 2
      // Predicated region
      $region45: #{generator_forward.17} parent=43 // pred_check
        %p876 = pneg %p116
      $region46: #{generator_forward.17} parent=43 // pred_check_branch
        %878 = sbr.rel (%p876) target = $region48
      $region47: #{generator_forward.17} parent=43 // pred_region
        %s879 = smul.u32 16, %s22
        %p880 = scmp.lt.s32.totalorder %s21, 8
        %s881 = scalar_select %p880, %s21, 8
        %p882 = scmp.lt.s32.totalorder %s879, 15
        %s883 = scalar_select %p882, %s879, 15
        %s884 = smul.addr %s881, 16
        %s885 = sadd.s32 %s883, %s884
        %s886 = smul.addr %s885, 4
        %s887 = scalar_lea.vmem %s2, %s886
      $region48: #{generator_forward.17} parent=43 // pred_fallthru
        _
    $region44: #{generator_forward.17} parent=5 // pred_fallthru
      _
  $region6: #{generator_forward.17} parent=0 // loop_footer
    %s12 = sadd.s32 1, %s8
  $region7: #{generator_forward.17} parent=0 // loop_footer_branch
    %7 = sbr.rel target = $region3
  $region8: #{generator_forward.17} parent=0 // loop_exit
    _

</llo_original>
